<compile_context>
chip_gen: v5e
topology: v5e:2x2
jax: 0.10.0
libtpu: 0.0.40
codegen_flags: <defaults>
</compile_context>

<pallas_src>
import math
import functools

import jax
import jax.numpy as jnp
from jax.experimental import pallas as pl
from jax.experimental.pallas import tpu as pltpu


# ----------------------------- sym_utils glue -----------------------------

def num_perms(n, m):
    return math.factorial(n) // math.factorial(n - m)


def sizes_to_size(n, sizes):
    return sum(num_perms(n, m) * s for m, s in enumerate(sizes))


def gate_permutation(n, hid_sizes):
    """Column permutation: interleaved per-block [g,i,f,o] -> [G|I|F|O]."""
    g_idx, i_idx, f_idx, o_idx = [], [], [], []
    st = 0
    for m, s in enumerate(hid_sizes):
        if s:
            for _ in range(num_perms(n, m)):
                base = 4 * st
                g_idx += list(range(base, base + s))
                i_idx += list(range(base + s, base + 2 * s))
                f_idx += list(range(base + 2 * s, base + 3 * s))
                o_idx += list(range(base + 3 * s, base + 4 * s))
                st += s
    return jnp.asarray(g_idx + i_idx + f_idx + o_idx, dtype=jnp.int32)


def _round_up(x, m):
    return (x + m - 1) // m * m


# ------------------------------ Pallas kernel ------------------------------

def _sym_lstm_layer_kernel(x_ref, w_ih_ref, w_hh_ref, b_ref, h0_ref, c0_ref,
                           out_ref, hN_ref, cN_ref,
                           ih_scr, out_scr, h_scr, c_scr,
                           *, T, CT, Hp, unroll, mask_tail):
    """One (batch_shard, time_chunk) grid step of one stacked-LSTM layer.

    x_ref:   (CT, Bsub, Din)  bf16   current chunk of this layer's input
    w_ih:    (Din, 4*Hp)      bf16
    w_hh:    (Hp, 4*Hp)       bf16
    b_ref:   (1, 4*Hp)        f32    (b_ih + b_hh, permuted + padded)
    h0/c0:   (1, Bsub, Hp)    f32
    out_ref: (CT, Bsub, Hp)   bf16
    hN/cN:   (1, Bsub, Hp)    f32
    ih_scr:  (CT, Bsub, 4*Hp) f32    hoisted gates for this chunk only
    out_scr: (CT, Bsub, Hp)   f32    per-chunk output staging
    h_scr/c_scr: (Bsub, Hp)   f32    recurrent state carried across chunks
    """
    c_idx = pl.program_id(1)
    n_chunks = pl.num_programs(1)
    ct, bsub, din = x_ref.shape
    gp = 4 * Hp

    # Hoisted input->hidden projection for this chunk: one big bf16 MXU matmul
    # with f32 accumulation, bias folded in.  Rows = CT*Bsub (>= 256 for real
    # shapes), cols = 4*Hp (multiple of 512) -> fills the 256-wide MXU.
    xin = x_ref[...].reshape(ct * bsub, din)                       # bf16
    ih = jnp.dot(xin, w_ih_ref[...],
                 preferred_element_type=jnp.float32) + b_ref[...]  # f32
    ih_scr[...] = ih.reshape(ct, bsub, gp)

    # (Re)load the recurrent state at the first chunk of each batch shard.
    @pl.when(c_idx == 0)
    def _():
        h_scr[...] = h0_ref[0]
        c_scr[...] = c0_ref[0]

    w_hh = w_hh_ref[...]                                           # (Hp, 4Hp) bf16

    def step(t, carry):
        h, c = carry                                               # f32 (Bsub, Hp)
        gates = ih_scr[t] + jnp.dot(h.astype(jnp.bfloat16), w_hh,
                                    preferred_element_type=jnp.float32)
        # Slab nonlinearities: one tanh over the G slab, one sigmoid over I|F|O.
        g_t = jnp.tanh(gates[:, :Hp])
        ifo = jax.nn.sigmoid(gates[:, Hp:])
        c_new = g_t * ifo[:, :Hp] + c * ifo[:, Hp:2 * Hp]
        h_new = jnp.tanh(c_new) * ifo[:, 2 * Hp:]
        if mask_tail:  # only emitted when T is not a multiple of CT
            valid = (c_idx * CT + t) < T
            h_new = jnp.where(valid, h_new, h)
            c_new = jnp.where(valid, c_new, c)
        out_scr[t] = h_new                                         # aligned f32 store
        return (h_new, c_new)

    h, c = jax.lax.fori_loop(0, CT, step, (h_scr[...], c_scr[...]),
                             unroll=unroll)
    h_scr[...] = h
    c_scr[...] = c

    # One lane-dense bf16 store per chunk (not per step).
    out_ref[...] = out_scr[...].astype(out_ref.dtype)

    @pl.when(c_idx == n_chunks - 1)
    def _():
        hN_ref[0] = h
        cN_ref[0] = c


def _run_layer(xin, w_ih, w_hh, bias, h0, c0, *,
               T, CT, NC, nsplit, Bsub, Hp, unroll):
    Tp = NC * CT
    Din = xin.shape[-1]
    Gp = 4 * Hp
    kernel = functools.partial(_sym_lstm_layer_kernel,
                               T=T, CT=CT, Hp=Hp, unroll=unroll,
                               mask_tail=(Tp != T))
    out, hN, cN = pl.pallas_call(
        kernel,
        grid=(nsplit, NC),
        in_specs=[
            pl.BlockSpec((CT, Bsub, Din), lambda s, c: (c, s, 0)),   # x chunk
            pl.BlockSpec((Din, Gp),       lambda s, c: (0, 0)),      # w_ih
            pl.BlockSpec((Hp, Gp),        lambda s, c: (0, 0)),      # w_hh
            pl.BlockSpec((1, Gp),         lambda s, c: (0, 0)),      # bias
            pl.BlockSpec((1, Bsub, Hp),   lambda s, c: (s, 0, 0)),   # h0 shard
            pl.BlockSpec((1, Bsub, Hp),   lambda s, c: (s, 0, 0)),   # c0 shard
        ],
        out_specs=[
            pl.BlockSpec((CT, Bsub, Hp),  lambda s, c: (c, s, 0)),   # out chunk
            pl.BlockSpec((1, Bsub, Hp),   lambda s, c: (s, 0, 0)),   # h_N shard
            pl.BlockSpec((1, Bsub, Hp),   lambda s, c: (s, 0, 0)),   # c_N shard
        ],
        out_shape=(
            jax.ShapeDtypeStruct((Tp, nsplit * Bsub, Hp), jnp.bfloat16),
            jax.ShapeDtypeStruct((nsplit, Bsub, Hp), jnp.float32),
            jax.ShapeDtypeStruct((nsplit, Bsub, Hp), jnp.float32),
        ),
        scratch_shapes=[
            pltpu.VMEM((CT, Bsub, Gp), jnp.float32),   # hoisted gates (chunk-sized)
            pltpu.VMEM((CT, Bsub, Hp), jnp.float32),   # chunk output staging
            pltpu.VMEM((Bsub, Hp), jnp.float32),       # h carried across chunks
            pltpu.VMEM((Bsub, Hp), jnp.float32),       # c carried across chunks
        ],
        compiler_params=pltpu.CompilerParams(
            dimension_semantics=("parallel", "arbitrary"),
            vmem_limit_bytes=32 * 1024 * 1024),
    )(xin, w_ih, w_hh, bias, h0, c0)
    return out, hN, cN


# ------------------------- wrapper-side param prep -------------------------

def _prep_w(w, perm, H, Hp, Din, Dinp):
    """(Din, 4H) interleaved -> [G|I|F|O], gate groups padded to Hp, rows to Dinp."""
    wp = w[:, perm].reshape(Din, 4, H)
    wp = jnp.pad(wp, ((0, Dinp - Din), (0, 0), (0, Hp - H)))
    return wp.reshape(Dinp, 4 * Hp)


def _prep_b(b, perm, H, Hp):
    bp = b[perm].reshape(4, H)
    bp = jnp.pad(bp, ((0, 0), (0, Hp - H)))
    return bp.reshape(1, 4 * Hp).astype(jnp.float32)


def _prep_state(s, Bp, Hp, nsplit):
    B, H = s.shape
    sp = jnp.pad(s.astype(jnp.float32), ((0, Bp - B), (0, Hp - H)))
    return sp.reshape(nsplit, Bp // nsplit, Hp)


def sym_lstm_forward(params, meta, x, hx=None, *,
                     nsplit=2, target_rows=512, max_unroll=8):
    """x: (T, B, in_size) f32. Returns (output (T,B,H) f32, (h_n, c_n) (L,B,H) f32)."""
    T, B, D0 = x.shape
    L, H = meta["num_layers"], meta["hid_size"]
    n, hid_sizes = meta["n"], meta["hid_sizes"]

    Hp = _round_up(H, 128)                  # per-gate width -> lane multiple
    Dp0 = _round_up(D0, 128)
    Bp = _round_up(max(B, 1), 16 * nsplit)  # bf16-tile-aligned batch shards
    Bsub = Bp // nsplit
    CT = max(1, min(T, target_rows // Bsub))  # time-chunk -> CT*Bsub matmul rows
    NC = -(-T // CT)
    Tp = NC * CT
    unroll = max(1, min(CT, max_unroll))

    if hx is None:
        h0 = jnp.zeros((L, B, H), jnp.float32)
        c0 = jnp.zeros((L, B, H), jnp.float32)
    else:
        h0, c0 = hx

    perm = gate_permutation(n, hid_sizes)

    # Layer-0 input: pad (time, batch, feature) and cast matmul operand to bf16.
    xin = jnp.pad(x.astype(jnp.float32),
                  ((0, Tp - T), (0, Bp - B), (0, Dp0 - D0))).astype(jnp.bfloat16)

    h_out, c_out, out = [], [], None
    for l in range(L):                      # static loop; L is small
        p = params[l]
        Din, Dinp = (D0, Dp0) if l == 0 else (H, Hp)
        w_ih = _prep_w(p["w_ih"], perm, H, Hp, Din, Dinp).astype(jnp.bfloat16)
        w_hh = _prep_w(p["w_hh"], perm, H, Hp, H, Hp).astype(jnp.bfloat16)
        bias = _prep_b(p["b_ih"] + p["b_hh"], perm, H, Hp)
        h0l = _prep_state(h0[l], Bp, Hp, nsplit)
        c0l = _prep_state(c0[l], Bp, Hp, nsplit)

        out, hN, cN = _run_layer(xin, w_ih, w_hh, bias, h0l, c0l,
                                 T=T, CT=CT, NC=NC, nsplit=nsplit,
                                 Bsub=Bsub, Hp=Hp, unroll=unroll)
        xin = out                           # bf16 activations feed the next layer
        h_out.append(hN.reshape(Bp, Hp)[:B, :H])
        c_out.append(cN.reshape(Bp, Hp)[:B, :H])

    output = out[:T, :B, :H].astype(jnp.float32)
    return output, (jnp.stack(h_out), jnp.stack(c_out))


# ------------------------------ SymLSTM params ------------------------------

def init_sym_lstm(key, n, in_sizes, hid_sizes, num_layers):
    in_size = sizes_to_size(n, in_sizes)
    hid_size = sizes_to_size(n, hid_sizes)
    gate_size = 4 * hid_size
    stdv = 1.0 / math.sqrt(hid_size)

    params = []
    for l in range(num_layers):
        d_in = in_size if l == 0 else hid_size
        key, k1, k2, k3, k4 = jax.random.split(key, 5)
        params.append(dict(
            w_ih=jax.random.uniform(k1, (d_in, gate_size), jnp.float32, -stdv, stdv),
            w_hh=jax.random.uniform(k2, (hid_size, gate_size), jnp.float32, -stdv, stdv),
            b_ih=jax.random.uniform(k3, (gate_size,), jnp.float32, -stdv, stdv),
            b_hh=jax.random.uniform(k4, (gate_size,), jnp.float32, -stdv, stdv),
        ))
    meta = dict(n=n, in_sizes=in_sizes, hid_sizes=hid_sizes,
                in_size=in_size, hid_size=hid_size, num_layers=num_layers)
    return params, meta


# --------------------------- pure-JAX reference ---------------------------

def _ref_cell(n, hid_sizes, x, h0, c0, w_ih, w_hh, b_ih, b_hh):
    gates = x @ w_ih + b_ih + h0 @ w_hh + b_hh
    h1 = jnp.zeros_like(h0)
    c1 = jnp.zeros_like(c0)
    st = 0
    for m, s in enumerate(hid_sizes):
        if s:
            for _ in range(num_perms(n, m)):
                blk = gates[..., st * 4: st * 4 + 4 * s]
                g, i, f, o = jnp.split(blk, 4, axis=-1)
                cb = jnp.tanh(g) * jax.nn.sigmoid(i) + c0[..., st:st + s] * jax.nn.sigmoid(f)
                hb = jnp.tanh(cb) * jax.nn.sigmoid(o)
                c1 = c1.at[..., st:st + s].set(cb)
                h1 = h1.at[..., st:st + s].set(hb)
                st += s
    return h1, c1


def ref_sym_lstm(params, meta, x, hx=None):
    T, B, _ = x.shape
    L, H = meta["num_layers"], meta["hid_size"]
    n, hid_sizes = meta["n"], meta["hid_sizes"]
    if hx is None:
        zeros = jnp.zeros((L, B, H), jnp.float32)
        hx = (zeros, zeros)
    h = [hx[0][l] for l in range(L)]
    c = [hx[1][l] for l in range(L)]
    outs = []
    for t in range(T):
        xt = x[t]
        for l in range(L):
            p = params[l]
            h[l], c[l] = _ref_cell(n, hid_sizes, xt, h[l], c[l],
                                   p["w_ih"], p["w_hh"], p["b_ih"], p["b_hh"])
            xt = h[l]
        outs.append(xt)
    return jnp.stack(outs), (jnp.stack(h), jnp.stack(c))


# ----------------------------------- main -----------------------------------

if __name__ == "__main__":
    # small sym config: n=2, in_sizes=(8,12), hid_sizes=(8,12)
    #   -> in_size = hid_size = 8 + 2*12 = 32, gate_size = 128
    n = 2
    in_sizes = (8, 12)
    hid_sizes = (8, 12)
    num_layers = 2
    seq_len, batch = 8, 2

    key = jax.random.PRNGKey(0)
    kp, kx, kh, kc = jax.random.split(key, 4)
    params, meta = init_sym_lstm(kp, n, in_sizes, hid_sizes, num_layers)

    x = jax.random.normal(kx, (seq_len, batch, meta["in_size"]), jnp.float32)
    h0 = 0.1 * jax.random.normal(kh, (num_layers, batch, meta["hid_size"]), jnp.float32)
    c0 = 0.1 * jax.random.normal(kc, (num_layers, batch, meta["hid_size"]), jnp.float32)

    out, (h_n, c_n) = sym_lstm_forward(params, meta, x, hx=(h0, c0))
    out = jax.block_until_ready(out)
    h_n = jax.block_until_ready(h_n)
    c_n = jax.block_until_ready(c_n)

    # correctness check against a pure-JAX f32 reference of the PyTorch semantics.
    # tolerance loosened to bf16 level because the matmul operands are bf16.
    ref_out, (ref_h, ref_c) = ref_sym_lstm(params, meta, x, hx=(h0, c0))
    assert out.shape == ref_out.shape and h_n.shape == ref_h.shape and c_n.shape == ref_c.shape
    assert jnp.allclose(out, ref_out, atol=2e-2, rtol=2e-2), "output mismatch"
    assert jnp.allclose(h_n, ref_h, atol=2e-2, rtol=2e-2), "h_n mismatch"
    assert jnp.allclose(c_n, ref_c, atol=2e-2, rtol=2e-2), "c_n mismatch"

    print("KERNEL_OK")
</pallas_src>

<mosaic_0001>
module attributes {stable_mosaic.version = 11 : i64} {
  func.func @_sym_lstm_layer_kernel(%arg0: i32, %arg1: i32, %arg2: memref<8x16x128xbf16, #tpu.memory_space<vmem>>, %arg3: memref<128x512xbf16, #tpu.memory_space<vmem>>, %arg4: memref<128x512xbf16, #tpu.memory_space<vmem>>, %arg5: memref<1x512xf32, #tpu.memory_space<vmem>>, %arg6: memref<1x16x128xf32, #tpu.memory_space<vmem>>, %arg7: memref<1x16x128xf32, #tpu.memory_space<vmem>>, %arg8: memref<8x16x128xbf16, #tpu.memory_space<vmem>>, %arg9: memref<1x16x128xf32, #tpu.memory_space<vmem>>, %arg10: memref<1x16x128xf32, #tpu.memory_space<vmem>>, %arg11: memref<8x16x512xf32, #tpu.memory_space<vmem>>, %arg12: memref<8x16x128xf32, #tpu.memory_space<vmem>>, %arg13: memref<16x128xf32, #tpu.memory_space<vmem>>, %arg14: memref<16x128xf32, #tpu.memory_space<vmem>>) attributes {dimension_semantics = [#tpu.dimension_semantics<parallel>, #tpu.dimension_semantics<arbitrary>], iteration_bounds = array<i64: 2, 1>, scalar_prefetch = 0 : i64, scratch_operands = 4 : i64, tpu.core_type = #tpu.core_type<tc>, window_params = [{transform_indices = @transform_0, window_bounds = array<i64: 8, 16, 128>}, {pipeline_mode = #tpu.pipeline_mode<synchronous>, transform_indices = @transform_1, window_bounds = array<i64: 128, 512>}, {pipeline_mode = #tpu.pipeline_mode<synchronous>, transform_indices = @transform_2, window_bounds = array<i64: 128, 512>}, {pipeline_mode = #tpu.pipeline_mode<synchronous>, transform_indices = @transform_3, window_bounds = array<i64: 1, 512>}, {transform_indices = @transform_4, window_bounds = array<i64: 1, 16, 128>}, {transform_indices = @transform_5, window_bounds = array<i64: 1, 16, 128>}, {transform_indices = @transform_6, window_bounds = array<i64: 8, 16, 128>}, {transform_indices = @transform_7, window_bounds = array<i64: 1, 16, 128>}, {transform_indices = @transform_8, window_bounds = array<i64: 1, 16, 128>}]} {
    %c0 = arith.constant 0 : index
    %c0_0 = arith.constant 0 : index
    %c0_1 = arith.constant 0 : index
    %0 = vector.load %arg2[%c0, %c0_0, %c0_1] : memref<8x16x128xbf16, #tpu.memory_space<vmem>>, vector<8x16x128xbf16>
    %1 = vector.shape_cast %0 : vector<8x16x128xbf16> to vector<128x128xbf16>
    %c0_2 = arith.constant 0 : index
    %c0_3 = arith.constant 0 : index
    %2 = vector.load %arg3[%c0_2, %c0_3] : memref<128x512xbf16, #tpu.memory_space<vmem>>, vector<128x512xbf16>
    %cst = arith.constant dense<0.000000e+00> : vector<128x512xf32>
    %3 = tpu.matmul %1, %2, %cst {dimension_numbers = #tpu.dot_dimension_numbers<[1], [0], [0], [1], [0, 0, 1, 1], [], []>} : vector<128x128xbf16>, vector<128x512xbf16>, vector<128x512xf32> -> vector<128x512xf32>
    %c0_4 = arith.constant 0 : index
    %c0_5 = arith.constant 0 : index
    %4 = vector.load %arg5[%c0_4, %c0_5] : memref<1x512xf32, #tpu.memory_space<vmem>>, vector<1x512xf32>
    %5 = vector.broadcast %4 : vector<1x512xf32> to vector<128x512xf32>
    %6 = arith.addf %3, %5 : vector<128x512xf32>
    %7 = vector.shape_cast %6 : vector<128x512xf32> to vector<8x16x512xf32>
    %c0_6 = arith.constant 0 : index
    %c0_7 = arith.constant 0 : index
    %c0_8 = arith.constant 0 : index
    %8 = vector.load %arg11[%c0_6, %c0_7, %c0_8] : memref<8x16x512xf32, #tpu.memory_space<vmem>>, vector<8x16x512xf32>
    tpu.vector_store %arg11[%c0_6, %c0_7, %c0_8], %7 {strides = array<i32>} : memref<8x16x512xf32, #tpu.memory_space<vmem>>, vector<8x16x512xf32>,
    %c0_i32 = arith.constant 0 : i32
    %9 = arith.cmpi eq, %arg1, %c0_i32 : i32
    %10 = arith.extui %9 : i1 to i32
    %c0_i32_9 = arith.constant 0 : i32
    %11 = arith.cmpi ne, %10, %c0_i32_9 : i32
    scf.if %11 {
      %c0_77 = arith.constant 0 : index
      %c0_78 = arith.constant 0 : index
      %c0_79 = arith.constant 0 : index
      %231 = vector.load %arg6[%c0_77, %c0_78, %c0_79] : memref<1x16x128xf32, #tpu.memory_space<vmem>>, vector<1x16x128xf32>
      %232 = vector.shape_cast %231 : vector<1x16x128xf32> to vector<16x128xf32>
      %c0_80 = arith.constant 0 : index
      %c0_81 = arith.constant 0 : index
      %233 = vector.load %arg13[%c0_80, %c0_81] : memref<16x128xf32, #tpu.memory_space<vmem>>, vector<16x128xf32>
      tpu.vector_store %arg13[%c0_80, %c0_81], %232 {strides = array<i32>} : memref<16x128xf32, #tpu.memory_space<vmem>>, vector<16x128xf32>,
      %c0_82 = arith.constant 0 : index
      %c0_83 = arith.constant 0 : index
      %c0_84 = arith.constant 0 : index
      %234 = vector.load %arg7[%c0_82, %c0_83, %c0_84] : memref<1x16x128xf32, #tpu.memory_space<vmem>>, vector<1x16x128xf32>
      %235 = vector.shape_cast %234 : vector<1x16x128xf32> to vector<16x128xf32>
      %c0_85 = arith.constant 0 : index
      %c0_86 = arith.constant 0 : index
      %236 = vector.load %arg14[%c0_85, %c0_86] : memref<16x128xf32, #tpu.memory_space<vmem>>, vector<16x128xf32>
      tpu.vector_store %arg14[%c0_85, %c0_86], %235 {strides = array<i32>} : memref<16x128xf32, #tpu.memory_space<vmem>>, vector<16x128xf32>,
    } else {
    }
    %c0_10 = arith.constant 0 : index
    %c0_11 = arith.constant 0 : index
    %12 = vector.load %arg4[%c0_10, %c0_11] : memref<128x512xbf16, #tpu.memory_space<vmem>>, vector<128x512xbf16>
    %c0_12 = arith.constant 0 : index
    %c0_13 = arith.constant 0 : index
    %13 = vector.load %arg13[%c0_12, %c0_13] : memref<16x128xf32, #tpu.memory_space<vmem>>, vector<16x128xf32>
    %c0_14 = arith.constant 0 : index
    %c0_15 = arith.constant 0 : index
    %14 = vector.load %arg14[%c0_14, %c0_15] : memref<16x128xf32, #tpu.memory_space<vmem>>, vector<16x128xf32>
    %c0_i32_16 = arith.constant 0 : i32
    %15 = arith.index_cast %c0_i32_16 : i32 to index
    %c0_17 = arith.constant 0 : index
    %c0_18 = arith.constant 0 : index
    %16 = vector.load %arg11[%15, %c0_17, %c0_18] : memref<8x16x512xf32, #tpu.memory_space<vmem>>, vector<1x16x512xf32>
    %17 = vector.shape_cast %16 : vector<1x16x512xf32> to vector<16x512xf32>
    %18 = arith.truncf %13 : vector<16x128xf32> to vector<16x128xbf16>
    %cst_19 = arith.constant dense<0.000000e+00> : vector<16x512xf32>
    %19 = tpu.matmul %18, %12, %cst_19 {dimension_numbers = #tpu.dot_dimension_numbers<[1], [0], [0], [1], [0, 0, 1, 1], [], []>} : vector<16x128xbf16>, vector<128x512xbf16>, vector<16x512xf32> -> vector<16x512xf32>
    %20 = arith.addf %17, %19 : vector<16x512xf32>
    %21 = vector.extract_strided_slice %20 {offsets = [0, 0], sizes = [16, 128], strides = [1, 1]} : vector<16x512xf32> to vector<16x128xf32>
    %22 = math.tanh %21 : vector<16x128xf32>
    %23 = vector.extract_strided_slice %20 {offsets = [0, 128], sizes = [16, 384], strides = [1, 1]} : vector<16x512xf32> to vector<16x384xf32>
    %24 = arith.negf %23 : vector<16x384xf32>
    %25 = math.exp %24 : vector<16x384xf32>
    %cst_20 = arith.constant 1.000000e+00 : f32
    %26 = vector.broadcast %cst_20 : f32 to vector<16x384xf32>
    %27 = arith.addf %26, %25 : vector<16x384xf32>
    %28 = arith.divf %26, %27 : vector<16x384xf32>
    %29 = vector.extract_strided_slice %28 {offsets = [0, 0], sizes = [16, 128], strides = [1, 1]} : vector<16x384xf32> to vector<16x128xf32>
    %30 = arith.mulf %22, %29 : vector<16x128xf32>
    %31 = vector.extract_strided_slice %28 {offsets = [0, 128], sizes = [16, 128], strides = [1, 1]} : vector<16x384xf32> to vector<16x128xf32>
    %32 = arith.mulf %14, %31 : vector<16x128xf32>
    %33 = arith.addf %30, %32 : vector<16x128xf32>
    %34 = math.tanh %33 : vector<16x128xf32>
    %35 = vector.extract_strided_slice %28 {offsets = [0, 256], sizes = [16, 128], strides = [1, 1]} : vector<16x384xf32> to vector<16x128xf32>
    %36 = arith.mulf %34, %35 : vector<16x128xf32>
    %37 = arith.index_cast %c0_i32_16 : i32 to index
    %c0_21 = arith.constant 0 : index
    %c0_22 = arith.constant 0 : index
    %38 = vector.load %arg12[%37, %c0_21, %c0_22] : memref<8x16x128xf32, #tpu.memory_space<vmem>>, vector<1x16x128xf32>
    %39 = vector.shape_cast %38 : vector<1x16x128xf32> to vector<16x128xf32>
    %40 = vector.shape_cast %36 : vector<16x128xf32> to vector<1x16x128xf32>
    tpu.vector_store %arg12[%37, %c0_21, %c0_22], %40 {strides = array<i32>} : memref<8x16x128xf32, #tpu.memory_space<vmem>>, vector<1x16x128xf32>,
    %c1_i32 = arith.constant 1 : i32
    %41 = arith.index_cast %c1_i32 : i32 to index
    %c0_23 = arith.constant 0 : index
    %c0_24 = arith.constant 0 : index
    %42 = vector.load %arg11[%41, %c0_23, %c0_24] : memref<8x16x512xf32, #tpu.memory_space<vmem>>, vector<1x16x512xf32>
    %43 = vector.shape_cast %42 : vector<1x16x512xf32> to vector<16x512xf32>
    %44 = arith.truncf %36 : vector<16x128xf32> to vector<16x128xbf16>
    %cst_25 = arith.constant dense<0.000000e+00> : vector<16x512xf32>
    %45 = tpu.matmul %44, %12, %cst_25 {dimension_numbers = #tpu.dot_dimension_numbers<[1], [0], [0], [1], [0, 0, 1, 1], [], []>} : vector<16x128xbf16>, vector<128x512xbf16>, vector<16x512xf32> -> vector<16x512xf32>
    %46 = arith.addf %43, %45 : vector<16x512xf32>
    %47 = vector.extract_strided_slice %46 {offsets = [0, 0], sizes = [16, 128], strides = [1, 1]} : vector<16x512xf32> to vector<16x128xf32>
    %48 = math.tanh %47 : vector<16x128xf32>
    %49 = vector.extract_strided_slice %46 {offsets = [0, 128], sizes = [16, 384], strides = [1, 1]} : vector<16x512xf32> to vector<16x384xf32>
    %50 = arith.negf %49 : vector<16x384xf32>
    %51 = math.exp %50 : vector<16x384xf32>
    %cst_26 = arith.constant 1.000000e+00 : f32
    %52 = vector.broadcast %cst_26 : f32 to vector<16x384xf32>
    %53 = arith.addf %52, %51 : vector<16x384xf32>
    %54 = arith.divf %52, %53 : vector<16x384xf32>
    %55 = vector.extract_strided_slice %54 {offsets = [0, 0], sizes = [16, 128], strides = [1, 1]} : vector<16x384xf32> to vector<16x128xf32>
    %56 = arith.mulf %48, %55 : vector<16x128xf32>
    %57 = vector.extract_strided_slice %54 {offsets = [0, 128], sizes = [16, 128], strides = [1, 1]} : vector<16x384xf32> to vector<16x128xf32>
    %58 = arith.mulf %33, %57 : vector<16x128xf32>
    %59 = arith.addf %56, %58 : vector<16x128xf32>
    %60 = math.tanh %59 : vector<16x128xf32>
    %61 = vector.extract_strided_slice %54 {offsets = [0, 256], sizes = [16, 128], strides = [1, 1]} : vector<16x384xf32> to vector<16x128xf32>
    %62 = arith.mulf %60, %61 : vector<16x128xf32>
    %63 = arith.index_cast %c1_i32 : i32 to index
    %c0_27 = arith.constant 0 : index
    %c0_28 = arith.constant 0 : index
    %64 = vector.load %arg12[%63, %c0_27, %c0_28] : memref<8x16x128xf32, #tpu.memory_space<vmem>>, vector<1x16x128xf32>
    %65 = vector.shape_cast %64 : vector<1x16x128xf32> to vector<16x128xf32>
    %66 = vector.shape_cast %62 : vector<16x128xf32> to vector<1x16x128xf32>
    tpu.vector_store %arg12[%63, %c0_27, %c0_28], %66 {strides = array<i32>} : memref<8x16x128xf32, #tpu.memory_space<vmem>>, vector<1x16x128xf32>,
    %c2_i32 = arith.constant 2 : i32
    %67 = arith.index_cast %c2_i32 : i32 to index
    %c0_29 = arith.constant 0 : index
    %c0_30 = arith.constant 0 : index
    %68 = vector.load %arg11[%67, %c0_29, %c0_30] : memref<8x16x512xf32, #tpu.memory_space<vmem>>, vector<1x16x512xf32>
    %69 = vector.shape_cast %68 : vector<1x16x512xf32> to vector<16x512xf32>
    %70 = arith.truncf %62 : vector<16x128xf32> to vector<16x128xbf16>
    %cst_31 = arith.constant dense<0.000000e+00> : vector<16x512xf32>
    %71 = tpu.matmul %70, %12, %cst_31 {dimension_numbers = #tpu.dot_dimension_numbers<[1], [0], [0], [1], [0, 0, 1, 1], [], []>} : vector<16x128xbf16>, vector<128x512xbf16>, vector<16x512xf32> -> vector<16x512xf32>
    %72 = arith.addf %69, %71 : vector<16x512xf32>
    %73 = vector.extract_strided_slice %72 {offsets = [0, 0], sizes = [16, 128], strides = [1, 1]} : vector<16x512xf32> to vector<16x128xf32>
    %74 = math.tanh %73 : vector<16x128xf32>
    %75 = vector.extract_strided_slice %72 {offsets = [0, 128], sizes = [16, 384], strides = [1, 1]} : vector<16x512xf32> to vector<16x384xf32>
    %76 = arith.negf %75 : vector<16x384xf32>
    %77 = math.exp %76 : vector<16x384xf32>
    %cst_32 = arith.constant 1.000000e+00 : f32
    %78 = vector.broadcast %cst_32 : f32 to vector<16x384xf32>
    %79 = arith.addf %78, %77 : vector<16x384xf32>
    %80 = arith.divf %78, %79 : vector<16x384xf32>
    %81 = vector.extract_strided_slice %80 {offsets = [0, 0], sizes = [16, 128], strides = [1, 1]} : vector<16x384xf32> to vector<16x128xf32>
    %82 = arith.mulf %74, %81 : vector<16x128xf32>
    %83 = vector.extract_strided_slice %80 {offsets = [0, 128], sizes = [16, 128], strides = [1, 1]} : vector<16x384xf32> to vector<16x128xf32>
    %84 = arith.mulf %59, %83 : vector<16x128xf32>
    %85 = arith.addf %82, %84 : vector<16x128xf32>
    %86 = math.tanh %85 : vector<16x128xf32>
    %87 = vector.extract_strided_slice %80 {offsets = [0, 256], sizes = [16, 128], strides = [1, 1]} : vector<16x384xf32> to vector<16x128xf32>
    %88 = arith.mulf %86, %87 : vector<16x128xf32>
    %89 = arith.index_cast %c2_i32 : i32 to index
    %c0_33 = arith.constant 0 : index
    %c0_34 = arith.constant 0 : index
    %90 = vector.load %arg12[%89, %c0_33, %c0_34] : memref<8x16x128xf32, #tpu.memory_space<vmem>>, vector<1x16x128xf32>
    %91 = vector.shape_cast %90 : vector<1x16x128xf32> to vector<16x128xf32>
    %92 = vector.shape_cast %88 : vector<16x128xf32> to vector<1x16x128xf32>
    tpu.vector_store %arg12[%89, %c0_33, %c0_34], %92 {strides = array<i32>} : memref<8x16x128xf32, #tpu.memory_space<vmem>>, vector<1x16x128xf32>,
    %c3_i32 = arith.constant 3 : i32
    %93 = arith.index_cast %c3_i32 : i32 to index
    %c0_35 = arith.constant 0 : index
    %c0_36 = arith.constant 0 : index
    %94 = vector.load %arg11[%93, %c0_35, %c0_36] : memref<8x16x512xf32, #tpu.memory_space<vmem>>, vector<1x16x512xf32>
    %95 = vector.shape_cast %94 : vector<1x16x512xf32> to vector<16x512xf32>
    %96 = arith.truncf %88 : vector<16x128xf32> to vector<16x128xbf16>
    %cst_37 = arith.constant dense<0.000000e+00> : vector<16x512xf32>
    %97 = tpu.matmul %96, %12, %cst_37 {dimension_numbers = #tpu.dot_dimension_numbers<[1], [0], [0], [1], [0, 0, 1, 1], [], []>} : vector<16x128xbf16>, vector<128x512xbf16>, vector<16x512xf32> -> vector<16x512xf32>
    %98 = arith.addf %95, %97 : vector<16x512xf32>
    %99 = vector.extract_strided_slice %98 {offsets = [0, 0], sizes = [16, 128], strides = [1, 1]} : vector<16x512xf32> to vector<16x128xf32>
    %100 = math.tanh %99 : vector<16x128xf32>
    %101 = vector.extract_strided_slice %98 {offsets = [0, 128], sizes = [16, 384], strides = [1, 1]} : vector<16x512xf32> to vector<16x384xf32>
    %102 = arith.negf %101 : vector<16x384xf32>
    %103 = math.exp %102 : vector<16x384xf32>
    %cst_38 = arith.constant 1.000000e+00 : f32
    %104 = vector.broadcast %cst_38 : f32 to vector<16x384xf32>
    %105 = arith.addf %104, %103 : vector<16x384xf32>
    %106 = arith.divf %104, %105 : vector<16x384xf32>
    %107 = vector.extract_strided_slice %106 {offsets = [0, 0], sizes = [16, 128], strides = [1, 1]} : vector<16x384xf32> to vector<16x128xf32>
    %108 = arith.mulf %100, %107 : vector<16x128xf32>
    %109 = vector.extract_strided_slice %106 {offsets = [0, 128], sizes = [16, 128], strides = [1, 1]} : vector<16x384xf32> to vector<16x128xf32>
    %110 = arith.mulf %85, %109 : vector<16x128xf32>
    %111 = arith.addf %108, %110 : vector<16x128xf32>
    %112 = math.tanh %111 : vector<16x128xf32>
    %113 = vector.extract_strided_slice %106 {offsets = [0, 256], sizes = [16, 128], strides = [1, 1]} : vector<16x384xf32> to vector<16x128xf32>
    %114 = arith.mulf %112, %113 : vector<16x128xf32>
    %115 = arith.index_cast %c3_i32 : i32 to index
    %c0_39 = arith.constant 0 : index
    %c0_40 = arith.constant 0 : index
    %116 = vector.load %arg12[%115, %c0_39, %c0_40] : memref<8x16x128xf32, #tpu.memory_space<vmem>>, vector<1x16x128xf32>
    %117 = vector.shape_cast %116 : vector<1x16x128xf32> to vector<16x128xf32>
    %118 = vector.shape_cast %114 : vector<16x128xf32> to vector<1x16x128xf32>
    tpu.vector_store %arg12[%115, %c0_39, %c0_40], %118 {strides = array<i32>} : memref<8x16x128xf32, #tpu.memory_space<vmem>>, vector<1x16x128xf32>,
    %c4_i32 = arith.constant 4 : i32
    %119 = arith.index_cast %c4_i32 : i32 to index
    %c0_41 = arith.constant 0 : index
    %c0_42 = arith.constant 0 : index
    %120 = vector.load %arg11[%119, %c0_41, %c0_42] : memref<8x16x512xf32, #tpu.memory_space<vmem>>, vector<1x16x512xf32>
    %121 = vector.shape_cast %120 : vector<1x16x512xf32> to vector<16x512xf32>
    %122 = arith.truncf %114 : vector<16x128xf32> to vector<16x128xbf16>
    %cst_43 = arith.constant dense<0.000000e+00> : vector<16x512xf32>
    %123 = tpu.matmul %122, %12, %cst_43 {dimension_numbers = #tpu.dot_dimension_numbers<[1], [0], [0], [1], [0, 0, 1, 1], [], []>} : vector<16x128xbf16>, vector<128x512xbf16>, vector<16x512xf32> -> vector<16x512xf32>
    %124 = arith.addf %121, %123 : vector<16x512xf32>
    %125 = vector.extract_strided_slice %124 {offsets = [0, 0], sizes = [16, 128], strides = [1, 1]} : vector<16x512xf32> to vector<16x128xf32>
    %126 = math.tanh %125 : vector<16x128xf32>
    %127 = vector.extract_strided_slice %124 {offsets = [0, 128], sizes = [16, 384], strides = [1, 1]} : vector<16x512xf32> to vector<16x384xf32>
    %128 = arith.negf %127 : vector<16x384xf32>
    %129 = math.exp %128 : vector<16x384xf32>
    %cst_44 = arith.constant 1.000000e+00 : f32
    %130 = vector.broadcast %cst_44 : f32 to vector<16x384xf32>
    %131 = arith.addf %130, %129 : vector<16x384xf32>
    %132 = arith.divf %130, %131 : vector<16x384xf32>
    %133 = vector.extract_strided_slice %132 {offsets = [0, 0], sizes = [16, 128], strides = [1, 1]} : vector<16x384xf32> to vector<16x128xf32>
    %134 = arith.mulf %126, %133 : vector<16x128xf32>
    %135 = vector.extract_strided_slice %132 {offsets = [0, 128], sizes = [16, 128], strides = [1, 1]} : vector<16x384xf32> to vector<16x128xf32>
    %136 = arith.mulf %111, %135 : vector<16x128xf32>
    %137 = arith.addf %134, %136 : vector<16x128xf32>
    %138 = math.tanh %137 : vector<16x128xf32>
    %139 = vector.extract_strided_slice %132 {offsets = [0, 256], sizes = [16, 128], strides = [1, 1]} : vector<16x384xf32> to vector<16x128xf32>
    %140 = arith.mulf %138, %139 : vector<16x128xf32>
    %141 = arith.index_cast %c4_i32 : i32 to index
    %c0_45 = arith.constant 0 : index
    %c0_46 = arith.constant 0 : index
    %142 = vector.load %arg12[%141, %c0_45, %c0_46] : memref<8x16x128xf32, #tpu.memory_space<vmem>>, vector<1x16x128xf32>
    %143 = vector.shape_cast %142 : vector<1x16x128xf32> to vector<16x128xf32>
    %144 = vector.shape_cast %140 : vector<16x128xf32> to vector<1x16x128xf32>
    tpu.vector_store %arg12[%141, %c0_45, %c0_46], %144 {strides = array<i32>} : memref<8x16x128xf32, #tpu.memory_space<vmem>>, vector<1x16x128xf32>,
    %c5_i32 = arith.constant 5 : i32
    %145 = arith.index_cast %c5_i32 : i32 to index
    %c0_47 = arith.constant 0 : index
    %c0_48 = arith.constant 0 : index
    %146 = vector.load %arg11[%145, %c0_47, %c0_48] : memref<8x16x512xf32, #tpu.memory_space<vmem>>, vector<1x16x512xf32>
    %147 = vector.shape_cast %146 : vector<1x16x512xf32> to vector<16x512xf32>
    %148 = arith.truncf %140 : vector<16x128xf32> to vector<16x128xbf16>
    %cst_49 = arith.constant dense<0.000000e+00> : vector<16x512xf32>
    %149 = tpu.matmul %148, %12, %cst_49 {dimension_numbers = #tpu.dot_dimension_numbers<[1], [0], [0], [1], [0, 0, 1, 1], [], []>} : vector<16x128xbf16>, vector<128x512xbf16>, vector<16x512xf32> -> vector<16x512xf32>
    %150 = arith.addf %147, %149 : vector<16x512xf32>
    %151 = vector.extract_strided_slice %150 {offsets = [0, 0], sizes = [16, 128], strides = [1, 1]} : vector<16x512xf32> to vector<16x128xf32>
    %152 = math.tanh %151 : vector<16x128xf32>
    %153 = vector.extract_strided_slice %150 {offsets = [0, 128], sizes = [16, 384], strides = [1, 1]} : vector<16x512xf32> to vector<16x384xf32>
    %154 = arith.negf %153 : vector<16x384xf32>
    %155 = math.exp %154 : vector<16x384xf32>
    %cst_50 = arith.constant 1.000000e+00 : f32
    %156 = vector.broadcast %cst_50 : f32 to vector<16x384xf32>
    %157 = arith.addf %156, %155 : vector<16x384xf32>
    %158 = arith.divf %156, %157 : vector<16x384xf32>
    %159 = vector.extract_strided_slice %158 {offsets = [0, 0], sizes = [16, 128], strides = [1, 1]} : vector<16x384xf32> to vector<16x128xf32>
    %160 = arith.mulf %152, %159 : vector<16x128xf32>
    %161 = vector.extract_strided_slice %158 {offsets = [0, 128], sizes = [16, 128], strides = [1, 1]} : vector<16x384xf32> to vector<16x128xf32>
    %162 = arith.mulf %137, %161 : vector<16x128xf32>
    %163 = arith.addf %160, %162 : vector<16x128xf32>
    %164 = math.tanh %163 : vector<16x128xf32>
    %165 = vector.extract_strided_slice %158 {offsets = [0, 256], sizes = [16, 128], strides = [1, 1]} : vector<16x384xf32> to vector<16x128xf32>
    %166 = arith.mulf %164, %165 : vector<16x128xf32>
    %167 = arith.index_cast %c5_i32 : i32 to index
    %c0_51 = arith.constant 0 : index
    %c0_52 = arith.constant 0 : index
    %168 = vector.load %arg12[%167, %c0_51, %c0_52] : memref<8x16x128xf32, #tpu.memory_space<vmem>>, vector<1x16x128xf32>
    %169 = vector.shape_cast %168 : vector<1x16x128xf32> to vector<16x128xf32>
    %170 = vector.shape_cast %166 : vector<16x128xf32> to vector<1x16x128xf32>
    tpu.vector_store %arg12[%167, %c0_51, %c0_52], %170 {strides = array<i32>} : memref<8x16x128xf32, #tpu.memory_space<vmem>>, vector<1x16x128xf32>,
    %c6_i32 = arith.constant 6 : i32
    %171 = arith.index_cast %c6_i32 : i32 to index
    %c0_53 = arith.constant 0 : index
    %c0_54 = arith.constant 0 : index
    %172 = vector.load %arg11[%171, %c0_53, %c0_54] : memref<8x16x512xf32, #tpu.memory_space<vmem>>, vector<1x16x512xf32>
    %173 = vector.shape_cast %172 : vector<1x16x512xf32> to vector<16x512xf32>
    %174 = arith.truncf %166 : vector<16x128xf32> to vector<16x128xbf16>
    %cst_55 = arith.constant dense<0.000000e+00> : vector<16x512xf32>
    %175 = tpu.matmul %174, %12, %cst_55 {dimension_numbers = #tpu.dot_dimension_numbers<[1], [0], [0], [1], [0, 0, 1, 1], [], []>} : vector<16x128xbf16>, vector<128x512xbf16>, vector<16x512xf32> -> vector<16x512xf32>
    %176 = arith.addf %173, %175 : vector<16x512xf32>
    %177 = vector.extract_strided_slice %176 {offsets = [0, 0], sizes = [16, 128], strides = [1, 1]} : vector<16x512xf32> to vector<16x128xf32>
    %178 = math.tanh %177 : vector<16x128xf32>
    %179 = vector.extract_strided_slice %176 {offsets = [0, 128], sizes = [16, 384], strides = [1, 1]} : vector<16x512xf32> to vector<16x384xf32>
    %180 = arith.negf %179 : vector<16x384xf32>
    %181 = math.exp %180 : vector<16x384xf32>
    %cst_56 = arith.constant 1.000000e+00 : f32
    %182 = vector.broadcast %cst_56 : f32 to vector<16x384xf32>
    %183 = arith.addf %182, %181 : vector<16x384xf32>
    %184 = arith.divf %182, %183 : vector<16x384xf32>
    %185 = vector.extract_strided_slice %184 {offsets = [0, 0], sizes = [16, 128], strides = [1, 1]} : vector<16x384xf32> to vector<16x128xf32>
    %186 = arith.mulf %178, %185 : vector<16x128xf32>
    %187 = vector.extract_strided_slice %184 {offsets = [0, 128], sizes = [16, 128], strides = [1, 1]} : vector<16x384xf32> to vector<16x128xf32>
    %188 = arith.mulf %163, %187 : vector<16x128xf32>
    %189 = arith.addf %186, %188 : vector<16x128xf32>
    %190 = math.tanh %189 : vector<16x128xf32>
    %191 = vector.extract_strided_slice %184 {offsets = [0, 256], sizes = [16, 128], strides = [1, 1]} : vector<16x384xf32> to vector<16x128xf32>
    %192 = arith.mulf %190, %191 : vector<16x128xf32>
    %193 = arith.index_cast %c6_i32 : i32 to index
    %c0_57 = arith.constant 0 : index
    %c0_58 = arith.constant 0 : index
    %194 = vector.load %arg12[%193, %c0_57, %c0_58] : memref<8x16x128xf32, #tpu.memory_space<vmem>>, vector<1x16x128xf32>
    %195 = vector.shape_cast %194 : vector<1x16x128xf32> to vector<16x128xf32>
    %196 = vector.shape_cast %192 : vector<16x128xf32> to vector<1x16x128xf32>
    tpu.vector_store %arg12[%193, %c0_57, %c0_58], %196 {strides = array<i32>} : memref<8x16x128xf32, #tpu.memory_space<vmem>>, vector<1x16x128xf32>,
    %c7_i32 = arith.constant 7 : i32
    %197 = arith.index_cast %c7_i32 : i32 to index
    %c0_59 = arith.constant 0 : index
    %c0_60 = arith.constant 0 : index
    %198 = vector.load %arg11[%197, %c0_59, %c0_60] : memref<8x16x512xf32, #tpu.memory_space<vmem>>, vector<1x16x512xf32>
    %199 = vector.shape_cast %198 : vector<1x16x512xf32> to vector<16x512xf32>
    %200 = arith.truncf %192 : vector<16x128xf32> to vector<16x128xbf16>
    %cst_61 = arith.constant dense<0.000000e+00> : vector<16x512xf32>
    %201 = tpu.matmul %200, %12, %cst_61 {dimension_numbers = #tpu.dot_dimension_numbers<[1], [0], [0], [1], [0, 0, 1, 1], [], []>} : vector<16x128xbf16>, vector<128x512xbf16>, vector<16x512xf32> -> vector<16x512xf32>
    %202 = arith.addf %199, %201 : vector<16x512xf32>
    %203 = vector.extract_strided_slice %202 {offsets = [0, 0], sizes = [16, 128], strides = [1, 1]} : vector<16x512xf32> to vector<16x128xf32>
    %204 = math.tanh %203 : vector<16x128xf32>
    %205 = vector.extract_strided_slice %202 {offsets = [0, 128], sizes = [16, 384], strides = [1, 1]} : vector<16x512xf32> to vector<16x384xf32>
    %206 = arith.negf %205 : vector<16x384xf32>
    %207 = math.exp %206 : vector<16x384xf32>
    %cst_62 = arith.constant 1.000000e+00 : f32
    %208 = vector.broadcast %cst_62 : f32 to vector<16x384xf32>
    %209 = arith.addf %208, %207 : vector<16x384xf32>
    %210 = arith.divf %208, %209 : vector<16x384xf32>
    %211 = vector.extract_strided_slice %210 {offsets = [0, 0], sizes = [16, 128], strides = [1, 1]} : vector<16x384xf32> to vector<16x128xf32>
    %212 = arith.mulf %204, %211 : vector<16x128xf32>
    %213 = vector.extract_strided_slice %210 {offsets = [0, 128], sizes = [16, 128], strides = [1, 1]} : vector<16x384xf32> to vector<16x128xf32>
    %214 = arith.mulf %189, %213 : vector<16x128xf32>
    %215 = arith.addf %212, %214 : vector<16x128xf32>
    %216 = math.tanh %215 : vector<16x128xf32>
    %217 = vector.extract_strided_slice %210 {offsets = [0, 256], sizes = [16, 128], strides = [1, 1]} : vector<16x384xf32> to vector<16x128xf32>
    %218 = arith.mulf %216, %217 : vector<16x128xf32>
    %219 = arith.index_cast %c7_i32 : i32 to index
    %c0_63 = arith.constant 0 : index
    %c0_64 = arith.constant 0 : index
    %220 = vector.load %arg12[%219, %c0_63, %c0_64] : memref<8x16x128xf32, #tpu.memory_space<vmem>>, vector<1x16x128xf32>
    %221 = vector.shape_cast %220 : vector<1x16x128xf32> to vector<16x128xf32>
    %222 = vector.shape_cast %218 : vector<16x128xf32> to vector<1x16x128xf32>
    tpu.vector_store %arg12[%219, %c0_63, %c0_64], %222 {strides = array<i32>} : memref<8x16x128xf32, #tpu.memory_space<vmem>>, vector<1x16x128xf32>,
    %c8_i32 = arith.constant 8 : i32
    %c0_65 = arith.constant 0 : index
    %c0_66 = arith.constant 0 : index
    %223 = vector.load %arg13[%c0_65, %c0_66] : memref<16x128xf32, #tpu.memory_space<vmem>>, vector<16x128xf32>
    tpu.vector_store %arg13[%c0_65, %c0_66], %218 {strides = array<i32>} : memref<16x128xf32, #tpu.memory_space<vmem>>, vector<16x128xf32>,
    %c0_67 = arith.constant 0 : index
    %c0_68 = arith.constant 0 : index
    %224 = vector.load %arg14[%c0_67, %c0_68] : memref<16x128xf32, #tpu.memory_space<vmem>>, vector<16x128xf32>
    tpu.vector_store %arg14[%c0_67, %c0_68], %215 {strides = array<i32>} : memref<16x128xf32, #tpu.memory_space<vmem>>, vector<16x128xf32>,
    %c0_69 = arith.constant 0 : index
    %c0_70 = arith.constant 0 : index
    %c0_71 = arith.constant 0 : index
    %225 = vector.load %arg12[%c0_69, %c0_70, %c0_71] : memref<8x16x128xf32, #tpu.memory_space<vmem>>, vector<8x16x128xf32>
    %226 = arith.truncf %225 : vector<8x16x128xf32> to vector<8x16x128xbf16>
    %c0_72 = arith.constant 0 : index
    %c0_73 = arith.constant 0 : index
    %c0_74 = arith.constant 0 : index
    %227 = vector.load %arg8[%c0_72, %c0_73, %c0_74] : memref<8x16x128xbf16, #tpu.memory_space<vmem>>, vector<8x16x128xbf16>
    tpu.vector_store %arg8[%c0_72, %c0_73, %c0_74], %226 {strides = array<i32>} : memref<8x16x128xbf16, #tpu.memory_space<vmem>>, vector<8x16x128xbf16>,
    %c0_i32_75 = arith.constant 0 : i32
    %228 = arith.cmpi eq, %arg1, %c0_i32_75 : i32
    %229 = arith.extui %228 : i1 to i32
    %c0_i32_76 = arith.constant 0 : i32
    %230 = arith.cmpi ne, %229, %c0_i32_76 : i32
    scf.if %230 {
      %c0_77 = arith.constant 0 : index
      %c0_78 = arith.constant 0 : index
      %c0_79 = arith.constant 0 : index
      %231 = vector.load %arg9[%c0_77, %c0_78, %c0_79] : memref<1x16x128xf32, #tpu.memory_space<vmem>>, vector<1x16x128xf32>
      %232 = vector.shape_cast %231 : vector<1x16x128xf32> to vector<16x128xf32>
      %233 = vector.shape_cast %218 : vector<16x128xf32> to vector<1x16x128xf32>
      tpu.vector_store %arg9[%c0_77, %c0_78, %c0_79], %233 {strides = array<i32>} : memref<1x16x128xf32, #tpu.memory_space<vmem>>, vector<1x16x128xf32>,
      %c0_80 = arith.constant 0 : index
      %c0_81 = arith.constant 0 : index
      %c0_82 = arith.constant 0 : index
      %234 = vector.load %arg10[%c0_80, %c0_81, %c0_82] : memref<1x16x128xf32, #tpu.memory_space<vmem>>, vector<1x16x128xf32>
      %235 = vector.shape_cast %234 : vector<1x16x128xf32> to vector<16x128xf32>
      %236 = vector.shape_cast %215 : vector<16x128xf32> to vector<1x16x128xf32>
      tpu.vector_store %arg10[%c0_80, %c0_81, %c0_82], %236 {strides = array<i32>} : memref<1x16x128xf32, #tpu.memory_space<vmem>>, vector<1x16x128xf32>,
    } else {
    }
    return
  }
  func.func @transform_0(%arg0: i32, %arg1: i32) -> (i32, i32, i32) {
    %c0_i32 = arith.constant 0 : i32
    %c0_i32_0 = arith.constant 0 : i32
    return %arg1, %arg0, %c0_i32 : i32, i32, i32
  }
  func.func @transform_1(%arg0: i32, %arg1: i32) -> (i32, i32) {
    %c0_i32 = arith.constant 0 : i32
    %c0_i32_0 = arith.constant 0 : i32
    %c0_i32_1 = arith.constant 0 : i32
    return %c0_i32, %c0_i32_0 : i32, i32
  }
  func.func @transform_2(%arg0: i32, %arg1: i32) -> (i32, i32) {
    %c0_i32 = arith.constant 0 : i32
    %c0_i32_0 = arith.constant 0 : i32
    %c0_i32_1 = arith.constant 0 : i32
    return %c0_i32, %c0_i32_0 : i32, i32
  }
  func.func @transform_3(%arg0: i32, %arg1: i32) -> (i32, i32) {
    %c0_i32 = arith.constant 0 : i32
    %c0_i32_0 = arith.constant 0 : i32
    %c0_i32_1 = arith.constant 0 : i32
    return %c0_i32, %c0_i32_0 : i32, i32
  }
  func.func @transform_4(%arg0: i32, %arg1: i32) -> (i32, i32, i32) {
    %c0_i32 = arith.constant 0 : i32
    %c0_i32_0 = arith.constant 0 : i32
    %c0_i32_1 = arith.constant 0 : i32
    return %arg0, %c0_i32, %c0_i32_0 : i32, i32, i32
  }
  func.func @transform_5(%arg0: i32, %arg1: i32) -> (i32, i32, i32) {
    %c0_i32 = arith.constant 0 : i32
    %c0_i32_0 = arith.constant 0 : i32
    %c0_i32_1 = arith.constant 0 : i32
    return %arg0, %c0_i32, %c0_i32_0 : i32, i32, i32
  }
  func.func @transform_6(%arg0: i32, %arg1: i32) -> (i32, i32, i32) {
    %c0_i32 = arith.constant 0 : i32
    %c0_i32_0 = arith.constant 0 : i32
    return %arg1, %arg0, %c0_i32 : i32, i32, i32
  }
  func.func @transform_7(%arg0: i32, %arg1: i32) -> (i32, i32, i32) {
    %c0_i32 = arith.constant 0 : i32
    %c0_i32_0 = arith.constant 0 : i32
    %c0_i32_1 = arith.constant 0 : i32
    return %arg0, %c0_i32, %c0_i32_0 : i32, i32, i32
  }
  func.func @transform_8(%arg0: i32, %arg1: i32) -> (i32, i32, i32) {
    %c0_i32 = arith.constant 0 : i32
    %c0_i32_0 = arith.constant 0 : i32
    %c0_i32_1 = arith.constant 0 : i32
    return %arg0, %c0_i32, %c0_i32_0 : i32, i32, i32
  }
}

</mosaic_0001>

<llo_original>
// kernel: tpu_custom_call.1
$region0: #{tpu_custom_call.1}
  #allocation0 [shape = 'u32[]', space=smem, size = 0x4, offset = 0x4, fixed_abs, tag = 'smem constant byte address 0x4 - core index']
  #allocation1 [shape = 'u32[72,128]{1,0:T(1,128)}', space=vmem, size = 0x9000, scoped, tag = 'internal scratch']
  #allocation2 [shape = 'f32[8,16,512]{2,1,0:T(8,128)}', space=vmem, size = 0x40000, scoped, tag = 'scratch operand']
  #allocation3 [shape = 'f32[8,16,128]{2,1,0:T(8,128)}', space=vmem, size = 0x10000, scoped, tag = 'scratch operand']
  #allocation4 [shape = 'f32[16,128]{1,0:T(8,128)}', space=vmem, size = 0x2000, scoped, tag = 'scratch operand']
  #allocation5 [shape = 'f32[16,128]{1,0:T(8,128)}', space=vmem, size = 0x2000, scoped, tag = 'scratch operand']
  #allocation20 [shape = 's32[]', space=sflag, size = 0x4, offset = 0, fixed_abs, tag = 'sflag constant byte address 0x0 - dummy sync flag']
  #allocation22 [shape = 's32[]', space=sflag, size = 0x4, offset = 0, fixed_abs, tag = 'sflag constant byte address 0x0 - dummy sync flag']
  %s0 = inlined_call_operand.hbm [shape: bf16[8,32,128], index: 0, kind: input, shape index: {}]
  %s1 = inlined_call_operand.hbm [shape: bf16[128,512], index: 1, kind: input, shape index: {}]
  %s2 = inlined_call_operand.hbm [shape: bf16[128,512], index: 2, kind: input, shape index: {}]
  %s3 = inlined_call_operand.hbm [shape: f32[1,512], index: 3, kind: input, shape index: {}]
  %s4 = inlined_call_operand.hbm [shape: f32[2,16,128], index: 4, kind: input, shape index: {}]
  %s5 = inlined_call_operand.hbm [shape: f32[2,16,128], index: 5, kind: input, shape index: {}]
  %s6 = inlined_call_operand.hbm [shape: bf16[8,32,128], index: 6, kind: output, shape index: {0}]
  %s7 = inlined_call_operand.hbm [shape: f32[2,16,128], index: 7, kind: output, shape index: {1}]
  %s8 = inlined_call_operand.hbm [shape: f32[2,16,128], index: 8, kind: output, shape index: {2}]
  %9 = xla_tuple %s6, %s7, %s8
  %s10 = sld [smem:[#allocation0]]
  $region105: #{tpu_custom_call.1} parent=0
    _
  %s12 = ssub.s32 1, %s10
  %s13 = scalar_select 0, %s12, %s10
  $region1: #{tpu_custom_call.1} parent=0
    #allocation6 [shape = 'u8[65536]{0}', space=vmem, size = 0x10000, scoped, tag = 'input window, operand 0']
    #allocation7 [shape = 's32[2]{0}', space=sflag, size = 0x8, scoped, tag = 'scoped memory for tpu_custom_call.1']
    #allocation8 [shape = 's32[2]{0}', space=sflag, size = 0x8, scoped, tag = 'scoped memory for tpu_custom_call.1']
    #allocation9 [shape = 'u8[131072]{0}', space=vmem, size = 0x20000, scoped, tag = 'input window, operand 1, single buffered']
    #allocation10 [shape = 's32[1]{0}', space=sflag, size = 0x4, scoped, tag = 'scoped memory for tpu_custom_call.1']
    #allocation11 [shape = 'u8[131072]{0}', space=vmem, size = 0x20000, scoped, tag = 'input window, operand 2, single buffered']
    #allocation12 [shape = 'u8[2048]{0}', space=vmem, size = 0x800, scoped, tag = 'input window, operand 3, single buffered']
    #allocation13 [shape = 's32[1]{0}', space=sflag, size = 0x4, scoped, tag = 'scoped memory for tpu_custom_call.1']
    #allocation14 [shape = 'u8[16384]{0}', space=vmem, size = 0x4000, scoped, tag = 'input window, operand 4']
    #allocation15 [shape = 'u8[16384]{0}', space=vmem, size = 0x4000, scoped, tag = 'input window, operand 5']
    #allocation16 [shape = 'u8[65536]{0}', space=vmem, size = 0x10000, scoped, tag = 'output window, operand 0']
    #allocation17 [shape = 'u8[16384]{0}', space=vmem, size = 0x4000, scoped, tag = 'output window, operand 1']
    #allocation18 [shape = 's32[2]{0}', space=sflag, size = 0x8, scoped, tag = 'scoped memory for tpu_custom_call.1']
    #allocation19 [shape = 'u8[16384]{0}', space=vmem, size = 0x4000, scoped, tag = 'output window, operand 2']
    %14 = vsyncpa [#allocation7], 0
    %s15 = scalar_lea.sflag [#allocation7], 1
    %16 = vsyncpa %s15, 0
    %17 = vsyncpa [#allocation10], 0
    %18 = vsyncpa [#allocation13], 0
    %19 = vsyncpa [#allocation8], 0
    %s20 = scalar_lea.sflag [#allocation8], 1
    %21 = vsyncpa %s20, 0
    %22 = vsyncpa [#allocation18], 0
    %s23 = scalar_lea.sflag [#allocation18], 1
    %24 = vsyncpa %s23, 0
    loop: start=0, step=1, limit=4
    $region2: #{tpu_custom_call.1} parent=1 // loop_pre_header
      _
    $region3: #{tpu_custom_call.1} parent=1 // loop_header
      %s26 = sphi 0, %s30
      %p27 = scmp.ge.s32.totalorder %s26, 4
      %s33 = sphi 0, %s45
      %s34 = sphi 0, %s41
      %s35 = sphi 0, %s33
      %s36 = sphi 0, %s34
      %s37 = sphi 0, %s35
      %s38 = sphi 0, %s36
      %s50 = sphi 0, %s52
      %s53 = sphi 0, %s50
      %s54 = sphi 0, %s53
      %s70 = sphi 0, %s54
      %s74 = sphi 0, %s74
      %s76 = sphi 0, %s74
      %s77 = sphi 0, %s76
      %s91 = sphi 0, %s77
      %s95 = sphi 0, %s95
      %s97 = sphi 0, %s95
      %s98 = sphi 0, %s97
      %s112 = sphi 0, %s98
      %s116 = sphi 0, %s116
      %s118 = sphi 0, %s116
      %s119 = sphi 0, %s118
      %s133 = sphi 0, %s119
      %s139 = sphi 0, %s141
      %s142 = sphi 0, %s139
      %s143 = sphi 0, %s142
      %s159 = sphi 0, %s143
      %s165 = sphi 0, %s167
      %s168 = sphi 0, %s165
      %s169 = sphi 0, %s168
      %s185 = sphi 0, %s169
      %s193 = sphi 0, %s195
      %s196 = sphi 0, %s193
      %s197 = sphi 0, %s196
      %s213 = sphi 0, %s197
      %s219 = sphi 0, %s221
      %s222 = sphi 0, %s219
      %s223 = sphi 0, %s222
      %s239 = sphi 0, %s223
      %s245 = sphi 0, %s247
      %s248 = sphi 0, %s245
      %s249 = sphi 0, %s248
      %s265 = sphi 0, %s249
    $region4: #{tpu_custom_call.1} parent=1 // loop_header_branch
      %29 = sbr.rel (%p27) target = $region8
    $region5: #{tpu_custom_call.1} parent=1 // loop_body
      %s31 = ssub.s32 %s26, 1
      %s32 = ssub.s32 %s26, 2
      %s39 = sadd.s32 1, %s34
      %p40 = scmp.ge.s32.totalorder %s39, 1
      %s41 = scalar_select %p40, 0, %s39
      %s42 = sadd.s32 1, %s33
      %s43 = scalar_select %p40, %s42, %s33
      %p44 = scmp.ge.s32.totalorder %s43, 2
      %s45 = scalar_select %p44, 0, %s43
      %s46 = ssub.s32 %s34, %s41
      %s47 = ssub.s32 %s33, %s45
      %s48 = sor.u32 %s46, %s47
      %p49 = scmp.eq.s32.totalorder %s48, 0
      %s51 = sadd.s32 %s50, 1
      %s52 = scalar_select %p49, %s50, %s51
      %p55 = pneg %p49
      %p56 = scmp.eq.s32.totalorder %s26, 1
      %p57 = por %p55, %p56
      %p58 = scmp.ne.s32.totalorder %s50, %s53
      %p59 = scmp.eq.s32.totalorder %s26, 0
      %p60 = por %p58, %p59
      %p61 = scmp.ne.s32.totalorder %s50, %s53
      %p62 = scmp.eq.s32.totalorder %s31, 1
      %p63 = por %p61, %p62
      %p64 = scmp.ne.s32.totalorder %s53, %s54
      %p65 = scmp.eq.s32.totalorder %s31, 0
      %p66 = por %p64, %p65
      %p67 = scmp.ne.s32.totalorder %s53, %s54
      %p68 = scmp.eq.s32.totalorder %s32, 1
      %p69 = por %p67, %p68
      %p71 = scmp.ne.s32.totalorder %s54, %s70
      %p72 = scmp.eq.s32.totalorder %s32, 0
      %p73 = por %p71, %p72
      %s75 = sadd.s32 %s74, 1
      %p78 = scmp.eq.s32.totalorder %s26, 1
      %p79 = scmp.ne.s32.totalorder %s74, %s76
      %p80 = scmp.eq.s32.totalorder %s26, 0
      %p81 = por %p79, %p80
      %p82 = scmp.ne.s32.totalorder %s74, %s76
      %p83 = scmp.eq.s32.totalorder %s31, 1
      %p84 = por %p82, %p83
      %p85 = scmp.ne.s32.totalorder %s76, %s77
      %p86 = scmp.eq.s32.totalorder %s31, 0
      %p87 = por %p85, %p86
      %p88 = scmp.ne.s32.totalorder %s76, %s77
      %p89 = scmp.eq.s32.totalorder %s32, 1
      %p90 = por %p88, %p89
      %p92 = scmp.ne.s32.totalorder %s77, %s91
      %p93 = scmp.eq.s32.totalorder %s32, 0
      %p94 = por %p92, %p93
      %s96 = sadd.s32 %s95, 1
      %p99 = scmp.eq.s32.totalorder %s26, 1
      %p100 = scmp.ne.s32.totalorder %s95, %s97
      %p101 = scmp.eq.s32.totalorder %s26, 0
      %p102 = por %p100, %p101
      %p103 = scmp.ne.s32.totalorder %s95, %s97
      %p104 = scmp.eq.s32.totalorder %s31, 1
      %p105 = por %p103, %p104
      %p106 = scmp.ne.s32.totalorder %s97, %s98
      %p107 = scmp.eq.s32.totalorder %s31, 0
      %p108 = por %p106, %p107
      %p109 = scmp.ne.s32.totalorder %s97, %s98
      %p110 = scmp.eq.s32.totalorder %s32, 1
      %p111 = por %p109, %p110
      %p113 = scmp.ne.s32.totalorder %s98, %s112
      %p114 = scmp.eq.s32.totalorder %s32, 0
      %p115 = por %p113, %p114
      %s117 = sadd.s32 %s116, 1
      %p120 = scmp.eq.s32.totalorder %s26, 1
      %p121 = scmp.ne.s32.totalorder %s116, %s118
      %p122 = scmp.eq.s32.totalorder %s26, 0
      %p123 = por %p121, %p122
      %p124 = scmp.ne.s32.totalorder %s116, %s118
      %p125 = scmp.eq.s32.totalorder %s31, 1
      %p126 = por %p124, %p125
      %p127 = scmp.ne.s32.totalorder %s118, %s119
      %p128 = scmp.eq.s32.totalorder %s31, 0
      %p129 = por %p127, %p128
      %p130 = scmp.ne.s32.totalorder %s118, %s119
      %p131 = scmp.eq.s32.totalorder %s32, 1
      %p132 = por %p130, %p131
      %p134 = scmp.ne.s32.totalorder %s119, %s133
      %p135 = scmp.eq.s32.totalorder %s32, 0
      %p136 = por %p134, %p135
      %s137 = ssub.s32 %s33, %s45
      %p138 = scmp.eq.s32.totalorder %s137, 0
      %s140 = sadd.s32 %s139, 1
      %s141 = scalar_select %p138, %s139, %s140
      %p144 = pneg %p138
      %p145 = scmp.eq.s32.totalorder %s26, 1
      %p146 = por %p144, %p145
      %p147 = scmp.ne.s32.totalorder %s139, %s142
      %p148 = scmp.eq.s32.totalorder %s26, 0
      %p149 = por %p147, %p148
      %p150 = scmp.ne.s32.totalorder %s139, %s142
      %p151 = scmp.eq.s32.totalorder %s31, 1
      %p152 = por %p150, %p151
      %p153 = scmp.ne.s32.totalorder %s142, %s143
      %p154 = scmp.eq.s32.totalorder %s31, 0
      %p155 = por %p153, %p154
      %p156 = scmp.ne.s32.totalorder %s142, %s143
      %p157 = scmp.eq.s32.totalorder %s32, 1
      %p158 = por %p156, %p157
      %p160 = scmp.ne.s32.totalorder %s143, %s159
      %p161 = scmp.eq.s32.totalorder %s32, 0
      %p162 = por %p160, %p161
      %s163 = ssub.s32 %s33, %s45
      %p164 = scmp.eq.s32.totalorder %s163, 0
      %s166 = sadd.s32 %s165, 1
      %s167 = scalar_select %p164, %s165, %s166
      %p170 = pneg %p164
      %p171 = scmp.eq.s32.totalorder %s26, 1
      %p172 = por %p170, %p171
      %p173 = scmp.ne.s32.totalorder %s165, %s168
      %p174 = scmp.eq.s32.totalorder %s26, 0
      %p175 = por %p173, %p174
      %p176 = scmp.ne.s32.totalorder %s165, %s168
      %p177 = scmp.eq.s32.totalorder %s31, 1
      %p178 = por %p176, %p177
      %p179 = scmp.ne.s32.totalorder %s168, %s169
      %p180 = scmp.eq.s32.totalorder %s31, 0
      %p181 = por %p179, %p180
      %p182 = scmp.ne.s32.totalorder %s168, %s169
      %p183 = scmp.eq.s32.totalorder %s32, 1
      %p184 = por %p182, %p183
      %p186 = scmp.ne.s32.totalorder %s169, %s185
      %p187 = scmp.eq.s32.totalorder %s32, 0
      %p188 = por %p186, %p187
      %s189 = ssub.s32 %s34, %s41
      %s190 = ssub.s32 %s33, %s45
      %s191 = sor.u32 %s189, %s190
      %p192 = scmp.eq.s32.totalorder %s191, 0
      %s194 = sadd.s32 %s193, 1
      %s195 = scalar_select %p192, %s193, %s194
      %p198 = pneg %p192
      %p199 = scmp.eq.s32.totalorder %s26, 1
      %p200 = por %p198, %p199
      %p201 = scmp.ne.s32.totalorder %s193, %s196
      %p202 = scmp.eq.s32.totalorder %s26, 0
      %p203 = por %p201, %p202
      %p204 = scmp.ne.s32.totalorder %s193, %s196
      %p205 = scmp.eq.s32.totalorder %s31, 1
      %p206 = por %p204, %p205
      %p207 = scmp.ne.s32.totalorder %s196, %s197
      %p208 = scmp.eq.s32.totalorder %s31, 0
      %p209 = por %p207, %p208
      %p210 = scmp.ne.s32.totalorder %s196, %s197
      %p211 = scmp.eq.s32.totalorder %s32, 1
      %p212 = por %p210, %p211
      %p214 = scmp.ne.s32.totalorder %s197, %s213
      %p215 = scmp.eq.s32.totalorder %s32, 0
      %p216 = por %p214, %p215
      %s217 = ssub.s32 %s33, %s45
      %p218 = scmp.eq.s32.totalorder %s217, 0
      %s220 = sadd.s32 %s219, 1
      %s221 = scalar_select %p218, %s219, %s220
      %p224 = pneg %p218
      %p225 = scmp.eq.s32.totalorder %s26, 1
      %p226 = por %p224, %p225
      %p227 = scmp.ne.s32.totalorder %s219, %s222
      %p228 = scmp.eq.s32.totalorder %s26, 0
      %p229 = por %p227, %p228
      %p230 = scmp.ne.s32.totalorder %s219, %s222
      %p231 = scmp.eq.s32.totalorder %s31, 1
      %p232 = por %p230, %p231
      %p233 = scmp.ne.s32.totalorder %s222, %s223
      %p234 = scmp.eq.s32.totalorder %s31, 0
      %p235 = por %p233, %p234
      %p236 = scmp.ne.s32.totalorder %s222, %s223
      %p237 = scmp.eq.s32.totalorder %s32, 1
      %p238 = por %p236, %p237
      %p240 = scmp.ne.s32.totalorder %s223, %s239
      %p241 = scmp.eq.s32.totalorder %s32, 0
      %p242 = por %p240, %p241
      %s243 = ssub.s32 %s33, %s45
      %p244 = scmp.eq.s32.totalorder %s243, 0
      %s246 = sadd.s32 %s245, 1
      %s247 = scalar_select %p244, %s245, %s246
      %p250 = pneg %p244
      %p251 = scmp.eq.s32.totalorder %s26, 1
      %p252 = por %p250, %p251
      %p253 = scmp.ne.s32.totalorder %s245, %s248
      %p254 = scmp.eq.s32.totalorder %s26, 0
      %p255 = por %p253, %p254
      %p256 = scmp.ne.s32.totalorder %s245, %s248
      %p257 = scmp.eq.s32.totalorder %s31, 1
      %p258 = por %p256, %p257
      %p259 = scmp.ne.s32.totalorder %s248, %s249
      %p260 = scmp.eq.s32.totalorder %s31, 0
      %p261 = por %p259, %p260
      %p262 = scmp.ne.s32.totalorder %s248, %s249
      %p263 = scmp.eq.s32.totalorder %s32, 1
      %p264 = por %p262, %p263
      %p266 = scmp.ne.s32.totalorder %s249, %s265
      %p267 = scmp.eq.s32.totalorder %s32, 0
      %p268 = por %p266, %p267
      %p269 = scmp.le.s32.totalorder 1, %s26
      %p270 = scmp.lt.s32.totalorder %s26, 3
      %p271 = pnand %p269, %p270
      %p272 = pneg %p271
      // Predicated region
      $region9: #{tpu_custom_call.1} parent=5 // pred_check
        _
      $region10: #{tpu_custom_call.1} parent=5 // pred_check_branch
        %274 = sbr.rel (%p271) target = $region12
      $region11: #{tpu_custom_call.1} parent=5 // pred_region
        %s275 = ssub.s32 %s26, 1
        // Predicated region
        $region13: #{tpu_custom_call.1} parent=11 // pred_check
          %p276 = pneg %p87
        $region14: #{tpu_custom_call.1} parent=11 // pred_check_branch
          %278 = sbr.rel (%p276) target = $region16
        $region15: #{tpu_custom_call.1} parent=11 // pred_region
          %280 = vsyncadd [#allocation10], 0
          %s281 = sshll.u32 %s1, 4
          %s282 = int_to_ptr.hbm [resolvable:$true] %s281
          %s283 = sshll.u32 [#allocation9], 4
          %s284 = int_to_ptr.vmem [resolvable:$true] %s283
          %289 = dma.hbm_to_vmem [thread:$0]  %s282, 4096, %s284, [#allocation10], 256, 256, 16
        $region16: #{tpu_custom_call.1} parent=11 // pred_fallthru
          _
        // Predicated region
        $region17: #{tpu_custom_call.1} parent=11 // pred_check
          %p290 = pneg %p108
        $region18: #{tpu_custom_call.1} parent=11 // pred_check_branch
          %292 = sbr.rel (%p290) target = $region20
        $region19: #{tpu_custom_call.1} parent=11 // pred_region
          %294 = vsyncadd [#allocation10], 0
          %s295 = sshll.u32 %s2, 4
          %s296 = int_to_ptr.hbm [resolvable:$true] %s295
          %s297 = sshll.u32 [#allocation11], 4
          %s298 = int_to_ptr.vmem [resolvable:$true] %s297
          %303 = dma.hbm_to_vmem [thread:$0]  %s296, 4096, %s298, [#allocation10], 256, 256, 16
        $region20: #{tpu_custom_call.1} parent=11 // pred_fallthru
          _
        // Predicated region
        $region21: #{tpu_custom_call.1} parent=11 // pred_check
          %p304 = pneg %p129
        $region22: #{tpu_custom_call.1} parent=11 // pred_check_branch
          %306 = sbr.rel (%p304) target = $region24
        $region23: #{tpu_custom_call.1} parent=11 // pred_region
          %308 = vsyncadd [#allocation13], 0
          %s310 = sshll.u32 %s3, 4
          %s311 = int_to_ptr.hbm [resolvable:$true] %s310
          %s312 = sshll.u32 [#allocation12], 4
          %s313 = int_to_ptr.vmem [resolvable:$true] %s312
          %315 = dma.hbm_to_vmem [thread:$0]  %s311, 64, %s313, [#allocation13]
        $region24: #{tpu_custom_call.1} parent=11 // pred_fallthru
          _
      $region12: #{tpu_custom_call.1} parent=5 // pred_fallthru
        _
      %p316 = scmp.lt.s32.totalorder %s26, 2
      // Predicated region
      $region25: #{tpu_custom_call.1} parent=5 // pred_check
        %p317 = pneg %p316
      $region26: #{tpu_custom_call.1} parent=5 // pred_check_branch
        %319 = sbr.rel (%p317) target = $region28
      $region27: #{tpu_custom_call.1} parent=5 // pred_region
        // Predicated region
        $region29: #{tpu_custom_call.1} parent=27 // pred_check
          %p320 = pneg %p60
        $region30: #{tpu_custom_call.1} parent=27 // pred_check_branch
          %322 = sbr.rel (%p320) target = $region32
        $region31: #{tpu_custom_call.1} parent=27 // pred_region
          #allocation21 [shape = 'u32[6]{0}', space=smem, size = 0x18, scoped, tag = 'DMA stride descriptor']
          %s323 = sand.u32 %s26, 1
          %s324 = scalar_lea.sflag [#allocation7], %s323
          %s325 = sand.u32 %s50, 1
          %s326 = smul.addr %s325, 64
          %s327 = scalar_lea.vmem [#allocation6], %s326
          %s328 = smul.u32 8, %s34
          %s329 = smul.u32 2, %s33
          %331 = vsyncadd %s324, 0
          %s332 = smul.addr %s328, 4
          %s333 = sadd.s32 %s329, %s332
          %s334 = smul.addr %s333, 4
          %s335 = scalar_lea.hbm %s0, %s334
          %s337 = sshll.u32 1, 14
          %s338 = sxor.u32 4294967295, %s337
          %s340 = sld [smem:[#allocation0]]
          %s341 = sadd.s32 2, %s340
          %s343 = sshll.u32 7, 26
          %s344 = sxor.u32 4294967295, %s343
          %s345 = sand.u32 0, %s344
          %s346 = sshll.u32 %s341, 26
          %s347 = sor.u32 %s345, %s346
          %s348 = sshll.u32 %s335, 4
          %s349 = int_to_ptr.hbm [resolvable:$true] %s348
          %s350 = sshll.u32 %s327, 4
          %s351 = int_to_ptr.vmem [resolvable:$true] %s350
          %357 = sst [smem:[#allocation21]] 256
          %s358 = scalar_lea.smem [#allocation21], 1
          %359 = sst [smem:[%s358]] 128
          %s360 = scalar_lea.smem [#allocation21], 2
          %361 = sst [smem:[%s360]] 2
          %s362 = scalar_lea.smem [#allocation21], 3
          %363 = sst [smem:[%s362]] 64
          %s364 = scalar_lea.smem [#allocation21], 4
          %365 = sst [smem:[%s364]] 64
          %s366 = scalar_lea.smem [#allocation21], 5
          %367 = sst [smem:[%s366]] 4
          %369 = dma.general %s349, 1024, %s351, %s324, [#allocation20], [#allocation21], %s347, 0
        $region32: #{tpu_custom_call.1} parent=27 // pred_fallthru
          _
        // Predicated region
        $region33: #{tpu_custom_call.1} parent=27 // pred_check
          %p370 = pneg %p149
        $region34: #{tpu_custom_call.1} parent=27 // pred_check_branch
          %372 = sbr.rel (%p370) target = $region36
        $region35: #{tpu_custom_call.1} parent=27 // pred_region
          %s373 = sand.u32 %s26, 1
          %s374 = scalar_lea.sflag [#allocation7], %s373
          %s375 = sand.u32 %s139, 1
          %s376 = smul.addr %s375, 16
          %s377 = scalar_lea.vmem [#allocation14], %s376
          %379 = vsyncadd %s374, 0
          %s380 = smul.addr %s33, 2
          %s381 = smul.addr %s380, 8
          %s382 = scalar_lea.hbm %s4, %s381
          %s383 = sshll.u32 %s382, 4
          %s384 = int_to_ptr.hbm [resolvable:$true] %s383
          %s385 = sshll.u32 %s377, 4
          %s386 = int_to_ptr.vmem [resolvable:$true] %s385
          %391 = dma.hbm_to_vmem [thread:$0]  %s384, 256, %s386, %s374, 128, 128, 8
        $region36: #{tpu_custom_call.1} parent=27 // pred_fallthru
          _
        // Predicated region
        $region37: #{tpu_custom_call.1} parent=27 // pred_check
          %p392 = pneg %p175
        $region38: #{tpu_custom_call.1} parent=27 // pred_check_branch
          %394 = sbr.rel (%p392) target = $region40
        $region39: #{tpu_custom_call.1} parent=27 // pred_region
          %s395 = sand.u32 %s26, 1
          %s396 = scalar_lea.sflag [#allocation7], %s395
          %s397 = sand.u32 %s165, 1
          %s398 = smul.addr %s397, 16
          %s399 = scalar_lea.vmem [#allocation15], %s398
          %401 = vsyncadd %s396, 0
          %s402 = smul.addr %s33, 2
          %s403 = smul.addr %s402, 8
          %s404 = scalar_lea.hbm %s5, %s403
          %s405 = sshll.u32 %s404, 4
          %s406 = int_to_ptr.hbm [resolvable:$true] %s405
          %s407 = sshll.u32 %s399, 4
          %s408 = int_to_ptr.vmem [resolvable:$true] %s407
          %413 = dma.hbm_to_vmem [thread:$0]  %s406, 256, %s408, %s396, 128, 128, 8
        $region40: #{tpu_custom_call.1} parent=27 // pred_fallthru
          _
      $region28: #{tpu_custom_call.1} parent=5 // pred_fallthru
        _
      %p414 = scmp.le.s32.totalorder 1, %s26
      %p415 = scmp.lt.s32.totalorder %s26, 3
      %p416 = pnand %p414, %p415
      %p417 = pneg %p416
      // Predicated region
      $region41: #{tpu_custom_call.1} parent=5 // pred_check
        _
      $region42: #{tpu_custom_call.1} parent=5 // pred_check_branch
        %419 = sbr.rel (%p416) target = $region44
      $region43: #{tpu_custom_call.1} parent=5 // pred_region
        %s420 = ssub.s32 %s26, 1
        %s421 = sand.u32 %s31, 1
        %s422 = scalar_lea.sflag [#allocation7], %s421
        %s423 = sand.u32 %s53, 1
        %s424 = smul.addr %s423, 64
        %s425 = scalar_lea.vmem [#allocation6], %s424
        // Predicated region
        $region45: #{tpu_custom_call.1} parent=43 // pred_check
          %p426 = pneg %p66
        $region46: #{tpu_custom_call.1} parent=43 // pred_check_branch
          %428 = sbr.rel (%p426) target = $region48
        $region47: #{tpu_custom_call.1} parent=43 // pred_region
          %430 = dma.done %s422, 1024
        $region48: #{tpu_custom_call.1} parent=43 // pred_fallthru
          _
        // Predicated region
        $region49: #{tpu_custom_call.1} parent=43 // pred_check
          %p431 = pneg %p87
        $region50: #{tpu_custom_call.1} parent=43 // pred_check_branch
          %433 = sbr.rel (%p431) target = $region52
        $region51: #{tpu_custom_call.1} parent=43 // pred_region
          %435 = dma.done [#allocation10], 4096
        $region52: #{tpu_custom_call.1} parent=43 // pred_fallthru
          _
        // Predicated region
        $region53: #{tpu_custom_call.1} parent=43 // pred_check
          %p436 = pneg %p108
        $region54: #{tpu_custom_call.1} parent=43 // pred_check_branch
          %438 = sbr.rel (%p436) target = $region56
        $region55: #{tpu_custom_call.1} parent=43 // pred_region
          %440 = dma.done [#allocation10], 4096
        $region56: #{tpu_custom_call.1} parent=43 // pred_fallthru
          _
        // Predicated region
        $region57: #{tpu_custom_call.1} parent=43 // pred_check
          %p441 = pneg %p129
        $region58: #{tpu_custom_call.1} parent=43 // pred_check_branch
          %443 = sbr.rel (%p441) target = $region60
        $region59: #{tpu_custom_call.1} parent=43 // pred_region
          %445 = dma.done [#allocation13], 64
        $region60: #{tpu_custom_call.1} parent=43 // pred_fallthru
          _
        %s446 = sand.u32 %s31, 1
        %s447 = scalar_lea.sflag [#allocation7], %s446
        %s448 = sand.u32 %s142, 1
        %s449 = smul.addr %s448, 16
        %s450 = scalar_lea.vmem [#allocation14], %s449
        // Predicated region
        $region61: #{tpu_custom_call.1} parent=43 // pred_check
          %p451 = pneg %p155
        $region62: #{tpu_custom_call.1} parent=43 // pred_check_branch
          %453 = sbr.rel (%p451) target = $region64
        $region63: #{tpu_custom_call.1} parent=43 // pred_region
          %455 = dma.done %s447, 256
        $region64: #{tpu_custom_call.1} parent=43 // pred_fallthru
          _
        %s456 = sand.u32 %s31, 1
        %s457 = scalar_lea.sflag [#allocation7], %s456
        %s458 = sand.u32 %s168, 1
        %s459 = smul.addr %s458, 16
        %s460 = scalar_lea.vmem [#allocation15], %s459
        // Predicated region
        $region65: #{tpu_custom_call.1} parent=43 // pred_check
          %p461 = pneg %p181
        $region66: #{tpu_custom_call.1} parent=43 // pred_check_branch
          %463 = sbr.rel (%p461) target = $region68
        $region67: #{tpu_custom_call.1} parent=43 // pred_region
          %465 = dma.done %s457, 256
        $region68: #{tpu_custom_call.1} parent=43 // pred_fallthru
          _
        %s466 = sand.u32 %s31, 1
        %s467 = scalar_lea.sflag [#allocation7], %s466
        %s468 = sand.u32 %s53, 1
        %s469 = smul.addr %s468, 64
        %s470 = scalar_lea.vmem [#allocation6], %s469
        %p471 = pneg %p66
        %p472 = pneg %p63
        %p473 = pneg %p87
        %p474 = pneg %p84
        %p475 = pneg %p108
        %p476 = pneg %p105
        %p477 = pneg %p129
        %p478 = pneg %p126
        %s479 = sand.u32 %s31, 1
        %s480 = scalar_lea.sflag [#allocation7], %s479
        %s481 = sand.u32 %s142, 1
        %s482 = smul.addr %s481, 16
        %s483 = scalar_lea.vmem [#allocation14], %s482
        %p484 = pneg %p155
        %p485 = pneg %p152
        %s486 = sand.u32 %s31, 1
        %s487 = scalar_lea.sflag [#allocation7], %s486
        %s488 = sand.u32 %s168, 1
        %s489 = smul.addr %s488, 16
        %s490 = scalar_lea.vmem [#allocation15], %s489
        %p491 = pneg %p181
        %p492 = pneg %p178
        %p493 = pneg %p209
        %p494 = pneg %p206
        %s495 = sand.u32 %s196, 1
        %s496 = scalar_lea.sflag [#allocation8], %s495
        %s497 = sand.u32 %s196, 1
        %s498 = smul.addr %s497, 64
        %s499 = scalar_lea.vmem [#allocation16], %s498
        %p500 = pneg %p235
        %p501 = pneg %p232
        %s502 = sand.u32 %s31, 1
        %s503 = scalar_lea.sflag [#allocation18], %s502
        %s504 = sand.u32 %s222, 1
        %s505 = smul.addr %s504, 16
        %s506 = scalar_lea.vmem [#allocation17], %s505
        %p507 = pneg %p261
        %p508 = pneg %p258
        %s509 = sand.u32 %s31, 1
        %s510 = scalar_lea.sflag [#allocation18], %s509
        %s511 = sand.u32 %s248, 1
        %s512 = smul.addr %s511, 16
        %s513 = scalar_lea.vmem [#allocation19], %s512
        %s514 = smul.u32 8, %s36
        %s515 = smul.u32 2, %s35
        %s516 = smul.u32 8, %s36
        %s517 = smul.u32 2, %s35
        %v518 = vld [vmem:[%s425] sm:$0xf]
        %v519 = vld [vmem:[%s425 + $0x4] sm:$0xf]
        %v520 = vld [vmem:[%s425 + $0x8] sm:$0xf]
        %v521 = vld [vmem:[%s425 + $0xc] sm:$0xf]
        %v522 = vld [vmem:[%s425 + $0x10] sm:$0xf]
        %v523 = vld [vmem:[%s425 + $0x14] sm:$0xf]
        %v524 = vld [vmem:[%s425 + $0x18] sm:$0xf]
        %v525 = vld [vmem:[%s425 + $0x1c] sm:$0xf]
        %v526 = vld [vmem:[%s425 + $0x20] sm:$0xf]
        %v527 = vld [vmem:[%s425 + $0x24] sm:$0xf]
        %v528 = vld [vmem:[%s425 + $0x28] sm:$0xf]
        %v529 = vld [vmem:[%s425 + $0x2c] sm:$0xf]
        %v530 = vld [vmem:[%s425 + $0x30] sm:$0xf]
        %v531 = vld [vmem:[%s425 + $0x34] sm:$0xf]
        %v532 = vld [vmem:[%s425 + $0x38] sm:$0xf]
        %v533 = vld [vmem:[%s425 + $0x3c] sm:$0xf]
        %v534 = vld [vmem:[#allocation9] sm:$0xff]
        %v535 = vld [vmem:[#allocation9 + $0x8] sm:$0xff]
        %v536 = vld [vmem:[#allocation9 + $0x10] sm:$0xff]
        %v537 = vld [vmem:[#allocation9 + $0x18] sm:$0xff]
        %v538 = vld [vmem:[#allocation9 + $0x20] sm:$0xff]
        %v539 = vld [vmem:[#allocation9 + $0x28] sm:$0xff]
        %v540 = vld [vmem:[#allocation9 + $0x30] sm:$0xff]
        %v541 = vld [vmem:[#allocation9 + $0x38] sm:$0xff]
        %v542 = vld [vmem:[#allocation9 + $0x40] sm:$0xff]
        %v543 = vld [vmem:[#allocation9 + $0x48] sm:$0xff]
        %v544 = vld [vmem:[#allocation9 + $0x50] sm:$0xff]
        %v545 = vld [vmem:[#allocation9 + $0x58] sm:$0xff]
        %v546 = vld [vmem:[#allocation9 + $0x60] sm:$0xff]
        %v547 = vld [vmem:[#allocation9 + $0x68] sm:$0xff]
        %v548 = vld [vmem:[#allocation9 + $0x70] sm:$0xff]
        %v549 = vld [vmem:[#allocation9 + $0x78] sm:$0xff]
        %v550 = vld [vmem:[#allocation9 + $0x80] sm:$0xff]
        %v551 = vld [vmem:[#allocation9 + $0x88] sm:$0xff]
        %v552 = vld [vmem:[#allocation9 + $0x90] sm:$0xff]
        %v553 = vld [vmem:[#allocation9 + $0x98] sm:$0xff]
        %v554 = vld [vmem:[#allocation9 + $0xa0] sm:$0xff]
        %v555 = vld [vmem:[#allocation9 + $0xa8] sm:$0xff]
        %v556 = vld [vmem:[#allocation9 + $0xb0] sm:$0xff]
        %v557 = vld [vmem:[#allocation9 + $0xb8] sm:$0xff]
        %v558 = vld [vmem:[#allocation9 + $0xc0] sm:$0xff]
        %v559 = vld [vmem:[#allocation9 + $0xc8] sm:$0xff]
        %v560 = vld [vmem:[#allocation9 + $0xd0] sm:$0xff]
        %v561 = vld [vmem:[#allocation9 + $0xd8] sm:$0xff]
        %v562 = vld [vmem:[#allocation9 + $0xe0] sm:$0xff]
        %v563 = vld [vmem:[#allocation9 + $0xe8] sm:$0xff]
        %v564 = vld [vmem:[#allocation9 + $0xf0] sm:$0xff]
        %v565 = vld [vmem:[#allocation9 + $0xf8] sm:$0xff]
        %v566 = vld [vmem:[#allocation12] sm:$0xf]
        %v568 = vperm.slane %v566, 0
        %v569 = vperm.slane %v566, 1
        %v570 = vperm.slane %v566, 2
        %v571 = vperm.slane %v566, 3
        %v592 = vunpack.c.l.b16 %v518
        %v593 = vunpack.c.l.b16 %v519
        %v594 = vunpack.c.l.b16 %v520
        %v595 = vunpack.c.l.b16 %v521
        %v596 = vunpack.c.l.b16 %v522
        %v597 = vunpack.c.l.b16 %v523
        %v598 = vunpack.c.l.b16 %v524
        %v599 = vunpack.c.l.b16 %v525
        %v600 = vunpack.c.l.b16 %v526
        %v601 = vunpack.c.l.b16 %v527
        %v602 = vunpack.c.l.b16 %v528
        %v603 = vunpack.c.l.b16 %v529
        %v604 = vunpack.c.l.b16 %v530
        %v605 = vunpack.c.l.b16 %v531
        %v606 = vunpack.c.l.b16 %v532
        %v607 = vunpack.c.l.b16 %v533
        %v608 = vpack.c.b16 %v593, %v592
        %v609 = vpack.c.b16 %v595, %v594
        %v610 = vpack.c.b16 %v597, %v596
        %v611 = vpack.c.b16 %v599, %v598
        %v612 = vpack.c.b16 %v601, %v600
        %v613 = vpack.c.b16 %v603, %v602
        %v614 = vpack.c.b16 %v605, %v604
        %v615 = vpack.c.b16 %v607, %v606
        %v656 = vunpack.c.l.b16 %v534
        %v657 = vunpack.c.h.b16 %v534
        %v658 = vunpack.c.l.b16 %v535
        %v659 = vunpack.c.h.b16 %v535
        %v660 = vunpack.c.l.b16 %v536
        %v661 = vunpack.c.h.b16 %v536
        %v662 = vunpack.c.l.b16 %v537
        %v663 = vunpack.c.h.b16 %v537
        %v664 = vunpack.c.l.b16 %v538
        %v665 = vunpack.c.h.b16 %v538
        %v666 = vunpack.c.l.b16 %v539
        %v667 = vunpack.c.h.b16 %v539
        %v668 = vunpack.c.l.b16 %v540
        %v669 = vunpack.c.h.b16 %v540
        %v670 = vunpack.c.l.b16 %v541
        %v671 = vunpack.c.h.b16 %v541
        %v672 = vunpack.c.l.b16 %v542
        %v673 = vunpack.c.h.b16 %v542
        %v674 = vunpack.c.l.b16 %v543
        %v675 = vunpack.c.h.b16 %v543
        %v676 = vunpack.c.l.b16 %v544
        %v677 = vunpack.c.h.b16 %v544
        %v678 = vunpack.c.l.b16 %v545
        %v679 = vunpack.c.h.b16 %v545
        %v680 = vunpack.c.l.b16 %v546
        %v681 = vunpack.c.h.b16 %v546
        %v682 = vunpack.c.l.b16 %v547
        %v683 = vunpack.c.h.b16 %v547
        %v684 = vunpack.c.l.b16 %v548
        %v685 = vunpack.c.h.b16 %v548
        %v686 = vunpack.c.l.b16 %v549
        %v687 = vunpack.c.h.b16 %v549
        %v688 = vunpack.c.l.b16 %v550
        %v689 = vunpack.c.h.b16 %v550
        %v690 = vunpack.c.l.b16 %v551
        %v691 = vunpack.c.h.b16 %v551
        %v692 = vunpack.c.l.b16 %v552
        %v693 = vunpack.c.h.b16 %v552
        %v694 = vunpack.c.l.b16 %v553
        %v695 = vunpack.c.h.b16 %v553
        %v696 = vunpack.c.l.b16 %v554
        %v697 = vunpack.c.h.b16 %v554
        %v698 = vunpack.c.l.b16 %v555
        %v699 = vunpack.c.h.b16 %v555
        %v700 = vunpack.c.l.b16 %v556
        %v701 = vunpack.c.h.b16 %v556
        %v702 = vunpack.c.l.b16 %v557
        %v703 = vunpack.c.h.b16 %v557
        %v704 = vunpack.c.l.b16 %v558
        %v705 = vunpack.c.h.b16 %v558
        %v706 = vunpack.c.l.b16 %v559
        %v707 = vunpack.c.h.b16 %v559
        %v708 = vunpack.c.l.b16 %v560
        %v709 = vunpack.c.h.b16 %v560
        %v710 = vunpack.c.l.b16 %v561
        %v711 = vunpack.c.h.b16 %v561
        %v712 = vunpack.c.l.b16 %v562
        %v713 = vunpack.c.h.b16 %v562
        %v714 = vunpack.c.l.b16 %v563
        %v715 = vunpack.c.h.b16 %v563
        %v716 = vunpack.c.l.b16 %v564
        %v717 = vunpack.c.h.b16 %v564
        %v718 = vunpack.c.l.b16 %v565
        %v719 = vunpack.c.h.b16 %v565
        %v720 = vpack.c.b16 %v660, %v656
        %v721 = vpack.c.b16 %v661, %v657
        %v722 = vpack.c.b16 %v662, %v658
        %v723 = vpack.c.b16 %v663, %v659
        %v724 = vpack.c.b16 %v668, %v664
        %v725 = vpack.c.b16 %v669, %v665
        %v726 = vpack.c.b16 %v670, %v666
        %v727 = vpack.c.b16 %v671, %v667
        %v728 = vpack.c.b16 %v676, %v672
        %v729 = vpack.c.b16 %v677, %v673
        %v730 = vpack.c.b16 %v678, %v674
        %v731 = vpack.c.b16 %v679, %v675
        %v732 = vpack.c.b16 %v684, %v680
        %v733 = vpack.c.b16 %v685, %v681
        %v734 = vpack.c.b16 %v686, %v682
        %v735 = vpack.c.b16 %v687, %v683
        %v736 = vpack.c.b16 %v692, %v688
        %v737 = vpack.c.b16 %v693, %v689
        %v738 = vpack.c.b16 %v694, %v690
        %v739 = vpack.c.b16 %v695, %v691
        %v740 = vpack.c.b16 %v700, %v696
        %v741 = vpack.c.b16 %v701, %v697
        %v742 = vpack.c.b16 %v702, %v698
        %v743 = vpack.c.b16 %v703, %v699
        %v744 = vpack.c.b16 %v708, %v704
        %v745 = vpack.c.b16 %v709, %v705
        %v746 = vpack.c.b16 %v710, %v706
        %v747 = vpack.c.b16 %v711, %v707
        %v748 = vpack.c.b16 %v716, %v712
        %v749 = vpack.c.b16 %v717, %v713
        %v750 = vpack.c.b16 %v718, %v714
        %v751 = vpack.c.b16 %v719, %v715
        %784 = vmatpush.bf16.msra.mxu0 %v748
        %785 = vmatpush.bf16.msra.mxu0 %v744
        %786 = vmatpush.bf16.msra.mxu0 %v740
        %787 = vmatpush.bf16.msra.mxu0 %v736
        %788 = vmatpush.bf16.msra.mxu0 %v732
        %789 = vmatpush.bf16.msra.mxu0 %v728
        %790 = vmatpush.bf16.msra.mxu0 %v724
        %791 = vmatpush.bf16.msra.mxu0 %v720
        %792 = vmatmul.bf16.gmra.mxu0 %v608
        %v793 = vpop.f32.mrf.mxu0
        %v794 = vadd.f32 %v568, %v793
        %v795 = vpop.f32.mrf.mxu0
        %v796 = vadd.f32 %v568, %v795
        %797 = vmatmul.bf16.gmra.mxu0 %v609
        %v798 = vpop.f32.mrf.mxu0
        %v799 = vadd.f32 %v568, %v798
        %v800 = vpop.f32.mrf.mxu0
        %v801 = vadd.f32 %v568, %v800
        %802 = vmatmul.bf16.gmra.mxu0 %v610
        %v803 = vpop.f32.mrf.mxu0
        %v804 = vadd.f32 %v568, %v803
        %v805 = vpop.f32.mrf.mxu0
        %v806 = vadd.f32 %v568, %v805
        %807 = vmatmul.bf16.gmra.mxu0 %v611
        %v808 = vpop.f32.mrf.mxu0
        %v809 = vadd.f32 %v568, %v808
        %v810 = vpop.f32.mrf.mxu0
        %v811 = vadd.f32 %v568, %v810
        %812 = vmatmul.bf16.gmra.mxu0 %v612
        %v813 = vpop.f32.mrf.mxu0
        %v814 = vadd.f32 %v568, %v813
        %v815 = vpop.f32.mrf.mxu0
        %v816 = vadd.f32 %v568, %v815
        %817 = vmatmul.bf16.gmra.mxu0 %v613
        %v818 = vpop.f32.mrf.mxu0
        %v819 = vadd.f32 %v568, %v818
        %v820 = vpop.f32.mrf.mxu0
        %v821 = vadd.f32 %v568, %v820
        %822 = vmatmul.bf16.gmra.mxu0 %v614
        %v823 = vpop.f32.mrf.mxu0
        %v824 = vadd.f32 %v568, %v823
        %v825 = vpop.f32.mrf.mxu0
        %v826 = vadd.f32 %v568, %v825
        %827 = vmatmul.bf16.gmra.mxu0 %v615
        %v828 = vpop.f32.mrf.mxu0
        %v829 = vadd.f32 %v568, %v828
        %v830 = vpop.f32.mrf.mxu0
        %v831 = vadd.f32 %v568, %v830
        %832 = vdwg.mxu0
        %833 = vmatpush.bf16.msra.mxu0 %v749
        %834 = vmatpush.bf16.msra.mxu0 %v745
        %835 = vmatpush.bf16.msra.mxu0 %v741
        %836 = vmatpush.bf16.msra.mxu0 %v737
        %837 = vmatpush.bf16.msra.mxu0 %v733
        %838 = vmatpush.bf16.msra.mxu0 %v729
        %839 = vmatpush.bf16.msra.mxu0 %v725
        %840 = vmatpush.bf16.msra.mxu0 %v721
        %841 = vmatmul.bf16.gmra.mxu0 %v608
        %v842 = vpop.f32.mrf.mxu0
        %v843 = vadd.f32 %v569, %v842
        %v844 = vpop.f32.mrf.mxu0
        %v845 = vadd.f32 %v569, %v844
        %846 = vmatmul.bf16.gmra.mxu0 %v609
        %v847 = vpop.f32.mrf.mxu0
        %v848 = vadd.f32 %v569, %v847
        %v849 = vpop.f32.mrf.mxu0
        %v850 = vadd.f32 %v569, %v849
        %851 = vmatmul.bf16.gmra.mxu0 %v610
        %v852 = vpop.f32.mrf.mxu0
        %v853 = vadd.f32 %v569, %v852
        %v854 = vpop.f32.mrf.mxu0
        %v855 = vadd.f32 %v569, %v854
        %856 = vmatmul.bf16.gmra.mxu0 %v611
        %v857 = vpop.f32.mrf.mxu0
        %v858 = vadd.f32 %v569, %v857
        %v859 = vpop.f32.mrf.mxu0
        %v860 = vadd.f32 %v569, %v859
        %861 = vmatmul.bf16.gmra.mxu0 %v612
        %v862 = vpop.f32.mrf.mxu0
        %v863 = vadd.f32 %v569, %v862
        %v864 = vpop.f32.mrf.mxu0
        %v865 = vadd.f32 %v569, %v864
        %866 = vmatmul.bf16.gmra.mxu0 %v613
        %v867 = vpop.f32.mrf.mxu0
        %v868 = vadd.f32 %v569, %v867
        %v869 = vpop.f32.mrf.mxu0
        %v870 = vadd.f32 %v569, %v869
        %871 = vmatmul.bf16.gmra.mxu0 %v614
        %v872 = vpop.f32.mrf.mxu0
        %v873 = vadd.f32 %v569, %v872
        %v874 = vpop.f32.mrf.mxu0
        %v875 = vadd.f32 %v569, %v874
        %876 = vmatmul.bf16.gmra.mxu0 %v615
        %v877 = vpop.f32.mrf.mxu0
        %v878 = vadd.f32 %v569, %v877
        %v879 = vpop.f32.mrf.mxu0
        %v880 = vadd.f32 %v569, %v879
        %881 = vdwg.mxu0
        %882 = vmatpush.bf16.msra.mxu0 %v750
        %883 = vmatpush.bf16.msra.mxu0 %v746
        %884 = vmatpush.bf16.msra.mxu0 %v742
        %885 = vmatpush.bf16.msra.mxu0 %v738
        %886 = vmatpush.bf16.msra.mxu0 %v734
        %887 = vmatpush.bf16.msra.mxu0 %v730
        %888 = vmatpush.bf16.msra.mxu0 %v726
        %889 = vmatpush.bf16.msra.mxu0 %v722
        %890 = vmatmul.bf16.gmra.mxu0 %v608
        %v891 = vpop.f32.mrf.mxu0
        %v892 = vadd.f32 %v570, %v891
        %v893 = vpop.f32.mrf.mxu0
        %v894 = vadd.f32 %v570, %v893
        %895 = vmatmul.bf16.gmra.mxu0 %v609
        %v896 = vpop.f32.mrf.mxu0
        %v897 = vadd.f32 %v570, %v896
        %v898 = vpop.f32.mrf.mxu0
        %v899 = vadd.f32 %v570, %v898
        %900 = vmatmul.bf16.gmra.mxu0 %v610
        %v901 = vpop.f32.mrf.mxu0
        %v902 = vadd.f32 %v570, %v901
        %v903 = vpop.f32.mrf.mxu0
        %v904 = vadd.f32 %v570, %v903
        %905 = vmatmul.bf16.gmra.mxu0 %v611
        %v906 = vpop.f32.mrf.mxu0
        %v907 = vadd.f32 %v570, %v906
        %v908 = vpop.f32.mrf.mxu0
        %v909 = vadd.f32 %v570, %v908
        %910 = vmatmul.bf16.gmra.mxu0 %v612
        %v911 = vpop.f32.mrf.mxu0
        %v912 = vadd.f32 %v570, %v911
        %v913 = vpop.f32.mrf.mxu0
        %v914 = vadd.f32 %v570, %v913
        %915 = vmatmul.bf16.gmra.mxu0 %v613
        %v916 = vpop.f32.mrf.mxu0
        %v917 = vadd.f32 %v570, %v916
        %v918 = vpop.f32.mrf.mxu0
        %v919 = vadd.f32 %v570, %v918
        %920 = vmatmul.bf16.gmra.mxu0 %v614
        %v921 = vpop.f32.mrf.mxu0
        %v922 = vadd.f32 %v570, %v921
        %v923 = vpop.f32.mrf.mxu0
        %v924 = vadd.f32 %v570, %v923
        %925 = vmatmul.bf16.gmra.mxu0 %v615
        %v926 = vpop.f32.mrf.mxu0
        %v927 = vadd.f32 %v570, %v926
        %v928 = vpop.f32.mrf.mxu0
        %v929 = vadd.f32 %v570, %v928
        %930 = vdwg.mxu0
        %931 = vmatpush.bf16.msra.mxu0 %v751
        %932 = vmatpush.bf16.msra.mxu0 %v747
        %933 = vmatpush.bf16.msra.mxu0 %v743
        %934 = vmatpush.bf16.msra.mxu0 %v739
        %935 = vmatpush.bf16.msra.mxu0 %v735
        %936 = vmatpush.bf16.msra.mxu0 %v731
        %937 = vmatpush.bf16.msra.mxu0 %v727
        %938 = vmatpush.bf16.msra.mxu0 %v723
        %939 = vmatmul.bf16.gmra.mxu0 %v608
        %v940 = vpop.f32.mrf.mxu0
        %v941 = vadd.f32 %v571, %v940
        %v942 = vpop.f32.mrf.mxu0
        %v943 = vadd.f32 %v571, %v942
        %944 = vmatmul.bf16.gmra.mxu0 %v609
        %v945 = vpop.f32.mrf.mxu0
        %v946 = vadd.f32 %v571, %v945
        %v947 = vpop.f32.mrf.mxu0
        %v948 = vadd.f32 %v571, %v947
        %949 = vmatmul.bf16.gmra.mxu0 %v610
        %v950 = vpop.f32.mrf.mxu0
        %v951 = vadd.f32 %v571, %v950
        %v952 = vpop.f32.mrf.mxu0
        %v953 = vadd.f32 %v571, %v952
        %954 = vmatmul.bf16.gmra.mxu0 %v611
        %v955 = vpop.f32.mrf.mxu0
        %v956 = vadd.f32 %v571, %v955
        %v957 = vpop.f32.mrf.mxu0
        %v958 = vadd.f32 %v571, %v957
        %959 = vmatmul.bf16.gmra.mxu0 %v612
        %v960 = vpop.f32.mrf.mxu0
        %v961 = vadd.f32 %v571, %v960
        %v962 = vpop.f32.mrf.mxu0
        %v963 = vadd.f32 %v571, %v962
        %964 = vmatmul.bf16.gmra.mxu0 %v613
        %v965 = vpop.f32.mrf.mxu0
        %v966 = vadd.f32 %v571, %v965
        %v967 = vpop.f32.mrf.mxu0
        %v968 = vadd.f32 %v571, %v967
        %969 = vmatmul.bf16.gmra.mxu0 %v614
        %v970 = vpop.f32.mrf.mxu0
        %v971 = vadd.f32 %v571, %v970
        %v972 = vpop.f32.mrf.mxu0
        %v973 = vadd.f32 %v571, %v972
        %974 = vmatmul.bf16.gmra.mxu0 %v615
        %v975 = vpop.f32.mrf.mxu0
        %v976 = vadd.f32 %v571, %v975
        %v977 = vpop.f32.mrf.mxu0
        %v978 = vadd.f32 %v571, %v977
        %979 = vdwg.mxu0
        %980 = vst [vmem:[#allocation2] sm:$0xff] %v794
        %981 = vst [vmem:[#allocation2 + $0x8] sm:$0xff] %v843
        %982 = vst [vmem:[#allocation2 + $0x10] sm:$0xff] %v892
        %983 = vst [vmem:[#allocation2 + $0x18] sm:$0xff] %v941
        %984 = vst [vmem:[#allocation2 + $0x20] sm:$0xff] %v796
        %985 = vst [vmem:[#allocation2 + $0x28] sm:$0xff] %v845
        %986 = vst [vmem:[#allocation2 + $0x30] sm:$0xff] %v894
        %987 = vst [vmem:[#allocation2 + $0x38] sm:$0xff] %v943
        %988 = vst [vmem:[#allocation2 + $0x40] sm:$0xff] %v799
        %989 = vst [vmem:[#allocation2 + $0x48] sm:$0xff] %v848
        %990 = vst [vmem:[#allocation2 + $0x50] sm:$0xff] %v897
        %991 = vst [vmem:[#allocation2 + $0x58] sm:$0xff] %v946
        %992 = vst [vmem:[#allocation2 + $0x60] sm:$0xff] %v801
        %993 = vst [vmem:[#allocation2 + $0x68] sm:$0xff] %v850
        %994 = vst [vmem:[#allocation2 + $0x70] sm:$0xff] %v899
        %995 = vst [vmem:[#allocation2 + $0x78] sm:$0xff] %v948
        %996 = vst [vmem:[#allocation2 + $0x80] sm:$0xff] %v804
        %997 = vst [vmem:[#allocation2 + $0x88] sm:$0xff] %v853
        %998 = vst [vmem:[#allocation2 + $0x90] sm:$0xff] %v902
        %999 = vst [vmem:[#allocation2 + $0x98] sm:$0xff] %v951
        %1000 = vst [vmem:[#allocation2 + $0xa0] sm:$0xff] %v806
        %1001 = vst [vmem:[#allocation2 + $0xa8] sm:$0xff] %v855
        %1002 = vst [vmem:[#allocation2 + $0xb0] sm:$0xff] %v904
        %1003 = vst [vmem:[#allocation2 + $0xb8] sm:$0xff] %v953
        %1004 = vst [vmem:[#allocation2 + $0xc0] sm:$0xff] %v809
        %1005 = vst [vmem:[#allocation2 + $0xc8] sm:$0xff] %v858
        %1006 = vst [vmem:[#allocation2 + $0xd0] sm:$0xff] %v907
        %1007 = vst [vmem:[#allocation2 + $0xd8] sm:$0xff] %v956
        %1008 = vst [vmem:[#allocation2 + $0xe0] sm:$0xff] %v811
        %1009 = vst [vmem:[#allocation2 + $0xe8] sm:$0xff] %v860
        %1010 = vst [vmem:[#allocation2 + $0xf0] sm:$0xff] %v909
        %1011 = vst [vmem:[#allocation2 + $0xf8] sm:$0xff] %v958
        %1012 = vst [vmem:[#allocation2 + $0x100] sm:$0xff] %v814
        %1013 = vst [vmem:[#allocation2 + $0x108] sm:$0xff] %v863
        %1014 = vst [vmem:[#allocation2 + $0x110] sm:$0xff] %v912
        %1015 = vst [vmem:[#allocation2 + $0x118] sm:$0xff] %v961
        %1016 = vst [vmem:[#allocation2 + $0x120] sm:$0xff] %v816
        %1017 = vst [vmem:[#allocation2 + $0x128] sm:$0xff] %v865
        %1018 = vst [vmem:[#allocation2 + $0x130] sm:$0xff] %v914
        %1019 = vst [vmem:[#allocation2 + $0x138] sm:$0xff] %v963
        %1020 = vst [vmem:[#allocation2 + $0x140] sm:$0xff] %v819
        %1021 = vst [vmem:[#allocation2 + $0x148] sm:$0xff] %v868
        %1022 = vst [vmem:[#allocation2 + $0x150] sm:$0xff] %v917
        %1023 = vst [vmem:[#allocation2 + $0x158] sm:$0xff] %v966
        %1024 = vst [vmem:[#allocation2 + $0x160] sm:$0xff] %v821
        %1025 = vst [vmem:[#allocation2 + $0x168] sm:$0xff] %v870
        %1026 = vst [vmem:[#allocation2 + $0x170] sm:$0xff] %v919
        %1027 = vst [vmem:[#allocation2 + $0x178] sm:$0xff] %v968
        %1028 = vst [vmem:[#allocation2 + $0x180] sm:$0xff] %v824
        %1029 = vst [vmem:[#allocation2 + $0x188] sm:$0xff] %v873
        %1030 = vst [vmem:[#allocation2 + $0x190] sm:$0xff] %v922
        %1031 = vst [vmem:[#allocation2 + $0x198] sm:$0xff] %v971
        %1032 = vst [vmem:[#allocation2 + $0x1a0] sm:$0xff] %v826
        %1033 = vst [vmem:[#allocation2 + $0x1a8] sm:$0xff] %v875
        %1034 = vst [vmem:[#allocation2 + $0x1b0] sm:$0xff] %v924
        %1035 = vst [vmem:[#allocation2 + $0x1b8] sm:$0xff] %v973
        %1036 = vst [vmem:[#allocation2 + $0x1c0] sm:$0xff] %v829
        %1037 = vst [vmem:[#allocation2 + $0x1c8] sm:$0xff] %v878
        %1038 = vst [vmem:[#allocation2 + $0x1d0] sm:$0xff] %v927
        %1039 = vst [vmem:[#allocation2 + $0x1d8] sm:$0xff] %v976
        %1040 = vst [vmem:[#allocation2 + $0x1e0] sm:$0xff] %v831
        %1041 = vst [vmem:[#allocation2 + $0x1e8] sm:$0xff] %v880
        %1042 = vst [vmem:[#allocation2 + $0x1f0] sm:$0xff] %v929
        %1043 = vst [vmem:[#allocation2 + $0x1f8] sm:$0xff] %v978
        %p1044 = scmp.eq.s32.totalorder %s36, 0
        // Predicated region
        $region69: #{tpu_custom_call.1} parent=43 // pred_check
          %p1045 = pneg %p1044
        $region70: #{tpu_custom_call.1} parent=43 // pred_check_branch
          %1047 = sbr.rel (%p1045) target = $region72
        $region71: #{tpu_custom_call.1} parent=43 // pred_region
          %v1048 = vld [vmem:[%s450] sm:$0xff]
          %v1049 = vld [vmem:[%s450 + $0x8] sm:$0xff]
          %1050 = vst [vmem:[#allocation4] sm:$0xff] %v1048
          %1051 = vst [vmem:[#allocation4 + $0x8] sm:$0xff] %v1049
          %v1052 = vld [vmem:[%s460] sm:$0xff]
          %v1053 = vld [vmem:[%s460 + $0x8] sm:$0xff]
          %1054 = vst [vmem:[#allocation5] sm:$0xff] %v1052
          %1055 = vst [vmem:[#allocation5 + $0x8] sm:$0xff] %v1053
        $region72: #{tpu_custom_call.1} parent=43 // pred_fallthru
          _
        %v1056 = vld [vmem:[#allocation11] sm:$0xff]
        %v1057 = vld [vmem:[#allocation11 + $0x8] sm:$0xff]
        %v1058 = vld [vmem:[#allocation11 + $0x10] sm:$0xff]
        %v1059 = vld [vmem:[#allocation11 + $0x18] sm:$0xff]
        %v1060 = vld [vmem:[#allocation11 + $0x20] sm:$0xff]
        %v1061 = vld [vmem:[#allocation11 + $0x28] sm:$0xff]
        %v1062 = vld [vmem:[#allocation11 + $0x30] sm:$0xff]
        %v1063 = vld [vmem:[#allocation11 + $0x38] sm:$0xff]
        %v1064 = vld [vmem:[#allocation11 + $0x40] sm:$0xff]
        %v1065 = vld [vmem:[#allocation11 + $0x48] sm:$0xff]
        %v1066 = vld [vmem:[#allocation11 + $0x50] sm:$0xff]
        %v1067 = vld [vmem:[#allocation11 + $0x58] sm:$0xff]
        %v1068 = vld [vmem:[#allocation11 + $0x60] sm:$0xff]
        %v1069 = vld [vmem:[#allocation11 + $0x68] sm:$0xff]
        %v1070 = vld [vmem:[#allocation11 + $0x70] sm:$0xff]
        %v1071 = vld [vmem:[#allocation11 + $0x78] sm:$0xff]
        %v1072 = vld [vmem:[#allocation11 + $0x80] sm:$0xff]
        %v1073 = vld [vmem:[#allocation11 + $0x88] sm:$0xff]
        %v1074 = vld [vmem:[#allocation11 + $0x90] sm:$0xff]
        %v1075 = vld [vmem:[#allocation11 + $0x98] sm:$0xff]
        %v1076 = vld [vmem:[#allocation11 + $0xa0] sm:$0xff]
        %v1077 = vld [vmem:[#allocation11 + $0xa8] sm:$0xff]
        %v1078 = vld [vmem:[#allocation11 + $0xb0] sm:$0xff]
        %v1079 = vld [vmem:[#allocation11 + $0xb8] sm:$0xff]
        %v1080 = vld [vmem:[#allocation11 + $0xc0] sm:$0xff]
        %v1081 = vld [vmem:[#allocation11 + $0xc8] sm:$0xff]
        %v1082 = vld [vmem:[#allocation11 + $0xd0] sm:$0xff]
        %v1083 = vld [vmem:[#allocation11 + $0xd8] sm:$0xff]
        %v1084 = vld [vmem:[#allocation11 + $0xe0] sm:$0xff]
        %v1085 = vld [vmem:[#allocation11 + $0xe8] sm:$0xff]
        %v1086 = vld [vmem:[#allocation11 + $0xf0] sm:$0xff]
        %v1087 = vld [vmem:[#allocation11 + $0xf8] sm:$0xff]
        %v1088 = vld [vmem:[#allocation4] sm:$0xff]
        %v1089 = vld [vmem:[#allocation4 + $0x8] sm:$0xff]
        %v1090 = vld [vmem:[#allocation5] sm:$0xff]
        %v1091 = vld [vmem:[#allocation5 + $0x8] sm:$0xff]
        %v1092 = vld [vmem:[#allocation2] sm:$0xff]
        %v1093 = vld [vmem:[#allocation2 + $0x8] sm:$0xff]
        %v1094 = vld [vmem:[#allocation2 + $0x10] sm:$0xff]
        %v1095 = vld [vmem:[#allocation2 + $0x18] sm:$0xff]
        %v1096 = vld [vmem:[#allocation2 + $0x20] sm:$0xff]
        %v1097 = vld [vmem:[#allocation2 + $0x28] sm:$0xff]
        %v1098 = vld [vmem:[#allocation2 + $0x30] sm:$0xff]
        %v1099 = vld [vmem:[#allocation2 + $0x38] sm:$0xff]
        %v1100 = vpack.c.bf16 %v1089, %v1088
        %v1133 = vunpack.c.l.b16 %v1056
        %v1134 = vunpack.c.h.b16 %v1056
        %v1135 = vunpack.c.l.b16 %v1057
        %v1136 = vunpack.c.h.b16 %v1057
        %v1137 = vunpack.c.l.b16 %v1058
        %v1138 = vunpack.c.h.b16 %v1058
        %v1139 = vunpack.c.l.b16 %v1059
        %v1140 = vunpack.c.h.b16 %v1059
        %v1141 = vunpack.c.l.b16 %v1060
        %v1142 = vunpack.c.h.b16 %v1060
        %v1143 = vunpack.c.l.b16 %v1061
        %v1144 = vunpack.c.h.b16 %v1061
        %v1145 = vunpack.c.l.b16 %v1062
        %v1146 = vunpack.c.h.b16 %v1062
        %v1147 = vunpack.c.l.b16 %v1063
        %v1148 = vunpack.c.h.b16 %v1063
        %v1149 = vunpack.c.l.b16 %v1064
        %v1150 = vunpack.c.h.b16 %v1064
        %v1151 = vunpack.c.l.b16 %v1065
        %v1152 = vunpack.c.h.b16 %v1065
        %v1153 = vunpack.c.l.b16 %v1066
        %v1154 = vunpack.c.h.b16 %v1066
        %v1155 = vunpack.c.l.b16 %v1067
        %v1156 = vunpack.c.h.b16 %v1067
        %v1157 = vunpack.c.l.b16 %v1068
        %v1158 = vunpack.c.h.b16 %v1068
        %v1159 = vunpack.c.l.b16 %v1069
        %v1160 = vunpack.c.h.b16 %v1069
        %v1161 = vunpack.c.l.b16 %v1070
        %v1162 = vunpack.c.h.b16 %v1070
        %v1163 = vunpack.c.l.b16 %v1071
        %v1164 = vunpack.c.h.b16 %v1071
        %v1165 = vunpack.c.l.b16 %v1072
        %v1166 = vunpack.c.h.b16 %v1072
        %v1167 = vunpack.c.l.b16 %v1073
        %v1168 = vunpack.c.h.b16 %v1073
        %v1169 = vunpack.c.l.b16 %v1074
        %v1170 = vunpack.c.h.b16 %v1074
        %v1171 = vunpack.c.l.b16 %v1075
        %v1172 = vunpack.c.h.b16 %v1075
        %v1173 = vunpack.c.l.b16 %v1076
        %v1174 = vunpack.c.h.b16 %v1076
        %v1175 = vunpack.c.l.b16 %v1077
        %v1176 = vunpack.c.h.b16 %v1077
        %v1177 = vunpack.c.l.b16 %v1078
        %v1178 = vunpack.c.h.b16 %v1078
        %v1179 = vunpack.c.l.b16 %v1079
        %v1180 = vunpack.c.h.b16 %v1079
        %v1181 = vunpack.c.l.b16 %v1080
        %v1182 = vunpack.c.h.b16 %v1080
        %v1183 = vunpack.c.l.b16 %v1081
        %v1184 = vunpack.c.h.b16 %v1081
        %v1185 = vunpack.c.l.b16 %v1082
        %v1186 = vunpack.c.h.b16 %v1082
        %v1187 = vunpack.c.l.b16 %v1083
        %v1188 = vunpack.c.h.b16 %v1083
        %v1189 = vunpack.c.l.b16 %v1084
        %v1190 = vunpack.c.h.b16 %v1084
        %v1191 = vunpack.c.l.b16 %v1085
        %v1192 = vunpack.c.h.b16 %v1085
        %v1193 = vunpack.c.l.b16 %v1086
        %v1194 = vunpack.c.h.b16 %v1086
        %v1195 = vunpack.c.l.b16 %v1087
        %v1196 = vunpack.c.h.b16 %v1087
        %v1197 = vpack.c.b16 %v1137, %v1133
        %v1198 = vpack.c.b16 %v1138, %v1134
        %v1199 = vpack.c.b16 %v1139, %v1135
        %v1200 = vpack.c.b16 %v1140, %v1136
        %v1201 = vpack.c.b16 %v1145, %v1141
        %v1202 = vpack.c.b16 %v1146, %v1142
        %v1203 = vpack.c.b16 %v1147, %v1143
        %v1204 = vpack.c.b16 %v1148, %v1144
        %v1205 = vpack.c.b16 %v1153, %v1149
        %v1206 = vpack.c.b16 %v1154, %v1150
        %v1207 = vpack.c.b16 %v1155, %v1151
        %v1208 = vpack.c.b16 %v1156, %v1152
        %v1209 = vpack.c.b16 %v1161, %v1157
        %v1210 = vpack.c.b16 %v1162, %v1158
        %v1211 = vpack.c.b16 %v1163, %v1159
        %v1212 = vpack.c.b16 %v1164, %v1160
        %v1213 = vpack.c.b16 %v1169, %v1165
        %v1214 = vpack.c.b16 %v1170, %v1166
        %v1215 = vpack.c.b16 %v1171, %v1167
        %v1216 = vpack.c.b16 %v1172, %v1168
        %v1217 = vpack.c.b16 %v1177, %v1173
        %v1218 = vpack.c.b16 %v1178, %v1174
        %v1219 = vpack.c.b16 %v1179, %v1175
        %v1220 = vpack.c.b16 %v1180, %v1176
        %v1221 = vpack.c.b16 %v1185, %v1181
        %v1222 = vpack.c.b16 %v1186, %v1182
        %v1223 = vpack.c.b16 %v1187, %v1183
        %v1224 = vpack.c.b16 %v1188, %v1184
        %v1225 = vpack.c.b16 %v1193, %v1189
        %v1226 = vpack.c.b16 %v1194, %v1190
        %v1227 = vpack.c.b16 %v1195, %v1191
        %v1228 = vpack.c.b16 %v1196, %v1192
        %1261 = vmatpush.bf16.msra.mxu0 %v1225
        %1262 = vmatpush.bf16.msra.mxu0 %v1221
        %1263 = vmatpush.bf16.msra.mxu0 %v1217
        %1264 = vmatpush.bf16.msra.mxu0 %v1213
        %1265 = vmatpush.bf16.msra.mxu0 %v1209
        %1266 = vmatpush.bf16.msra.mxu0 %v1205
        %1267 = vmatpush.bf16.msra.mxu0 %v1201
        %1268 = vmatpush.bf16.msra.mxu0 %v1197
        %1269 = vmatmul.bf16.gmra.mxu0 %v1100
        %v1270 = vpop.f32.mrf.mxu0
        %v1271 = vadd.f32 0.0, %v1270
        %v1272 = vpop.f32.mrf.mxu0
        %v1273 = vadd.f32 0.0, %v1272
        %1274 = vdwg.mxu0
        %1275 = vmatpush.bf16.msra.mxu0 %v1226
        %1276 = vmatpush.bf16.msra.mxu0 %v1222
        %1277 = vmatpush.bf16.msra.mxu0 %v1218
        %1278 = vmatpush.bf16.msra.mxu0 %v1214
        %1279 = vmatpush.bf16.msra.mxu0 %v1210
        %1280 = vmatpush.bf16.msra.mxu0 %v1206
        %1281 = vmatpush.bf16.msra.mxu0 %v1202
        %1282 = vmatpush.bf16.msra.mxu0 %v1198
        %1283 = vmatmul.bf16.gmra.mxu0 %v1100
        %v1284 = vpop.f32.mrf.mxu0
        %v1285 = vadd.f32 0.0, %v1284
        %v1286 = vpop.f32.mrf.mxu0
        %v1287 = vadd.f32 0.0, %v1286
        %1288 = vdwg.mxu0
        %1289 = vmatpush.bf16.msra.mxu0 %v1227
        %1290 = vmatpush.bf16.msra.mxu0 %v1223
        %1291 = vmatpush.bf16.msra.mxu0 %v1219
        %1292 = vmatpush.bf16.msra.mxu0 %v1215
        %1293 = vmatpush.bf16.msra.mxu0 %v1211
        %1294 = vmatpush.bf16.msra.mxu0 %v1207
        %1295 = vmatpush.bf16.msra.mxu0 %v1203
        %1296 = vmatpush.bf16.msra.mxu0 %v1199
        %1297 = vmatmul.bf16.gmra.mxu0 %v1100
        %v1298 = vpop.f32.mrf.mxu0
        %v1299 = vadd.f32 0.0, %v1298
        %v1300 = vpop.f32.mrf.mxu0
        %v1301 = vadd.f32 0.0, %v1300
        %1302 = vdwg.mxu0
        %1303 = vmatpush.bf16.msra.mxu0 %v1228
        %1304 = vmatpush.bf16.msra.mxu0 %v1224
        %1305 = vmatpush.bf16.msra.mxu0 %v1220
        %1306 = vmatpush.bf16.msra.mxu0 %v1216
        %1307 = vmatpush.bf16.msra.mxu0 %v1212
        %1308 = vmatpush.bf16.msra.mxu0 %v1208
        %1309 = vmatpush.bf16.msra.mxu0 %v1204
        %1310 = vmatpush.bf16.msra.mxu0 %v1200
        %1311 = vmatmul.bf16.gmra.mxu0 %v1100
        %v1312 = vpop.f32.mrf.mxu0
        %v1313 = vadd.f32 0.0, %v1312
        %v1314 = vpop.f32.mrf.mxu0
        %v1315 = vadd.f32 0.0, %v1314
        %1316 = vdwg.mxu0
        %v1317 = vadd.f32 %v1092, %v1271
        %v1318 = vadd.f32 %v1093, %v1285
        %v1319 = vadd.f32 %v1094, %v1299
        %v1320 = vadd.f32 %v1095, %v1313
        %v1321 = vadd.f32 %v1096, %v1273
        %v1322 = vadd.f32 %v1097, %v1287
        %v1323 = vadd.f32 %v1098, %v1301
        %v1324 = vadd.f32 %v1099, %v1315
        %v1325 = vtanh.pop %v1317
        %v1326 = vtanh.pop %v1321
        %v1327 = vxor.u32 %v1318, 2147483648
        %v1328 = vxor.u32 %v1319, 2147483648
        %v1329 = vxor.u32 %v1320, 2147483648
        %v1330 = vxor.u32 %v1322, 2147483648
        %v1331 = vxor.u32 %v1323, 2147483648
        %v1332 = vxor.u32 %v1324, 2147483648
        %v1333 = vmul.f32 %v1327, 1.442695
        %v1334 = vpow.pop %v1333
        %v1335 = vmul.f32 %v1328, 1.442695
        %v1336 = vpow.pop %v1335
        %v1337 = vmul.f32 %v1329, 1.442695
        %v1338 = vpow.pop %v1337
        %v1339 = vmul.f32 %v1330, 1.442695
        %v1340 = vpow.pop %v1339
        %v1341 = vmul.f32 %v1331, 1.442695
        %v1342 = vpow.pop %v1341
        %v1343 = vmul.f32 %v1332, 1.442695
        %v1344 = vpow.pop %v1343
        %v1345 = vadd.f32 %v1334, 1.0
        %v1346 = vadd.f32 %v1336, 1.0
        %v1347 = vadd.f32 %v1338, 1.0
        %v1348 = vadd.f32 %v1340, 1.0
        %v1349 = vadd.f32 %v1342, 1.0
        %v1350 = vadd.f32 %v1344, 1.0
        %v1351 = vrcp.pop %v1345
        %v1352 = vmul.f32 %v1345, %v1351
        %v1353 = vsub.f32 1.0, %v1352
        %v1354 = vmul.f32 %v1351, %v1353
        %v1355 = vadd.f32 %v1351, %v1354
        %vm1356 = vweird.f32 %v1345
        %vm1357 = vweird.f32 %v1351
        %vm1358 = vmor %vm1356, %vm1357
        %v1359 = vsel %vm1358, %v1351, %v1355
        %v1360 = vand.u32 2147483647, %v1345
        %vm1361 = vcmp.eq.f32.partialorder %v1360, 8.507059e+37
        %v1362 = vand.u32 %v1345, 2147483648
        %v1363 = vor.u32 1.1754944e-38, %v1362
        %v1364 = vsel %vm1361, %v1363, %v1359
        %v1365 = vmul.f32 1.0, %v1364
        %v1366 = vrcp.pop %v1346
        %v1367 = vmul.f32 %v1346, %v1366
        %v1368 = vsub.f32 1.0, %v1367
        %v1369 = vmul.f32 %v1366, %v1368
        %v1370 = vadd.f32 %v1366, %v1369
        %vm1371 = vweird.f32 %v1346
        %vm1372 = vweird.f32 %v1366
        %vm1373 = vmor %vm1371, %vm1372
        %v1374 = vsel %vm1373, %v1366, %v1370
        %v1375 = vand.u32 2147483647, %v1346
        %vm1376 = vcmp.eq.f32.partialorder %v1375, 8.507059e+37
        %v1377 = vand.u32 %v1346, 2147483648
        %v1378 = vor.u32 1.1754944e-38, %v1377
        %v1379 = vsel %vm1376, %v1378, %v1374
        %v1380 = vmul.f32 1.0, %v1379
        %v1381 = vrcp.pop %v1347
        %v1382 = vmul.f32 %v1347, %v1381
        %v1383 = vsub.f32 1.0, %v1382
        %v1384 = vmul.f32 %v1381, %v1383
        %v1385 = vadd.f32 %v1381, %v1384
        %vm1386 = vweird.f32 %v1347
        %vm1387 = vweird.f32 %v1381
        %vm1388 = vmor %vm1386, %vm1387
        %v1389 = vsel %vm1388, %v1381, %v1385
        %v1390 = vand.u32 2147483647, %v1347
        %vm1391 = vcmp.eq.f32.partialorder %v1390, 8.507059e+37
        %v1392 = vand.u32 %v1347, 2147483648
        %v1393 = vor.u32 1.1754944e-38, %v1392
        %v1394 = vsel %vm1391, %v1393, %v1389
        %v1395 = vmul.f32 1.0, %v1394
        %v1396 = vrcp.pop %v1348
        %v1397 = vmul.f32 %v1348, %v1396
        %v1398 = vsub.f32 1.0, %v1397
        %v1399 = vmul.f32 %v1396, %v1398
        %v1400 = vadd.f32 %v1396, %v1399
        %vm1401 = vweird.f32 %v1348
        %vm1402 = vweird.f32 %v1396
        %vm1403 = vmor %vm1401, %vm1402
        %v1404 = vsel %vm1403, %v1396, %v1400
        %v1405 = vand.u32 2147483647, %v1348
        %vm1406 = vcmp.eq.f32.partialorder %v1405, 8.507059e+37
        %v1407 = vand.u32 %v1348, 2147483648
        %v1408 = vor.u32 1.1754944e-38, %v1407
        %v1409 = vsel %vm1406, %v1408, %v1404
        %v1410 = vmul.f32 1.0, %v1409
        %v1411 = vrcp.pop %v1349
        %v1412 = vmul.f32 %v1349, %v1411
        %v1413 = vsub.f32 1.0, %v1412
        %v1414 = vmul.f32 %v1411, %v1413
        %v1415 = vadd.f32 %v1411, %v1414
        %vm1416 = vweird.f32 %v1349
        %vm1417 = vweird.f32 %v1411
        %vm1418 = vmor %vm1416, %vm1417
        %v1419 = vsel %vm1418, %v1411, %v1415
        %v1420 = vand.u32 2147483647, %v1349
        %vm1421 = vcmp.eq.f32.partialorder %v1420, 8.507059e+37
        %v1422 = vand.u32 %v1349, 2147483648
        %v1423 = vor.u32 1.1754944e-38, %v1422
        %v1424 = vsel %vm1421, %v1423, %v1419
        %v1425 = vmul.f32 1.0, %v1424
        %v1426 = vrcp.pop %v1350
        %v1427 = vmul.f32 %v1350, %v1426
        %v1428 = vsub.f32 1.0, %v1427
        %v1429 = vmul.f32 %v1426, %v1428
        %v1430 = vadd.f32 %v1426, %v1429
        %vm1431 = vweird.f32 %v1350
        %vm1432 = vweird.f32 %v1426
        %vm1433 = vmor %vm1431, %vm1432
        %v1434 = vsel %vm1433, %v1426, %v1430
        %v1435 = vand.u32 2147483647, %v1350
        %vm1436 = vcmp.eq.f32.partialorder %v1435, 8.507059e+37
        %v1437 = vand.u32 %v1350, 2147483648
        %v1438 = vor.u32 1.1754944e-38, %v1437
        %v1439 = vsel %vm1436, %v1438, %v1434
        %v1440 = vmul.f32 1.0, %v1439
        %v1441 = vmul.f32 %v1325, %v1365
        %v1442 = vmul.f32 %v1326, %v1410
        %v1443 = vmul.f32 %v1090, %v1380
        %v1444 = vmul.f32 %v1091, %v1425
        %v1445 = vadd.f32 %v1441, %v1443
        %v1446 = vadd.f32 %v1442, %v1444
        %v1447 = vtanh.pop %v1445
        %v1448 = vtanh.pop %v1446
        %v1449 = vmul.f32 %v1447, %v1395
        %v1450 = vmul.f32 %v1448, %v1440
        %1451 = vst [vmem:[#allocation3] sm:$0xff] %v1449
        %1452 = vst [vmem:[#allocation3 + $0x8] sm:$0xff] %v1450
        %s1453 = scalar_lea.vmem [#allocation2], 64
        %v1454 = vld [vmem:[%s1453] sm:$0xff]
        %v1455 = vld [vmem:[%s1453 + $0x8] sm:$0xff]
        %v1456 = vld [vmem:[%s1453 + $0x10] sm:$0xff]
        %v1457 = vld [vmem:[%s1453 + $0x18] sm:$0xff]
        %v1458 = vld [vmem:[%s1453 + $0x20] sm:$0xff]
        %v1459 = vld [vmem:[%s1453 + $0x28] sm:$0xff]
        %v1460 = vld [vmem:[%s1453 + $0x30] sm:$0xff]
        %v1461 = vld [vmem:[%s1453 + $0x38] sm:$0xff]
        %v1462 = vpack.c.bf16 %v1450, %v1449
        %1463 = vmatpush.bf16.msra.mxu0 %v1225
        %1464 = vmatpush.bf16.msra.mxu0 %v1221
        %1465 = vmatpush.bf16.msra.mxu0 %v1217
        %1466 = vmatpush.bf16.msra.mxu0 %v1213
        %1467 = vmatpush.bf16.msra.mxu0 %v1209
        %1468 = vmatpush.bf16.msra.mxu0 %v1205
        %1469 = vmatpush.bf16.msra.mxu0 %v1201
        %1470 = vmatpush.bf16.msra.mxu0 %v1197
        %1471 = vmatmul.bf16.gmra.mxu0 %v1462
        %v1472 = vpop.f32.mrf.mxu0
        %v1473 = vadd.f32 0.0, %v1472
        %v1474 = vpop.f32.mrf.mxu0
        %v1475 = vadd.f32 0.0, %v1474
        %1476 = vdwg.mxu0
        %1477 = vmatpush.bf16.msra.mxu0 %v1226
        %1478 = vmatpush.bf16.msra.mxu0 %v1222
        %1479 = vmatpush.bf16.msra.mxu0 %v1218
        %1480 = vmatpush.bf16.msra.mxu0 %v1214
        %1481 = vmatpush.bf16.msra.mxu0 %v1210
        %1482 = vmatpush.bf16.msra.mxu0 %v1206
        %1483 = vmatpush.bf16.msra.mxu0 %v1202
        %1484 = vmatpush.bf16.msra.mxu0 %v1198
        %1485 = vmatmul.bf16.gmra.mxu0 %v1462
        %v1486 = vpop.f32.mrf.mxu0
        %v1487 = vadd.f32 0.0, %v1486
        %v1488 = vpop.f32.mrf.mxu0
        %v1489 = vadd.f32 0.0, %v1488
        %1490 = vdwg.mxu0
        %1491 = vmatpush.bf16.msra.mxu0 %v1227
        %1492 = vmatpush.bf16.msra.mxu0 %v1223
        %1493 = vmatpush.bf16.msra.mxu0 %v1219
        %1494 = vmatpush.bf16.msra.mxu0 %v1215
        %1495 = vmatpush.bf16.msra.mxu0 %v1211
        %1496 = vmatpush.bf16.msra.mxu0 %v1207
        %1497 = vmatpush.bf16.msra.mxu0 %v1203
        %1498 = vmatpush.bf16.msra.mxu0 %v1199
        %1499 = vmatmul.bf16.gmra.mxu0 %v1462
        %v1500 = vpop.f32.mrf.mxu0
        %v1501 = vadd.f32 0.0, %v1500
        %v1502 = vpop.f32.mrf.mxu0
        %v1503 = vadd.f32 0.0, %v1502
        %1504 = vdwg.mxu0
        %1505 = vmatpush.bf16.msra.mxu0 %v1228
        %1506 = vmatpush.bf16.msra.mxu0 %v1224
        %1507 = vmatpush.bf16.msra.mxu0 %v1220
        %1508 = vmatpush.bf16.msra.mxu0 %v1216
        %1509 = vmatpush.bf16.msra.mxu0 %v1212
        %1510 = vmatpush.bf16.msra.mxu0 %v1208
        %1511 = vmatpush.bf16.msra.mxu0 %v1204
        %1512 = vmatpush.bf16.msra.mxu0 %v1200
        %1513 = vmatmul.bf16.gmra.mxu0 %v1462
        %v1514 = vpop.f32.mrf.mxu0
        %v1515 = vadd.f32 0.0, %v1514
        %v1516 = vpop.f32.mrf.mxu0
        %v1517 = vadd.f32 0.0, %v1516
        %1518 = vdwg.mxu0
        %v1519 = vadd.f32 %v1454, %v1473
        %v1520 = vadd.f32 %v1455, %v1487
        %v1521 = vadd.f32 %v1456, %v1501
        %v1522 = vadd.f32 %v1457, %v1515
        %v1523 = vadd.f32 %v1458, %v1475
        %v1524 = vadd.f32 %v1459, %v1489
        %v1525 = vadd.f32 %v1460, %v1503
        %v1526 = vadd.f32 %v1461, %v1517
        %v1527 = vtanh.pop %v1519
        %v1528 = vtanh.pop %v1523
        %v1529 = vxor.u32 %v1520, 2147483648
        %v1530 = vxor.u32 %v1521, 2147483648
        %v1531 = vxor.u32 %v1522, 2147483648
        %v1532 = vxor.u32 %v1524, 2147483648
        %v1533 = vxor.u32 %v1525, 2147483648
        %v1534 = vxor.u32 %v1526, 2147483648
        %v1535 = vmul.f32 %v1529, 1.442695
        %v1536 = vpow.pop %v1535
        %v1537 = vmul.f32 %v1530, 1.442695
        %v1538 = vpow.pop %v1537
        %v1539 = vmul.f32 %v1531, 1.442695
        %v1540 = vpow.pop %v1539
        %v1541 = vmul.f32 %v1532, 1.442695
        %v1542 = vpow.pop %v1541
        %v1543 = vmul.f32 %v1533, 1.442695
        %v1544 = vpow.pop %v1543
        %v1545 = vmul.f32 %v1534, 1.442695
        %v1546 = vpow.pop %v1545
        %v1547 = vadd.f32 %v1536, 1.0
        %v1548 = vadd.f32 %v1538, 1.0
        %v1549 = vadd.f32 %v1540, 1.0
        %v1550 = vadd.f32 %v1542, 1.0
        %v1551 = vadd.f32 %v1544, 1.0
        %v1552 = vadd.f32 %v1546, 1.0
        %v1553 = vrcp.pop %v1547
        %v1554 = vmul.f32 %v1547, %v1553
        %v1555 = vsub.f32 1.0, %v1554
        %v1556 = vmul.f32 %v1553, %v1555
        %v1557 = vadd.f32 %v1553, %v1556
        %vm1558 = vweird.f32 %v1547
        %vm1559 = vweird.f32 %v1553
        %vm1560 = vmor %vm1558, %vm1559
        %v1561 = vsel %vm1560, %v1553, %v1557
        %v1562 = vand.u32 2147483647, %v1547
        %vm1563 = vcmp.eq.f32.partialorder %v1562, 8.507059e+37
        %v1564 = vand.u32 %v1547, 2147483648
        %v1565 = vor.u32 1.1754944e-38, %v1564
        %v1566 = vsel %vm1563, %v1565, %v1561
        %v1567 = vmul.f32 1.0, %v1566
        %v1568 = vrcp.pop %v1548
        %v1569 = vmul.f32 %v1548, %v1568
        %v1570 = vsub.f32 1.0, %v1569
        %v1571 = vmul.f32 %v1568, %v1570
        %v1572 = vadd.f32 %v1568, %v1571
        %vm1573 = vweird.f32 %v1548
        %vm1574 = vweird.f32 %v1568
        %vm1575 = vmor %vm1573, %vm1574
        %v1576 = vsel %vm1575, %v1568, %v1572
        %v1577 = vand.u32 2147483647, %v1548
        %vm1578 = vcmp.eq.f32.partialorder %v1577, 8.507059e+37
        %v1579 = vand.u32 %v1548, 2147483648
        %v1580 = vor.u32 1.1754944e-38, %v1579
        %v1581 = vsel %vm1578, %v1580, %v1576
        %v1582 = vmul.f32 1.0, %v1581
        %v1583 = vrcp.pop %v1549
        %v1584 = vmul.f32 %v1549, %v1583
        %v1585 = vsub.f32 1.0, %v1584
        %v1586 = vmul.f32 %v1583, %v1585
        %v1587 = vadd.f32 %v1583, %v1586
        %vm1588 = vweird.f32 %v1549
        %vm1589 = vweird.f32 %v1583
        %vm1590 = vmor %vm1588, %vm1589
        %v1591 = vsel %vm1590, %v1583, %v1587
        %v1592 = vand.u32 2147483647, %v1549
        %vm1593 = vcmp.eq.f32.partialorder %v1592, 8.507059e+37
        %v1594 = vand.u32 %v1549, 2147483648
        %v1595 = vor.u32 1.1754944e-38, %v1594
        %v1596 = vsel %vm1593, %v1595, %v1591
        %v1597 = vmul.f32 1.0, %v1596
        %v1598 = vrcp.pop %v1550
        %v1599 = vmul.f32 %v1550, %v1598
        %v1600 = vsub.f32 1.0, %v1599
        %v1601 = vmul.f32 %v1598, %v1600
        %v1602 = vadd.f32 %v1598, %v1601
        %vm1603 = vweird.f32 %v1550
        %vm1604 = vweird.f32 %v1598
        %vm1605 = vmor %vm1603, %vm1604
        %v1606 = vsel %vm1605, %v1598, %v1602
        %v1607 = vand.u32 2147483647, %v1550
        %vm1608 = vcmp.eq.f32.partialorder %v1607, 8.507059e+37
        %v1609 = vand.u32 %v1550, 2147483648
        %v1610 = vor.u32 1.1754944e-38, %v1609
        %v1611 = vsel %vm1608, %v1610, %v1606
        %v1612 = vmul.f32 1.0, %v1611
        %v1613 = vrcp.pop %v1551
        %v1614 = vmul.f32 %v1551, %v1613
        %v1615 = vsub.f32 1.0, %v1614
        %v1616 = vmul.f32 %v1613, %v1615
        %v1617 = vadd.f32 %v1613, %v1616
        %vm1618 = vweird.f32 %v1551
        %vm1619 = vweird.f32 %v1613
        %vm1620 = vmor %vm1618, %vm1619
        %v1621 = vsel %vm1620, %v1613, %v1617
        %v1622 = vand.u32 2147483647, %v1551
        %vm1623 = vcmp.eq.f32.partialorder %v1622, 8.507059e+37
        %v1624 = vand.u32 %v1551, 2147483648
        %v1625 = vor.u32 1.1754944e-38, %v1624
        %v1626 = vsel %vm1623, %v1625, %v1621
        %v1627 = vmul.f32 1.0, %v1626
        %v1628 = vrcp.pop %v1552
        %v1629 = vmul.f32 %v1552, %v1628
        %v1630 = vsub.f32 1.0, %v1629
        %v1631 = vmul.f32 %v1628, %v1630
        %v1632 = vadd.f32 %v1628, %v1631
        %vm1633 = vweird.f32 %v1552
        %vm1634 = vweird.f32 %v1628
        %vm1635 = vmor %vm1633, %vm1634
        %v1636 = vsel %vm1635, %v1628, %v1632
        %v1637 = vand.u32 2147483647, %v1552
        %vm1638 = vcmp.eq.f32.partialorder %v1637, 8.507059e+37
        %v1639 = vand.u32 %v1552, 2147483648
        %v1640 = vor.u32 1.1754944e-38, %v1639
        %v1641 = vsel %vm1638, %v1640, %v1636
        %v1642 = vmul.f32 1.0, %v1641
        %v1643 = vmul.f32 %v1527, %v1567
        %v1644 = vmul.f32 %v1528, %v1612
        %v1645 = vmul.f32 %v1445, %v1582
        %v1646 = vmul.f32 %v1446, %v1627
        %v1647 = vadd.f32 %v1643, %v1645
        %v1648 = vadd.f32 %v1644, %v1646
        %v1649 = vtanh.pop %v1647
        %v1650 = vtanh.pop %v1648
        %v1651 = vmul.f32 %v1649, %v1597
        %v1652 = vmul.f32 %v1650, %v1642
        %s1653 = scalar_lea.vmem [#allocation3], 16
        %1654 = vst [vmem:[%s1653] sm:$0xff] %v1651
        %1655 = vst [vmem:[%s1653 + $0x8] sm:$0xff] %v1652
        %s1656 = scalar_lea.vmem [#allocation2], 128
        %v1657 = vld [vmem:[%s1656] sm:$0xff]
        %v1658 = vld [vmem:[%s1656 + $0x8] sm:$0xff]
        %v1659 = vld [vmem:[%s1656 + $0x10] sm:$0xff]
        %v1660 = vld [vmem:[%s1656 + $0x18] sm:$0xff]
        %v1661 = vld [vmem:[%s1656 + $0x20] sm:$0xff]
        %v1662 = vld [vmem:[%s1656 + $0x28] sm:$0xff]
        %v1663 = vld [vmem:[%s1656 + $0x30] sm:$0xff]
        %v1664 = vld [vmem:[%s1656 + $0x38] sm:$0xff]
        %v1665 = vpack.c.bf16 %v1652, %v1651
        %1666 = vmatpush.bf16.msra.mxu0 %v1225
        %1667 = vmatpush.bf16.msra.mxu0 %v1221
        %1668 = vmatpush.bf16.msra.mxu0 %v1217
        %1669 = vmatpush.bf16.msra.mxu0 %v1213
        %1670 = vmatpush.bf16.msra.mxu0 %v1209
        %1671 = vmatpush.bf16.msra.mxu0 %v1205
        %1672 = vmatpush.bf16.msra.mxu0 %v1201
        %1673 = vmatpush.bf16.msra.mxu0 %v1197
        %1674 = vmatmul.bf16.gmra.mxu0 %v1665
        %v1675 = vpop.f32.mrf.mxu0
        %v1676 = vadd.f32 0.0, %v1675
        %v1677 = vpop.f32.mrf.mxu0
        %v1678 = vadd.f32 0.0, %v1677
        %1679 = vdwg.mxu0
        %1680 = vmatpush.bf16.msra.mxu0 %v1226
        %1681 = vmatpush.bf16.msra.mxu0 %v1222
        %1682 = vmatpush.bf16.msra.mxu0 %v1218
        %1683 = vmatpush.bf16.msra.mxu0 %v1214
        %1684 = vmatpush.bf16.msra.mxu0 %v1210
        %1685 = vmatpush.bf16.msra.mxu0 %v1206
        %1686 = vmatpush.bf16.msra.mxu0 %v1202
        %1687 = vmatpush.bf16.msra.mxu0 %v1198
        %1688 = vmatmul.bf16.gmra.mxu0 %v1665
        %v1689 = vpop.f32.mrf.mxu0
        %v1690 = vadd.f32 0.0, %v1689
        %v1691 = vpop.f32.mrf.mxu0
        %v1692 = vadd.f32 0.0, %v1691
        %1693 = vdwg.mxu0
        %1694 = vmatpush.bf16.msra.mxu0 %v1227
        %1695 = vmatpush.bf16.msra.mxu0 %v1223
        %1696 = vmatpush.bf16.msra.mxu0 %v1219
        %1697 = vmatpush.bf16.msra.mxu0 %v1215
        %1698 = vmatpush.bf16.msra.mxu0 %v1211
        %1699 = vmatpush.bf16.msra.mxu0 %v1207
        %1700 = vmatpush.bf16.msra.mxu0 %v1203
        %1701 = vmatpush.bf16.msra.mxu0 %v1199
        %1702 = vmatmul.bf16.gmra.mxu0 %v1665
        %v1703 = vpop.f32.mrf.mxu0
        %v1704 = vadd.f32 0.0, %v1703
        %v1705 = vpop.f32.mrf.mxu0
        %v1706 = vadd.f32 0.0, %v1705
        %1707 = vdwg.mxu0
        %1708 = vmatpush.bf16.msra.mxu0 %v1228
        %1709 = vmatpush.bf16.msra.mxu0 %v1224
        %1710 = vmatpush.bf16.msra.mxu0 %v1220
        %1711 = vmatpush.bf16.msra.mxu0 %v1216
        %1712 = vmatpush.bf16.msra.mxu0 %v1212
        %1713 = vmatpush.bf16.msra.mxu0 %v1208
        %1714 = vmatpush.bf16.msra.mxu0 %v1204
        %1715 = vmatpush.bf16.msra.mxu0 %v1200
        %1716 = vmatmul.bf16.gmra.mxu0 %v1665
        %v1717 = vpop.f32.mrf.mxu0
        %v1718 = vadd.f32 0.0, %v1717
        %v1719 = vpop.f32.mrf.mxu0
        %v1720 = vadd.f32 0.0, %v1719
        %1721 = vdwg.mxu0
        %v1722 = vadd.f32 %v1657, %v1676
        %v1723 = vadd.f32 %v1658, %v1690
        %v1724 = vadd.f32 %v1659, %v1704
        %v1725 = vadd.f32 %v1660, %v1718
        %v1726 = vadd.f32 %v1661, %v1678
        %v1727 = vadd.f32 %v1662, %v1692
        %v1728 = vadd.f32 %v1663, %v1706
        %v1729 = vadd.f32 %v1664, %v1720
        %v1730 = vtanh.pop %v1722
        %v1731 = vtanh.pop %v1726
        %v1732 = vxor.u32 %v1723, 2147483648
        %v1733 = vxor.u32 %v1724, 2147483648
        %v1734 = vxor.u32 %v1725, 2147483648
        %v1735 = vxor.u32 %v1727, 2147483648
        %v1736 = vxor.u32 %v1728, 2147483648
        %v1737 = vxor.u32 %v1729, 2147483648
        %v1738 = vmul.f32 %v1732, 1.442695
        %v1739 = vpow.pop %v1738
        %v1740 = vmul.f32 %v1733, 1.442695
        %v1741 = vpow.pop %v1740
        %v1742 = vmul.f32 %v1734, 1.442695
        %v1743 = vpow.pop %v1742
        %v1744 = vmul.f32 %v1735, 1.442695
        %v1745 = vpow.pop %v1744
        %v1746 = vmul.f32 %v1736, 1.442695
        %v1747 = vpow.pop %v1746
        %v1748 = vmul.f32 %v1737, 1.442695
        %v1749 = vpow.pop %v1748
        %v1750 = vadd.f32 %v1739, 1.0
        %v1751 = vadd.f32 %v1741, 1.0
        %v1752 = vadd.f32 %v1743, 1.0
        %v1753 = vadd.f32 %v1745, 1.0
        %v1754 = vadd.f32 %v1747, 1.0
        %v1755 = vadd.f32 %v1749, 1.0
        %v1756 = vrcp.pop %v1750
        %v1757 = vmul.f32 %v1750, %v1756
        %v1758 = vsub.f32 1.0, %v1757
        %v1759 = vmul.f32 %v1756, %v1758
        %v1760 = vadd.f32 %v1756, %v1759
        %vm1761 = vweird.f32 %v1750
        %vm1762 = vweird.f32 %v1756
        %vm1763 = vmor %vm1761, %vm1762
        %v1764 = vsel %vm1763, %v1756, %v1760
        %v1765 = vand.u32 2147483647, %v1750
        %vm1766 = vcmp.eq.f32.partialorder %v1765, 8.507059e+37
        %v1767 = vand.u32 %v1750, 2147483648
        %v1768 = vor.u32 1.1754944e-38, %v1767
        %v1769 = vsel %vm1766, %v1768, %v1764
        %v1770 = vmul.f32 1.0, %v1769
        %v1771 = vrcp.pop %v1751
        %v1772 = vmul.f32 %v1751, %v1771
        %v1773 = vsub.f32 1.0, %v1772
        %v1774 = vmul.f32 %v1771, %v1773
        %v1775 = vadd.f32 %v1771, %v1774
        %vm1776 = vweird.f32 %v1751
        %vm1777 = vweird.f32 %v1771
        %vm1778 = vmor %vm1776, %vm1777
        %v1779 = vsel %vm1778, %v1771, %v1775
        %v1780 = vand.u32 2147483647, %v1751
        %vm1781 = vcmp.eq.f32.partialorder %v1780, 8.507059e+37
        %v1782 = vand.u32 %v1751, 2147483648
        %v1783 = vor.u32 1.1754944e-38, %v1782
        %v1784 = vsel %vm1781, %v1783, %v1779
        %v1785 = vmul.f32 1.0, %v1784
        %v1786 = vrcp.pop %v1752
        %v1787 = vmul.f32 %v1752, %v1786
        %v1788 = vsub.f32 1.0, %v1787
        %v1789 = vmul.f32 %v1786, %v1788
        %v1790 = vadd.f32 %v1786, %v1789
        %vm1791 = vweird.f32 %v1752
        %vm1792 = vweird.f32 %v1786
        %vm1793 = vmor %vm1791, %vm1792
        %v1794 = vsel %vm1793, %v1786, %v1790
        %v1795 = vand.u32 2147483647, %v1752
        %vm1796 = vcmp.eq.f32.partialorder %v1795, 8.507059e+37
        %v1797 = vand.u32 %v1752, 2147483648
        %v1798 = vor.u32 1.1754944e-38, %v1797
        %v1799 = vsel %vm1796, %v1798, %v1794
        %v1800 = vmul.f32 1.0, %v1799
        %v1801 = vrcp.pop %v1753
        %v1802 = vmul.f32 %v1753, %v1801
        %v1803 = vsub.f32 1.0, %v1802
        %v1804 = vmul.f32 %v1801, %v1803
        %v1805 = vadd.f32 %v1801, %v1804
        %vm1806 = vweird.f32 %v1753
        %vm1807 = vweird.f32 %v1801
        %vm1808 = vmor %vm1806, %vm1807
        %v1809 = vsel %vm1808, %v1801, %v1805
        %v1810 = vand.u32 2147483647, %v1753
        %vm1811 = vcmp.eq.f32.partialorder %v1810, 8.507059e+37
        %v1812 = vand.u32 %v1753, 2147483648
        %v1813 = vor.u32 1.1754944e-38, %v1812
        %v1814 = vsel %vm1811, %v1813, %v1809
        %v1815 = vmul.f32 1.0, %v1814
        %v1816 = vrcp.pop %v1754
        %v1817 = vmul.f32 %v1754, %v1816
        %v1818 = vsub.f32 1.0, %v1817
        %v1819 = vmul.f32 %v1816, %v1818
        %v1820 = vadd.f32 %v1816, %v1819
        %vm1821 = vweird.f32 %v1754
        %vm1822 = vweird.f32 %v1816
        %vm1823 = vmor %vm1821, %vm1822
        %v1824 = vsel %vm1823, %v1816, %v1820
        %v1825 = vand.u32 2147483647, %v1754
        %vm1826 = vcmp.eq.f32.partialorder %v1825, 8.507059e+37
        %v1827 = vand.u32 %v1754, 2147483648
        %v1828 = vor.u32 1.1754944e-38, %v1827
        %v1829 = vsel %vm1826, %v1828, %v1824
        %v1830 = vmul.f32 1.0, %v1829
        %v1831 = vrcp.pop %v1755
        %v1832 = vmul.f32 %v1755, %v1831
        %v1833 = vsub.f32 1.0, %v1832
        %v1834 = vmul.f32 %v1831, %v1833
        %v1835 = vadd.f32 %v1831, %v1834
        %vm1836 = vweird.f32 %v1755
        %vm1837 = vweird.f32 %v1831
        %vm1838 = vmor %vm1836, %vm1837
        %v1839 = vsel %vm1838, %v1831, %v1835
        %v1840 = vand.u32 2147483647, %v1755
        %vm1841 = vcmp.eq.f32.partialorder %v1840, 8.507059e+37
        %v1842 = vand.u32 %v1755, 2147483648
        %v1843 = vor.u32 1.1754944e-38, %v1842
        %v1844 = vsel %vm1841, %v1843, %v1839
        %v1845 = vmul.f32 1.0, %v1844
        %v1846 = vmul.f32 %v1730, %v1770
        %v1847 = vmul.f32 %v1731, %v1815
        %v1848 = vmul.f32 %v1647, %v1785
        %v1849 = vmul.f32 %v1648, %v1830
        %v1850 = vadd.f32 %v1846, %v1848
        %v1851 = vadd.f32 %v1847, %v1849
        %v1852 = vtanh.pop %v1850
        %v1853 = vtanh.pop %v1851
        %v1854 = vmul.f32 %v1852, %v1800
        %v1855 = vmul.f32 %v1853, %v1845
        %s1856 = scalar_lea.vmem [#allocation3], 32
        %1857 = vst [vmem:[%s1856] sm:$0xff] %v1854
        %1858 = vst [vmem:[%s1856 + $0x8] sm:$0xff] %v1855
        %s1859 = scalar_lea.vmem [#allocation2], 192
        %v1860 = vld [vmem:[%s1859] sm:$0xff]
        %v1861 = vld [vmem:[%s1859 + $0x8] sm:$0xff]
        %v1862 = vld [vmem:[%s1859 + $0x10] sm:$0xff]
        %v1863 = vld [vmem:[%s1859 + $0x18] sm:$0xff]
        %v1864 = vld [vmem:[%s1859 + $0x20] sm:$0xff]
        %v1865 = vld [vmem:[%s1859 + $0x28] sm:$0xff]
        %v1866 = vld [vmem:[%s1859 + $0x30] sm:$0xff]
        %v1867 = vld [vmem:[%s1859 + $0x38] sm:$0xff]
        %v1868 = vpack.c.bf16 %v1855, %v1854
        %1869 = vmatpush.bf16.msra.mxu0 %v1225
        %1870 = vmatpush.bf16.msra.mxu0 %v1221
        %1871 = vmatpush.bf16.msra.mxu0 %v1217
        %1872 = vmatpush.bf16.msra.mxu0 %v1213
        %1873 = vmatpush.bf16.msra.mxu0 %v1209
        %1874 = vmatpush.bf16.msra.mxu0 %v1205
        %1875 = vmatpush.bf16.msra.mxu0 %v1201
        %1876 = vmatpush.bf16.msra.mxu0 %v1197
        %1877 = vmatmul.bf16.gmra.mxu0 %v1868
        %v1878 = vpop.f32.mrf.mxu0
        %v1879 = vadd.f32 0.0, %v1878
        %v1880 = vpop.f32.mrf.mxu0
        %v1881 = vadd.f32 0.0, %v1880
        %1882 = vdwg.mxu0
        %1883 = vmatpush.bf16.msra.mxu0 %v1226
        %1884 = vmatpush.bf16.msra.mxu0 %v1222
        %1885 = vmatpush.bf16.msra.mxu0 %v1218
        %1886 = vmatpush.bf16.msra.mxu0 %v1214
        %1887 = vmatpush.bf16.msra.mxu0 %v1210
        %1888 = vmatpush.bf16.msra.mxu0 %v1206
        %1889 = vmatpush.bf16.msra.mxu0 %v1202
        %1890 = vmatpush.bf16.msra.mxu0 %v1198
        %1891 = vmatmul.bf16.gmra.mxu0 %v1868
        %v1892 = vpop.f32.mrf.mxu0
        %v1893 = vadd.f32 0.0, %v1892
        %v1894 = vpop.f32.mrf.mxu0
        %v1895 = vadd.f32 0.0, %v1894
        %1896 = vdwg.mxu0
        %1897 = vmatpush.bf16.msra.mxu0 %v1227
        %1898 = vmatpush.bf16.msra.mxu0 %v1223
        %1899 = vmatpush.bf16.msra.mxu0 %v1219
        %1900 = vmatpush.bf16.msra.mxu0 %v1215
        %1901 = vmatpush.bf16.msra.mxu0 %v1211
        %1902 = vmatpush.bf16.msra.mxu0 %v1207
        %1903 = vmatpush.bf16.msra.mxu0 %v1203
        %1904 = vmatpush.bf16.msra.mxu0 %v1199
        %1905 = vmatmul.bf16.gmra.mxu0 %v1868
        %v1906 = vpop.f32.mrf.mxu0
        %v1907 = vadd.f32 0.0, %v1906
        %v1908 = vpop.f32.mrf.mxu0
        %v1909 = vadd.f32 0.0, %v1908
        %1910 = vdwg.mxu0
        %1911 = vmatpush.bf16.msra.mxu0 %v1228
        %1912 = vmatpush.bf16.msra.mxu0 %v1224
        %1913 = vmatpush.bf16.msra.mxu0 %v1220
        %1914 = vmatpush.bf16.msra.mxu0 %v1216
        %1915 = vmatpush.bf16.msra.mxu0 %v1212
        %1916 = vmatpush.bf16.msra.mxu0 %v1208
        %1917 = vmatpush.bf16.msra.mxu0 %v1204
        %1918 = vmatpush.bf16.msra.mxu0 %v1200
        %1919 = vmatmul.bf16.gmra.mxu0 %v1868
        %v1920 = vpop.f32.mrf.mxu0
        %v1921 = vadd.f32 0.0, %v1920
        %v1922 = vpop.f32.mrf.mxu0
        %v1923 = vadd.f32 0.0, %v1922
        %1924 = vdwg.mxu0
        %v1925 = vadd.f32 %v1860, %v1879
        %v1926 = vadd.f32 %v1861, %v1893
        %v1927 = vadd.f32 %v1862, %v1907
        %v1928 = vadd.f32 %v1863, %v1921
        %v1929 = vadd.f32 %v1864, %v1881
        %v1930 = vadd.f32 %v1865, %v1895
        %v1931 = vadd.f32 %v1866, %v1909
        %v1932 = vadd.f32 %v1867, %v1923
        %v1933 = vtanh.pop %v1925
        %v1934 = vtanh.pop %v1929
        %v1935 = vxor.u32 %v1926, 2147483648
        %v1936 = vxor.u32 %v1927, 2147483648
        %v1937 = vxor.u32 %v1928, 2147483648
        %v1938 = vxor.u32 %v1930, 2147483648
        %v1939 = vxor.u32 %v1931, 2147483648
        %v1940 = vxor.u32 %v1932, 2147483648
        %v1941 = vmul.f32 %v1935, 1.442695
        %v1942 = vpow.pop %v1941
        %v1943 = vmul.f32 %v1936, 1.442695
        %v1944 = vpow.pop %v1943
        %v1945 = vmul.f32 %v1937, 1.442695
        %v1946 = vpow.pop %v1945
        %v1947 = vmul.f32 %v1938, 1.442695
        %v1948 = vpow.pop %v1947
        %v1949 = vmul.f32 %v1939, 1.442695
        %v1950 = vpow.pop %v1949
        %v1951 = vmul.f32 %v1940, 1.442695
        %v1952 = vpow.pop %v1951
        %v1953 = vadd.f32 %v1942, 1.0
        %v1954 = vadd.f32 %v1944, 1.0
        %v1955 = vadd.f32 %v1946, 1.0
        %v1956 = vadd.f32 %v1948, 1.0
        %v1957 = vadd.f32 %v1950, 1.0
        %v1958 = vadd.f32 %v1952, 1.0
        %v1959 = vrcp.pop %v1953
        %v1960 = vmul.f32 %v1953, %v1959
        %v1961 = vsub.f32 1.0, %v1960
        %v1962 = vmul.f32 %v1959, %v1961
        %v1963 = vadd.f32 %v1959, %v1962
        %vm1964 = vweird.f32 %v1953
        %vm1965 = vweird.f32 %v1959
        %vm1966 = vmor %vm1964, %vm1965
        %v1967 = vsel %vm1966, %v1959, %v1963
        %v1968 = vand.u32 2147483647, %v1953
        %vm1969 = vcmp.eq.f32.partialorder %v1968, 8.507059e+37
        %v1970 = vand.u32 %v1953, 2147483648
        %v1971 = vor.u32 1.1754944e-38, %v1970
        %v1972 = vsel %vm1969, %v1971, %v1967
        %v1973 = vmul.f32 1.0, %v1972
        %v1974 = vrcp.pop %v1954
        %v1975 = vmul.f32 %v1954, %v1974
        %v1976 = vsub.f32 1.0, %v1975
        %v1977 = vmul.f32 %v1974, %v1976
        %v1978 = vadd.f32 %v1974, %v1977
        %vm1979 = vweird.f32 %v1954
        %vm1980 = vweird.f32 %v1974
        %vm1981 = vmor %vm1979, %vm1980
        %v1982 = vsel %vm1981, %v1974, %v1978
        %v1983 = vand.u32 2147483647, %v1954
        %vm1984 = vcmp.eq.f32.partialorder %v1983, 8.507059e+37
        %v1985 = vand.u32 %v1954, 2147483648
        %v1986 = vor.u32 1.1754944e-38, %v1985
        %v1987 = vsel %vm1984, %v1986, %v1982
        %v1988 = vmul.f32 1.0, %v1987
        %v1989 = vrcp.pop %v1955
        %v1990 = vmul.f32 %v1955, %v1989
        %v1991 = vsub.f32 1.0, %v1990
        %v1992 = vmul.f32 %v1989, %v1991
        %v1993 = vadd.f32 %v1989, %v1992
        %vm1994 = vweird.f32 %v1955
        %vm1995 = vweird.f32 %v1989
        %vm1996 = vmor %vm1994, %vm1995
        %v1997 = vsel %vm1996, %v1989, %v1993
        %v1998 = vand.u32 2147483647, %v1955
        %vm1999 = vcmp.eq.f32.partialorder %v1998, 8.507059e+37
        %v2000 = vand.u32 %v1955, 2147483648
        %v2001 = vor.u32 1.1754944e-38, %v2000
        %v2002 = vsel %vm1999, %v2001, %v1997
        %v2003 = vmul.f32 1.0, %v2002
        %v2004 = vrcp.pop %v1956
        %v2005 = vmul.f32 %v1956, %v2004
        %v2006 = vsub.f32 1.0, %v2005
        %v2007 = vmul.f32 %v2004, %v2006
        %v2008 = vadd.f32 %v2004, %v2007
        %vm2009 = vweird.f32 %v1956
        %vm2010 = vweird.f32 %v2004
        %vm2011 = vmor %vm2009, %vm2010
        %v2012 = vsel %vm2011, %v2004, %v2008
        %v2013 = vand.u32 2147483647, %v1956
        %vm2014 = vcmp.eq.f32.partialorder %v2013, 8.507059e+37
        %v2015 = vand.u32 %v1956, 2147483648
        %v2016 = vor.u32 1.1754944e-38, %v2015
        %v2017 = vsel %vm2014, %v2016, %v2012
        %v2018 = vmul.f32 1.0, %v2017
        %v2019 = vrcp.pop %v1957
        %v2020 = vmul.f32 %v1957, %v2019
        %v2021 = vsub.f32 1.0, %v2020
        %v2022 = vmul.f32 %v2019, %v2021
        %v2023 = vadd.f32 %v2019, %v2022
        %vm2024 = vweird.f32 %v1957
        %vm2025 = vweird.f32 %v2019
        %vm2026 = vmor %vm2024, %vm2025
        %v2027 = vsel %vm2026, %v2019, %v2023
        %v2028 = vand.u32 2147483647, %v1957
        %vm2029 = vcmp.eq.f32.partialorder %v2028, 8.507059e+37
        %v2030 = vand.u32 %v1957, 2147483648
        %v2031 = vor.u32 1.1754944e-38, %v2030
        %v2032 = vsel %vm2029, %v2031, %v2027
        %v2033 = vmul.f32 1.0, %v2032
        %v2034 = vrcp.pop %v1958
        %v2035 = vmul.f32 %v1958, %v2034
        %v2036 = vsub.f32 1.0, %v2035
        %v2037 = vmul.f32 %v2034, %v2036
        %v2038 = vadd.f32 %v2034, %v2037
        %vm2039 = vweird.f32 %v1958
        %vm2040 = vweird.f32 %v2034
        %vm2041 = vmor %vm2039, %vm2040
        %v2042 = vsel %vm2041, %v2034, %v2038
        %v2043 = vand.u32 2147483647, %v1958
        %vm2044 = vcmp.eq.f32.partialorder %v2043, 8.507059e+37
        %v2045 = vand.u32 %v1958, 2147483648
        %v2046 = vor.u32 1.1754944e-38, %v2045
        %v2047 = vsel %vm2044, %v2046, %v2042
        %v2048 = vmul.f32 1.0, %v2047
        %v2049 = vmul.f32 %v1933, %v1973
        %v2050 = vmul.f32 %v1934, %v2018
        %v2051 = vmul.f32 %v1850, %v1988
        %v2052 = vmul.f32 %v1851, %v2033
        %v2053 = vadd.f32 %v2049, %v2051
        %v2054 = vadd.f32 %v2050, %v2052
        %v2055 = vtanh.pop %v2053
        %v2056 = vtanh.pop %v2054
        %v2057 = vmul.f32 %v2055, %v2003
        %v2058 = vmul.f32 %v2056, %v2048
        %s2059 = scalar_lea.vmem [#allocation3], 48
        %2060 = vst [vmem:[%s2059] sm:$0xff] %v2057
        %2061 = vst [vmem:[%s2059 + $0x8] sm:$0xff] %v2058
        %s2062 = scalar_lea.vmem [#allocation2], 256
        %v2063 = vld [vmem:[%s2062] sm:$0xff]
        %v2064 = vld [vmem:[%s2062 + $0x8] sm:$0xff]
        %v2065 = vld [vmem:[%s2062 + $0x10] sm:$0xff]
        %v2066 = vld [vmem:[%s2062 + $0x18] sm:$0xff]
        %v2067 = vld [vmem:[%s2062 + $0x20] sm:$0xff]
        %v2068 = vld [vmem:[%s2062 + $0x28] sm:$0xff]
        %v2069 = vld [vmem:[%s2062 + $0x30] sm:$0xff]
        %v2070 = vld [vmem:[%s2062 + $0x38] sm:$0xff]
        %v2071 = vpack.c.bf16 %v2058, %v2057
        %2072 = vmatpush.bf16.msra.mxu0 %v1225
        %2073 = vmatpush.bf16.msra.mxu0 %v1221
        %2074 = vmatpush.bf16.msra.mxu0 %v1217
        %2075 = vmatpush.bf16.msra.mxu0 %v1213
        %2076 = vmatpush.bf16.msra.mxu0 %v1209
        %2077 = vmatpush.bf16.msra.mxu0 %v1205
        %2078 = vmatpush.bf16.msra.mxu0 %v1201
        %2079 = vmatpush.bf16.msra.mxu0 %v1197
        %2080 = vmatmul.bf16.gmra.mxu0 %v2071
        %v2081 = vpop.f32.mrf.mxu0
        %v2082 = vadd.f32 0.0, %v2081
        %v2083 = vpop.f32.mrf.mxu0
        %v2084 = vadd.f32 0.0, %v2083
        %2085 = vdwg.mxu0
        %2086 = vmatpush.bf16.msra.mxu0 %v1226
        %2087 = vmatpush.bf16.msra.mxu0 %v1222
        %2088 = vmatpush.bf16.msra.mxu0 %v1218
        %2089 = vmatpush.bf16.msra.mxu0 %v1214
        %2090 = vmatpush.bf16.msra.mxu0 %v1210
        %2091 = vmatpush.bf16.msra.mxu0 %v1206
        %2092 = vmatpush.bf16.msra.mxu0 %v1202
        %2093 = vmatpush.bf16.msra.mxu0 %v1198
        %2094 = vmatmul.bf16.gmra.mxu0 %v2071
        %v2095 = vpop.f32.mrf.mxu0
        %v2096 = vadd.f32 0.0, %v2095
        %v2097 = vpop.f32.mrf.mxu0
        %v2098 = vadd.f32 0.0, %v2097
        %2099 = vdwg.mxu0
        %2100 = vmatpush.bf16.msra.mxu0 %v1227
        %2101 = vmatpush.bf16.msra.mxu0 %v1223
        %2102 = vmatpush.bf16.msra.mxu0 %v1219
        %2103 = vmatpush.bf16.msra.mxu0 %v1215
        %2104 = vmatpush.bf16.msra.mxu0 %v1211
        %2105 = vmatpush.bf16.msra.mxu0 %v1207
        %2106 = vmatpush.bf16.msra.mxu0 %v1203
        %2107 = vmatpush.bf16.msra.mxu0 %v1199
        %2108 = vmatmul.bf16.gmra.mxu0 %v2071
        %v2109 = vpop.f32.mrf.mxu0
        %v2110 = vadd.f32 0.0, %v2109
        %v2111 = vpop.f32.mrf.mxu0
        %v2112 = vadd.f32 0.0, %v2111
        %2113 = vdwg.mxu0
        %2114 = vmatpush.bf16.msra.mxu0 %v1228
        %2115 = vmatpush.bf16.msra.mxu0 %v1224
        %2116 = vmatpush.bf16.msra.mxu0 %v1220
        %2117 = vmatpush.bf16.msra.mxu0 %v1216
        %2118 = vmatpush.bf16.msra.mxu0 %v1212
        %2119 = vmatpush.bf16.msra.mxu0 %v1208
        %2120 = vmatpush.bf16.msra.mxu0 %v1204
        %2121 = vmatpush.bf16.msra.mxu0 %v1200
        %2122 = vmatmul.bf16.gmra.mxu0 %v2071
        %v2123 = vpop.f32.mrf.mxu0
        %v2124 = vadd.f32 0.0, %v2123
        %v2125 = vpop.f32.mrf.mxu0
        %v2126 = vadd.f32 0.0, %v2125
        %2127 = vdwg.mxu0
        %v2128 = vadd.f32 %v2063, %v2082
        %v2129 = vadd.f32 %v2064, %v2096
        %v2130 = vadd.f32 %v2065, %v2110
        %v2131 = vadd.f32 %v2066, %v2124
        %v2132 = vadd.f32 %v2067, %v2084
        %v2133 = vadd.f32 %v2068, %v2098
        %v2134 = vadd.f32 %v2069, %v2112
        %v2135 = vadd.f32 %v2070, %v2126
        %v2136 = vtanh.pop %v2128
        %v2137 = vtanh.pop %v2132
        %v2138 = vxor.u32 %v2129, 2147483648
        %v2139 = vxor.u32 %v2130, 2147483648
        %v2140 = vxor.u32 %v2131, 2147483648
        %v2141 = vxor.u32 %v2133, 2147483648
        %v2142 = vxor.u32 %v2134, 2147483648
        %v2143 = vxor.u32 %v2135, 2147483648
        %v2144 = vmul.f32 %v2138, 1.442695
        %v2145 = vpow.pop %v2144
        %v2146 = vmul.f32 %v2139, 1.442695
        %v2147 = vpow.pop %v2146
        %v2148 = vmul.f32 %v2140, 1.442695
        %v2149 = vpow.pop %v2148
        %v2150 = vmul.f32 %v2141, 1.442695
        %v2151 = vpow.pop %v2150
        %v2152 = vmul.f32 %v2142, 1.442695
        %v2153 = vpow.pop %v2152
        %v2154 = vmul.f32 %v2143, 1.442695
        %v2155 = vpow.pop %v2154
        %v2156 = vadd.f32 %v2145, 1.0
        %v2157 = vadd.f32 %v2147, 1.0
        %v2158 = vadd.f32 %v2149, 1.0
        %v2159 = vadd.f32 %v2151, 1.0
        %v2160 = vadd.f32 %v2153, 1.0
        %v2161 = vadd.f32 %v2155, 1.0
        %v2162 = vrcp.pop %v2156
        %v2163 = vmul.f32 %v2156, %v2162
        %v2164 = vsub.f32 1.0, %v2163
        %v2165 = vmul.f32 %v2162, %v2164
        %v2166 = vadd.f32 %v2162, %v2165
        %vm2167 = vweird.f32 %v2156
        %vm2168 = vweird.f32 %v2162
        %vm2169 = vmor %vm2167, %vm2168
        %v2170 = vsel %vm2169, %v2162, %v2166
        %v2171 = vand.u32 2147483647, %v2156
        %vm2172 = vcmp.eq.f32.partialorder %v2171, 8.507059e+37
        %v2173 = vand.u32 %v2156, 2147483648
        %v2174 = vor.u32 1.1754944e-38, %v2173
        %v2175 = vsel %vm2172, %v2174, %v2170
        %v2176 = vmul.f32 1.0, %v2175
        %v2177 = vrcp.pop %v2157
        %v2178 = vmul.f32 %v2157, %v2177
        %v2179 = vsub.f32 1.0, %v2178
        %v2180 = vmul.f32 %v2177, %v2179
        %v2181 = vadd.f32 %v2177, %v2180
        %vm2182 = vweird.f32 %v2157
        %vm2183 = vweird.f32 %v2177
        %vm2184 = vmor %vm2182, %vm2183
        %v2185 = vsel %vm2184, %v2177, %v2181
        %v2186 = vand.u32 2147483647, %v2157
        %vm2187 = vcmp.eq.f32.partialorder %v2186, 8.507059e+37
        %v2188 = vand.u32 %v2157, 2147483648
        %v2189 = vor.u32 1.1754944e-38, %v2188
        %v2190 = vsel %vm2187, %v2189, %v2185
        %v2191 = vmul.f32 1.0, %v2190
        %v2192 = vrcp.pop %v2158
        %v2193 = vmul.f32 %v2158, %v2192
        %v2194 = vsub.f32 1.0, %v2193
        %v2195 = vmul.f32 %v2192, %v2194
        %v2196 = vadd.f32 %v2192, %v2195
        %vm2197 = vweird.f32 %v2158
        %vm2198 = vweird.f32 %v2192
        %vm2199 = vmor %vm2197, %vm2198
        %v2200 = vsel %vm2199, %v2192, %v2196
        %v2201 = vand.u32 2147483647, %v2158
        %vm2202 = vcmp.eq.f32.partialorder %v2201, 8.507059e+37
        %v2203 = vand.u32 %v2158, 2147483648
        %v2204 = vor.u32 1.1754944e-38, %v2203
        %v2205 = vsel %vm2202, %v2204, %v2200
        %v2206 = vmul.f32 1.0, %v2205
        %v2207 = vrcp.pop %v2159
        %v2208 = vmul.f32 %v2159, %v2207
        %v2209 = vsub.f32 1.0, %v2208
        %v2210 = vmul.f32 %v2207, %v2209
        %v2211 = vadd.f32 %v2207, %v2210
        %vm2212 = vweird.f32 %v2159
        %vm2213 = vweird.f32 %v2207
        %vm2214 = vmor %vm2212, %vm2213
        %v2215 = vsel %vm2214, %v2207, %v2211
        %v2216 = vand.u32 2147483647, %v2159
        %vm2217 = vcmp.eq.f32.partialorder %v2216, 8.507059e+37
        %v2218 = vand.u32 %v2159, 2147483648
        %v2219 = vor.u32 1.1754944e-38, %v2218
        %v2220 = vsel %vm2217, %v2219, %v2215
        %v2221 = vmul.f32 1.0, %v2220
        %v2222 = vrcp.pop %v2160
        %v2223 = vmul.f32 %v2160, %v2222
        %v2224 = vsub.f32 1.0, %v2223
        %v2225 = vmul.f32 %v2222, %v2224
        %v2226 = vadd.f32 %v2222, %v2225
        %vm2227 = vweird.f32 %v2160
        %vm2228 = vweird.f32 %v2222
        %vm2229 = vmor %vm2227, %vm2228
        %v2230 = vsel %vm2229, %v2222, %v2226
        %v2231 = vand.u32 2147483647, %v2160
        %vm2232 = vcmp.eq.f32.partialorder %v2231, 8.507059e+37
        %v2233 = vand.u32 %v2160, 2147483648
        %v2234 = vor.u32 1.1754944e-38, %v2233
        %v2235 = vsel %vm2232, %v2234, %v2230
        %v2236 = vmul.f32 1.0, %v2235
        %v2237 = vrcp.pop %v2161
        %v2238 = vmul.f32 %v2161, %v2237
        %v2239 = vsub.f32 1.0, %v2238
        %v2240 = vmul.f32 %v2237, %v2239
        %v2241 = vadd.f32 %v2237, %v2240
        %vm2242 = vweird.f32 %v2161
        %vm2243 = vweird.f32 %v2237
        %vm2244 = vmor %vm2242, %vm2243
        %v2245 = vsel %vm2244, %v2237, %v2241
        %v2246 = vand.u32 2147483647, %v2161
        %vm2247 = vcmp.eq.f32.partialorder %v2246, 8.507059e+37
        %v2248 = vand.u32 %v2161, 2147483648
        %v2249 = vor.u32 1.1754944e-38, %v2248
        %v2250 = vsel %vm2247, %v2249, %v2245
        %v2251 = vmul.f32 1.0, %v2250
        %v2252 = vmul.f32 %v2136, %v2176
        %v2253 = vmul.f32 %v2137, %v2221
        %v2254 = vmul.f32 %v2053, %v2191
        %v2255 = vmul.f32 %v2054, %v2236
        %v2256 = vadd.f32 %v2252, %v2254
        %v2257 = vadd.f32 %v2253, %v2255
        %v2258 = vtanh.pop %v2256
        %v2259 = vtanh.pop %v2257
        %v2260 = vmul.f32 %v2258, %v2206
        %v2261 = vmul.f32 %v2259, %v2251
        %s2262 = scalar_lea.vmem [#allocation3], 64
        %2263 = vst [vmem:[%s2262] sm:$0xff] %v2260
        %2264 = vst [vmem:[%s2262 + $0x8] sm:$0xff] %v2261
        %s2265 = scalar_lea.vmem [#allocation2], 320
        %v2266 = vld [vmem:[%s2265] sm:$0xff]
        %v2267 = vld [vmem:[%s2265 + $0x8] sm:$0xff]
        %v2268 = vld [vmem:[%s2265 + $0x10] sm:$0xff]
        %v2269 = vld [vmem:[%s2265 + $0x18] sm:$0xff]
        %v2270 = vld [vmem:[%s2265 + $0x20] sm:$0xff]
        %v2271 = vld [vmem:[%s2265 + $0x28] sm:$0xff]
        %v2272 = vld [vmem:[%s2265 + $0x30] sm:$0xff]
        %v2273 = vld [vmem:[%s2265 + $0x38] sm:$0xff]
        %v2274 = vpack.c.bf16 %v2261, %v2260
        %2275 = vmatpush.bf16.msra.mxu0 %v1225
        %2276 = vmatpush.bf16.msra.mxu0 %v1221
        %2277 = vmatpush.bf16.msra.mxu0 %v1217
        %2278 = vmatpush.bf16.msra.mxu0 %v1213
        %2279 = vmatpush.bf16.msra.mxu0 %v1209
        %2280 = vmatpush.bf16.msra.mxu0 %v1205
        %2281 = vmatpush.bf16.msra.mxu0 %v1201
        %2282 = vmatpush.bf16.msra.mxu0 %v1197
        %2283 = vmatmul.bf16.gmra.mxu0 %v2274
        %v2284 = vpop.f32.mrf.mxu0
        %v2285 = vadd.f32 0.0, %v2284
        %v2286 = vpop.f32.mrf.mxu0
        %v2287 = vadd.f32 0.0, %v2286
        %2288 = vdwg.mxu0
        %2289 = vmatpush.bf16.msra.mxu0 %v1226
        %2290 = vmatpush.bf16.msra.mxu0 %v1222
        %2291 = vmatpush.bf16.msra.mxu0 %v1218
        %2292 = vmatpush.bf16.msra.mxu0 %v1214
        %2293 = vmatpush.bf16.msra.mxu0 %v1210
        %2294 = vmatpush.bf16.msra.mxu0 %v1206
        %2295 = vmatpush.bf16.msra.mxu0 %v1202
        %2296 = vmatpush.bf16.msra.mxu0 %v1198
        %2297 = vmatmul.bf16.gmra.mxu0 %v2274
        %v2298 = vpop.f32.mrf.mxu0
        %v2299 = vadd.f32 0.0, %v2298
        %v2300 = vpop.f32.mrf.mxu0
        %v2301 = vadd.f32 0.0, %v2300
        %2302 = vdwg.mxu0
        %2303 = vmatpush.bf16.msra.mxu0 %v1227
        %2304 = vmatpush.bf16.msra.mxu0 %v1223
        %2305 = vmatpush.bf16.msra.mxu0 %v1219
        %2306 = vmatpush.bf16.msra.mxu0 %v1215
        %2307 = vmatpush.bf16.msra.mxu0 %v1211
        %2308 = vmatpush.bf16.msra.mxu0 %v1207
        %2309 = vmatpush.bf16.msra.mxu0 %v1203
        %2310 = vmatpush.bf16.msra.mxu0 %v1199
        %2311 = vmatmul.bf16.gmra.mxu0 %v2274
        %v2312 = vpop.f32.mrf.mxu0
        %v2313 = vadd.f32 0.0, %v2312
        %v2314 = vpop.f32.mrf.mxu0
        %v2315 = vadd.f32 0.0, %v2314
        %2316 = vdwg.mxu0
        %2317 = vmatpush.bf16.msra.mxu0 %v1228
        %2318 = vmatpush.bf16.msra.mxu0 %v1224
        %2319 = vmatpush.bf16.msra.mxu0 %v1220
        %2320 = vmatpush.bf16.msra.mxu0 %v1216
        %2321 = vmatpush.bf16.msra.mxu0 %v1212
        %2322 = vmatpush.bf16.msra.mxu0 %v1208
        %2323 = vmatpush.bf16.msra.mxu0 %v1204
        %2324 = vmatpush.bf16.msra.mxu0 %v1200
        %2325 = vmatmul.bf16.gmra.mxu0 %v2274
        %v2326 = vpop.f32.mrf.mxu0
        %v2327 = vadd.f32 0.0, %v2326
        %v2328 = vpop.f32.mrf.mxu0
        %v2329 = vadd.f32 0.0, %v2328
        %2330 = vdwg.mxu0
        %v2331 = vadd.f32 %v2266, %v2285
        %v2332 = vadd.f32 %v2267, %v2299
        %v2333 = vadd.f32 %v2268, %v2313
        %v2334 = vadd.f32 %v2269, %v2327
        %v2335 = vadd.f32 %v2270, %v2287
        %v2336 = vadd.f32 %v2271, %v2301
        %v2337 = vadd.f32 %v2272, %v2315
        %v2338 = vadd.f32 %v2273, %v2329
        %v2339 = vtanh.pop %v2331
        %v2340 = vtanh.pop %v2335
        %v2341 = vxor.u32 %v2332, 2147483648
        %v2342 = vxor.u32 %v2333, 2147483648
        %v2343 = vxor.u32 %v2334, 2147483648
        %v2344 = vxor.u32 %v2336, 2147483648
        %v2345 = vxor.u32 %v2337, 2147483648
        %v2346 = vxor.u32 %v2338, 2147483648
        %v2347 = vmul.f32 %v2341, 1.442695
        %v2348 = vpow.pop %v2347
        %v2349 = vmul.f32 %v2342, 1.442695
        %v2350 = vpow.pop %v2349
        %v2351 = vmul.f32 %v2343, 1.442695
        %v2352 = vpow.pop %v2351
        %v2353 = vmul.f32 %v2344, 1.442695
        %v2354 = vpow.pop %v2353
        %v2355 = vmul.f32 %v2345, 1.442695
        %v2356 = vpow.pop %v2355
        %v2357 = vmul.f32 %v2346, 1.442695
        %v2358 = vpow.pop %v2357
        %v2359 = vadd.f32 %v2348, 1.0
        %v2360 = vadd.f32 %v2350, 1.0
        %v2361 = vadd.f32 %v2352, 1.0
        %v2362 = vadd.f32 %v2354, 1.0
        %v2363 = vadd.f32 %v2356, 1.0
        %v2364 = vadd.f32 %v2358, 1.0
        %v2365 = vrcp.pop %v2359
        %v2366 = vmul.f32 %v2359, %v2365
        %v2367 = vsub.f32 1.0, %v2366
        %v2368 = vmul.f32 %v2365, %v2367
        %v2369 = vadd.f32 %v2365, %v2368
        %vm2370 = vweird.f32 %v2359
        %vm2371 = vweird.f32 %v2365
        %vm2372 = vmor %vm2370, %vm2371
        %v2373 = vsel %vm2372, %v2365, %v2369
        %v2374 = vand.u32 2147483647, %v2359
        %vm2375 = vcmp.eq.f32.partialorder %v2374, 8.507059e+37
        %v2376 = vand.u32 %v2359, 2147483648
        %v2377 = vor.u32 1.1754944e-38, %v2376
        %v2378 = vsel %vm2375, %v2377, %v2373
        %v2379 = vmul.f32 1.0, %v2378
        %v2380 = vrcp.pop %v2360
        %v2381 = vmul.f32 %v2360, %v2380
        %v2382 = vsub.f32 1.0, %v2381
        %v2383 = vmul.f32 %v2380, %v2382
        %v2384 = vadd.f32 %v2380, %v2383
        %vm2385 = vweird.f32 %v2360
        %vm2386 = vweird.f32 %v2380
        %vm2387 = vmor %vm2385, %vm2386
        %v2388 = vsel %vm2387, %v2380, %v2384
        %v2389 = vand.u32 2147483647, %v2360
        %vm2390 = vcmp.eq.f32.partialorder %v2389, 8.507059e+37
        %v2391 = vand.u32 %v2360, 2147483648
        %v2392 = vor.u32 1.1754944e-38, %v2391
        %v2393 = vsel %vm2390, %v2392, %v2388
        %v2394 = vmul.f32 1.0, %v2393
        %v2395 = vrcp.pop %v2361
        %v2396 = vmul.f32 %v2361, %v2395
        %v2397 = vsub.f32 1.0, %v2396
        %v2398 = vmul.f32 %v2395, %v2397
        %v2399 = vadd.f32 %v2395, %v2398
        %vm2400 = vweird.f32 %v2361
        %vm2401 = vweird.f32 %v2395
        %vm2402 = vmor %vm2400, %vm2401
        %v2403 = vsel %vm2402, %v2395, %v2399
        %v2404 = vand.u32 2147483647, %v2361
        %vm2405 = vcmp.eq.f32.partialorder %v2404, 8.507059e+37
        %v2406 = vand.u32 %v2361, 2147483648
        %v2407 = vor.u32 1.1754944e-38, %v2406
        %v2408 = vsel %vm2405, %v2407, %v2403
        %v2409 = vmul.f32 1.0, %v2408
        %v2410 = vrcp.pop %v2362
        %v2411 = vmul.f32 %v2362, %v2410
        %v2412 = vsub.f32 1.0, %v2411
        %v2413 = vmul.f32 %v2410, %v2412
        %v2414 = vadd.f32 %v2410, %v2413
        %vm2415 = vweird.f32 %v2362
        %vm2416 = vweird.f32 %v2410
        %vm2417 = vmor %vm2415, %vm2416
        %v2418 = vsel %vm2417, %v2410, %v2414
        %v2419 = vand.u32 2147483647, %v2362
        %vm2420 = vcmp.eq.f32.partialorder %v2419, 8.507059e+37
        %v2421 = vand.u32 %v2362, 2147483648
        %v2422 = vor.u32 1.1754944e-38, %v2421
        %v2423 = vsel %vm2420, %v2422, %v2418
        %v2424 = vmul.f32 1.0, %v2423
        %v2425 = vrcp.pop %v2363
        %v2426 = vmul.f32 %v2363, %v2425
        %v2427 = vsub.f32 1.0, %v2426
        %v2428 = vmul.f32 %v2425, %v2427
        %v2429 = vadd.f32 %v2425, %v2428
        %vm2430 = vweird.f32 %v2363
        %vm2431 = vweird.f32 %v2425
        %vm2432 = vmor %vm2430, %vm2431
        %v2433 = vsel %vm2432, %v2425, %v2429
        %v2434 = vand.u32 2147483647, %v2363
        %vm2435 = vcmp.eq.f32.partialorder %v2434, 8.507059e+37
        %v2436 = vand.u32 %v2363, 2147483648
        %v2437 = vor.u32 1.1754944e-38, %v2436
        %v2438 = vsel %vm2435, %v2437, %v2433
        %v2439 = vmul.f32 1.0, %v2438
        %v2440 = vrcp.pop %v2364
        %v2441 = vmul.f32 %v2364, %v2440
        %v2442 = vsub.f32 1.0, %v2441
        %v2443 = vmul.f32 %v2440, %v2442
        %v2444 = vadd.f32 %v2440, %v2443
        %vm2445 = vweird.f32 %v2364
        %vm2446 = vweird.f32 %v2440
        %vm2447 = vmor %vm2445, %vm2446
        %v2448 = vsel %vm2447, %v2440, %v2444
        %v2449 = vand.u32 2147483647, %v2364
        %vm2450 = vcmp.eq.f32.partialorder %v2449, 8.507059e+37
        %v2451 = vand.u32 %v2364, 2147483648
        %v2452 = vor.u32 1.1754944e-38, %v2451
        %v2453 = vsel %vm2450, %v2452, %v2448
        %v2454 = vmul.f32 1.0, %v2453
        %v2455 = vmul.f32 %v2339, %v2379
        %v2456 = vmul.f32 %v2340, %v2424
        %v2457 = vmul.f32 %v2256, %v2394
        %v2458 = vmul.f32 %v2257, %v2439
        %v2459 = vadd.f32 %v2455, %v2457
        %v2460 = vadd.f32 %v2456, %v2458
        %v2461 = vtanh.pop %v2459
        %v2462 = vtanh.pop %v2460
        %v2463 = vmul.f32 %v2461, %v2409
        %v2464 = vmul.f32 %v2462, %v2454
        %s2465 = scalar_lea.vmem [#allocation3], 80
        %2466 = vst [vmem:[%s2465] sm:$0xff] %v2463
        %2467 = vst [vmem:[%s2465 + $0x8] sm:$0xff] %v2464
        %s2468 = scalar_lea.vmem [#allocation2], 384
        %v2469 = vld [vmem:[%s2468] sm:$0xff]
        %v2470 = vld [vmem:[%s2468 + $0x8] sm:$0xff]
        %v2471 = vld [vmem:[%s2468 + $0x10] sm:$0xff]
        %v2472 = vld [vmem:[%s2468 + $0x18] sm:$0xff]
        %v2473 = vld [vmem:[%s2468 + $0x20] sm:$0xff]
        %v2474 = vld [vmem:[%s2468 + $0x28] sm:$0xff]
        %v2475 = vld [vmem:[%s2468 + $0x30] sm:$0xff]
        %v2476 = vld [vmem:[%s2468 + $0x38] sm:$0xff]
        %v2477 = vpack.c.bf16 %v2464, %v2463
        %2478 = vmatpush.bf16.msra.mxu0 %v1225
        %2479 = vmatpush.bf16.msra.mxu0 %v1221
        %2480 = vmatpush.bf16.msra.mxu0 %v1217
        %2481 = vmatpush.bf16.msra.mxu0 %v1213
        %2482 = vmatpush.bf16.msra.mxu0 %v1209
        %2483 = vmatpush.bf16.msra.mxu0 %v1205
        %2484 = vmatpush.bf16.msra.mxu0 %v1201
        %2485 = vmatpush.bf16.msra.mxu0 %v1197
        %2486 = vmatmul.bf16.gmra.mxu0 %v2477
        %v2487 = vpop.f32.mrf.mxu0
        %v2488 = vadd.f32 0.0, %v2487
        %v2489 = vpop.f32.mrf.mxu0
        %v2490 = vadd.f32 0.0, %v2489
        %2491 = vdwg.mxu0
        %2492 = vmatpush.bf16.msra.mxu0 %v1226
        %2493 = vmatpush.bf16.msra.mxu0 %v1222
        %2494 = vmatpush.bf16.msra.mxu0 %v1218
        %2495 = vmatpush.bf16.msra.mxu0 %v1214
        %2496 = vmatpush.bf16.msra.mxu0 %v1210
        %2497 = vmatpush.bf16.msra.mxu0 %v1206
        %2498 = vmatpush.bf16.msra.mxu0 %v1202
        %2499 = vmatpush.bf16.msra.mxu0 %v1198
        %2500 = vmatmul.bf16.gmra.mxu0 %v2477
        %v2501 = vpop.f32.mrf.mxu0
        %v2502 = vadd.f32 0.0, %v2501
        %v2503 = vpop.f32.mrf.mxu0
        %v2504 = vadd.f32 0.0, %v2503
        %2505 = vdwg.mxu0
        %2506 = vmatpush.bf16.msra.mxu0 %v1227
        %2507 = vmatpush.bf16.msra.mxu0 %v1223
        %2508 = vmatpush.bf16.msra.mxu0 %v1219
        %2509 = vmatpush.bf16.msra.mxu0 %v1215
        %2510 = vmatpush.bf16.msra.mxu0 %v1211
        %2511 = vmatpush.bf16.msra.mxu0 %v1207
        %2512 = vmatpush.bf16.msra.mxu0 %v1203
        %2513 = vmatpush.bf16.msra.mxu0 %v1199
        %2514 = vmatmul.bf16.gmra.mxu0 %v2477
        %v2515 = vpop.f32.mrf.mxu0
        %v2516 = vadd.f32 0.0, %v2515
        %v2517 = vpop.f32.mrf.mxu0
        %v2518 = vadd.f32 0.0, %v2517
        %2519 = vdwg.mxu0
        %2520 = vmatpush.bf16.msra.mxu0 %v1228
        %2521 = vmatpush.bf16.msra.mxu0 %v1224
        %2522 = vmatpush.bf16.msra.mxu0 %v1220
        %2523 = vmatpush.bf16.msra.mxu0 %v1216
        %2524 = vmatpush.bf16.msra.mxu0 %v1212
        %2525 = vmatpush.bf16.msra.mxu0 %v1208
        %2526 = vmatpush.bf16.msra.mxu0 %v1204
        %2527 = vmatpush.bf16.msra.mxu0 %v1200
        %2528 = vmatmul.bf16.gmra.mxu0 %v2477
        %v2529 = vpop.f32.mrf.mxu0
        %v2530 = vadd.f32 0.0, %v2529
        %v2531 = vpop.f32.mrf.mxu0
        %v2532 = vadd.f32 0.0, %v2531
        %2533 = vdwg.mxu0
        %v2534 = vadd.f32 %v2469, %v2488
        %v2535 = vadd.f32 %v2470, %v2502
        %v2536 = vadd.f32 %v2471, %v2516
        %v2537 = vadd.f32 %v2472, %v2530
        %v2538 = vadd.f32 %v2473, %v2490
        %v2539 = vadd.f32 %v2474, %v2504
        %v2540 = vadd.f32 %v2475, %v2518
        %v2541 = vadd.f32 %v2476, %v2532
        %v2542 = vtanh.pop %v2534
        %v2543 = vtanh.pop %v2538
        %v2544 = vxor.u32 %v2535, 2147483648
        %v2545 = vxor.u32 %v2536, 2147483648
        %v2546 = vxor.u32 %v2537, 2147483648
        %v2547 = vxor.u32 %v2539, 2147483648
        %v2548 = vxor.u32 %v2540, 2147483648
        %v2549 = vxor.u32 %v2541, 2147483648
        %v2550 = vmul.f32 %v2544, 1.442695
        %v2551 = vpow.pop %v2550
        %v2552 = vmul.f32 %v2545, 1.442695
        %v2553 = vpow.pop %v2552
        %v2554 = vmul.f32 %v2546, 1.442695
        %v2555 = vpow.pop %v2554
        %v2556 = vmul.f32 %v2547, 1.442695
        %v2557 = vpow.pop %v2556
        %v2558 = vmul.f32 %v2548, 1.442695
        %v2559 = vpow.pop %v2558
        %v2560 = vmul.f32 %v2549, 1.442695
        %v2561 = vpow.pop %v2560
        %v2562 = vadd.f32 %v2551, 1.0
        %v2563 = vadd.f32 %v2553, 1.0
        %v2564 = vadd.f32 %v2555, 1.0
        %v2565 = vadd.f32 %v2557, 1.0
        %v2566 = vadd.f32 %v2559, 1.0
        %v2567 = vadd.f32 %v2561, 1.0
        %v2568 = vrcp.pop %v2562
        %v2569 = vmul.f32 %v2562, %v2568
        %v2570 = vsub.f32 1.0, %v2569
        %v2571 = vmul.f32 %v2568, %v2570
        %v2572 = vadd.f32 %v2568, %v2571
        %vm2573 = vweird.f32 %v2562
        %vm2574 = vweird.f32 %v2568
        %vm2575 = vmor %vm2573, %vm2574
        %v2576 = vsel %vm2575, %v2568, %v2572
        %v2577 = vand.u32 2147483647, %v2562
        %vm2578 = vcmp.eq.f32.partialorder %v2577, 8.507059e+37
        %v2579 = vand.u32 %v2562, 2147483648
        %v2580 = vor.u32 1.1754944e-38, %v2579
        %v2581 = vsel %vm2578, %v2580, %v2576
        %v2582 = vmul.f32 1.0, %v2581
        %v2583 = vrcp.pop %v2563
        %v2584 = vmul.f32 %v2563, %v2583
        %v2585 = vsub.f32 1.0, %v2584
        %v2586 = vmul.f32 %v2583, %v2585
        %v2587 = vadd.f32 %v2583, %v2586
        %vm2588 = vweird.f32 %v2563
        %vm2589 = vweird.f32 %v2583
        %vm2590 = vmor %vm2588, %vm2589
        %v2591 = vsel %vm2590, %v2583, %v2587
        %v2592 = vand.u32 2147483647, %v2563
        %vm2593 = vcmp.eq.f32.partialorder %v2592, 8.507059e+37
        %v2594 = vand.u32 %v2563, 2147483648
        %v2595 = vor.u32 1.1754944e-38, %v2594
        %v2596 = vsel %vm2593, %v2595, %v2591
        %v2597 = vmul.f32 1.0, %v2596
        %v2598 = vrcp.pop %v2564
        %v2599 = vmul.f32 %v2564, %v2598
        %v2600 = vsub.f32 1.0, %v2599
        %v2601 = vmul.f32 %v2598, %v2600
        %v2602 = vadd.f32 %v2598, %v2601
        %vm2603 = vweird.f32 %v2564
        %vm2604 = vweird.f32 %v2598
        %vm2605 = vmor %vm2603, %vm2604
        %v2606 = vsel %vm2605, %v2598, %v2602
        %v2607 = vand.u32 2147483647, %v2564
        %vm2608 = vcmp.eq.f32.partialorder %v2607, 8.507059e+37
        %v2609 = vand.u32 %v2564, 2147483648
        %v2610 = vor.u32 1.1754944e-38, %v2609
        %v2611 = vsel %vm2608, %v2610, %v2606
        %v2612 = vmul.f32 1.0, %v2611
        %v2613 = vrcp.pop %v2565
        %v2614 = vmul.f32 %v2565, %v2613
        %v2615 = vsub.f32 1.0, %v2614
        %v2616 = vmul.f32 %v2613, %v2615
        %v2617 = vadd.f32 %v2613, %v2616
        %vm2618 = vweird.f32 %v2565
        %vm2619 = vweird.f32 %v2613
        %vm2620 = vmor %vm2618, %vm2619
        %v2621 = vsel %vm2620, %v2613, %v2617
        %v2622 = vand.u32 2147483647, %v2565
        %vm2623 = vcmp.eq.f32.partialorder %v2622, 8.507059e+37
        %v2624 = vand.u32 %v2565, 2147483648
        %v2625 = vor.u32 1.1754944e-38, %v2624
        %v2626 = vsel %vm2623, %v2625, %v2621
        %v2627 = vmul.f32 1.0, %v2626
        %v2628 = vrcp.pop %v2566
        %v2629 = vmul.f32 %v2566, %v2628
        %v2630 = vsub.f32 1.0, %v2629
        %v2631 = vmul.f32 %v2628, %v2630
        %v2632 = vadd.f32 %v2628, %v2631
        %vm2633 = vweird.f32 %v2566
        %vm2634 = vweird.f32 %v2628
        %vm2635 = vmor %vm2633, %vm2634
        %v2636 = vsel %vm2635, %v2628, %v2632
        %v2637 = vand.u32 2147483647, %v2566
        %vm2638 = vcmp.eq.f32.partialorder %v2637, 8.507059e+37
        %v2639 = vand.u32 %v2566, 2147483648
        %v2640 = vor.u32 1.1754944e-38, %v2639
        %v2641 = vsel %vm2638, %v2640, %v2636
        %v2642 = vmul.f32 1.0, %v2641
        %v2643 = vrcp.pop %v2567
        %v2644 = vmul.f32 %v2567, %v2643
        %v2645 = vsub.f32 1.0, %v2644
        %v2646 = vmul.f32 %v2643, %v2645
        %v2647 = vadd.f32 %v2643, %v2646
        %vm2648 = vweird.f32 %v2567
        %vm2649 = vweird.f32 %v2643
        %vm2650 = vmor %vm2648, %vm2649
        %v2651 = vsel %vm2650, %v2643, %v2647
        %v2652 = vand.u32 2147483647, %v2567
        %vm2653 = vcmp.eq.f32.partialorder %v2652, 8.507059e+37
        %v2654 = vand.u32 %v2567, 2147483648
        %v2655 = vor.u32 1.1754944e-38, %v2654
        %v2656 = vsel %vm2653, %v2655, %v2651
        %v2657 = vmul.f32 1.0, %v2656
        %v2658 = vmul.f32 %v2542, %v2582
        %v2659 = vmul.f32 %v2543, %v2627
        %v2660 = vmul.f32 %v2459, %v2597
        %v2661 = vmul.f32 %v2460, %v2642
        %v2662 = vadd.f32 %v2658, %v2660
        %v2663 = vadd.f32 %v2659, %v2661
        %v2664 = vtanh.pop %v2662
        %v2665 = vtanh.pop %v2663
        %v2666 = vmul.f32 %v2664, %v2612
        %v2667 = vmul.f32 %v2665, %v2657
        %s2668 = scalar_lea.vmem [#allocation3], 96
        %2669 = vst [vmem:[%s2668] sm:$0xff] %v2666
        %2670 = vst [vmem:[%s2668 + $0x8] sm:$0xff] %v2667
        %s2671 = scalar_lea.vmem [#allocation2], 448
        %v2672 = vld [vmem:[%s2671] sm:$0xff]
        %v2673 = vld [vmem:[%s2671 + $0x8] sm:$0xff]
        %v2674 = vld [vmem:[%s2671 + $0x10] sm:$0xff]
        %v2675 = vld [vmem:[%s2671 + $0x18] sm:$0xff]
        %v2676 = vld [vmem:[%s2671 + $0x20] sm:$0xff]
        %v2677 = vld [vmem:[%s2671 + $0x28] sm:$0xff]
        %v2678 = vld [vmem:[%s2671 + $0x30] sm:$0xff]
        %v2679 = vld [vmem:[%s2671 + $0x38] sm:$0xff]
        %v2680 = vpack.c.bf16 %v2667, %v2666
        %2681 = vmatpush.bf16.msra.mxu0 %v1225
        %2682 = vmatpush.bf16.msra.mxu0 %v1221
        %2683 = vmatpush.bf16.msra.mxu0 %v1217
        %2684 = vmatpush.bf16.msra.mxu0 %v1213
        %2685 = vmatpush.bf16.msra.mxu0 %v1209
        %2686 = vmatpush.bf16.msra.mxu0 %v1205
        %2687 = vmatpush.bf16.msra.mxu0 %v1201
        %2688 = vmatpush.bf16.msra.mxu0 %v1197
        %2689 = vmatmul.bf16.gmra.mxu0 %v2680
        %v2690 = vpop.f32.mrf.mxu0
        %v2691 = vadd.f32 0.0, %v2690
        %v2692 = vpop.f32.mrf.mxu0
        %v2693 = vadd.f32 0.0, %v2692
        %2694 = vdwg.mxu0
        %2695 = vmatpush.bf16.msra.mxu0 %v1226
        %2696 = vmatpush.bf16.msra.mxu0 %v1222
        %2697 = vmatpush.bf16.msra.mxu0 %v1218
        %2698 = vmatpush.bf16.msra.mxu0 %v1214
        %2699 = vmatpush.bf16.msra.mxu0 %v1210
        %2700 = vmatpush.bf16.msra.mxu0 %v1206
        %2701 = vmatpush.bf16.msra.mxu0 %v1202
        %2702 = vmatpush.bf16.msra.mxu0 %v1198
        %2703 = vmatmul.bf16.gmra.mxu0 %v2680
        %v2704 = vpop.f32.mrf.mxu0
        %v2705 = vadd.f32 0.0, %v2704
        %v2706 = vpop.f32.mrf.mxu0
        %v2707 = vadd.f32 0.0, %v2706
        %2708 = vdwg.mxu0
        %2709 = vmatpush.bf16.msra.mxu0 %v1227
        %2710 = vmatpush.bf16.msra.mxu0 %v1223
        %2711 = vmatpush.bf16.msra.mxu0 %v1219
        %2712 = vmatpush.bf16.msra.mxu0 %v1215
        %2713 = vmatpush.bf16.msra.mxu0 %v1211
        %2714 = vmatpush.bf16.msra.mxu0 %v1207
        %2715 = vmatpush.bf16.msra.mxu0 %v1203
        %2716 = vmatpush.bf16.msra.mxu0 %v1199
        %2717 = vmatmul.bf16.gmra.mxu0 %v2680
        %v2718 = vpop.f32.mrf.mxu0
        %v2719 = vadd.f32 0.0, %v2718
        %v2720 = vpop.f32.mrf.mxu0
        %v2721 = vadd.f32 0.0, %v2720
        %2722 = vdwg.mxu0
        %2723 = vmatpush.bf16.msra.mxu0 %v1228
        %2724 = vmatpush.bf16.msra.mxu0 %v1224
        %2725 = vmatpush.bf16.msra.mxu0 %v1220
        %2726 = vmatpush.bf16.msra.mxu0 %v1216
        %2727 = vmatpush.bf16.msra.mxu0 %v1212
        %2728 = vmatpush.bf16.msra.mxu0 %v1208
        %2729 = vmatpush.bf16.msra.mxu0 %v1204
        %2730 = vmatpush.bf16.msra.mxu0 %v1200
        %2731 = vmatmul.bf16.gmra.mxu0 %v2680
        %v2732 = vpop.f32.mrf.mxu0
        %v2733 = vadd.f32 0.0, %v2732
        %v2734 = vpop.f32.mrf.mxu0
        %v2735 = vadd.f32 0.0, %v2734
        %2736 = vdwg.mxu0
        %v2737 = vadd.f32 %v2672, %v2691
        %v2738 = vadd.f32 %v2673, %v2705
        %v2739 = vadd.f32 %v2674, %v2719
        %v2740 = vadd.f32 %v2675, %v2733
        %v2741 = vadd.f32 %v2676, %v2693
        %v2742 = vadd.f32 %v2677, %v2707
        %v2743 = vadd.f32 %v2678, %v2721
        %v2744 = vadd.f32 %v2679, %v2735
        %v2745 = vtanh.pop %v2737
        %v2746 = vtanh.pop %v2741
        %v2747 = vxor.u32 %v2738, 2147483648
        %v2748 = vxor.u32 %v2739, 2147483648
        %v2749 = vxor.u32 %v2740, 2147483648
        %v2750 = vxor.u32 %v2742, 2147483648
        %v2751 = vxor.u32 %v2743, 2147483648
        %v2752 = vxor.u32 %v2744, 2147483648
        %v2753 = vmul.f32 %v2747, 1.442695
        %v2754 = vpow.pop %v2753
        %v2755 = vmul.f32 %v2748, 1.442695
        %v2756 = vpow.pop %v2755
        %v2757 = vmul.f32 %v2749, 1.442695
        %v2758 = vpow.pop %v2757
        %v2759 = vmul.f32 %v2750, 1.442695
        %v2760 = vpow.pop %v2759
        %v2761 = vmul.f32 %v2751, 1.442695
        %v2762 = vpow.pop %v2761
        %v2763 = vmul.f32 %v2752, 1.442695
        %v2764 = vpow.pop %v2763
        %v2765 = vadd.f32 %v2754, 1.0
        %v2766 = vadd.f32 %v2756, 1.0
        %v2767 = vadd.f32 %v2758, 1.0
        %v2768 = vadd.f32 %v2760, 1.0
        %v2769 = vadd.f32 %v2762, 1.0
        %v2770 = vadd.f32 %v2764, 1.0
        %v2771 = vrcp.pop %v2765
        %v2772 = vmul.f32 %v2765, %v2771
        %v2773 = vsub.f32 1.0, %v2772
        %v2774 = vmul.f32 %v2771, %v2773
        %v2775 = vadd.f32 %v2771, %v2774
        %vm2776 = vweird.f32 %v2765
        %vm2777 = vweird.f32 %v2771
        %vm2778 = vmor %vm2776, %vm2777
        %v2779 = vsel %vm2778, %v2771, %v2775
        %v2780 = vand.u32 2147483647, %v2765
        %vm2781 = vcmp.eq.f32.partialorder %v2780, 8.507059e+37
        %v2782 = vand.u32 %v2765, 2147483648
        %v2783 = vor.u32 1.1754944e-38, %v2782
        %v2784 = vsel %vm2781, %v2783, %v2779
        %v2785 = vmul.f32 1.0, %v2784
        %v2786 = vrcp.pop %v2766
        %v2787 = vmul.f32 %v2766, %v2786
        %v2788 = vsub.f32 1.0, %v2787
        %v2789 = vmul.f32 %v2786, %v2788
        %v2790 = vadd.f32 %v2786, %v2789
        %vm2791 = vweird.f32 %v2766
        %vm2792 = vweird.f32 %v2786
        %vm2793 = vmor %vm2791, %vm2792
        %v2794 = vsel %vm2793, %v2786, %v2790
        %v2795 = vand.u32 2147483647, %v2766
        %vm2796 = vcmp.eq.f32.partialorder %v2795, 8.507059e+37
        %v2797 = vand.u32 %v2766, 2147483648
        %v2798 = vor.u32 1.1754944e-38, %v2797
        %v2799 = vsel %vm2796, %v2798, %v2794
        %v2800 = vmul.f32 1.0, %v2799
        %v2801 = vrcp.pop %v2767
        %v2802 = vmul.f32 %v2767, %v2801
        %v2803 = vsub.f32 1.0, %v2802
        %v2804 = vmul.f32 %v2801, %v2803
        %v2805 = vadd.f32 %v2801, %v2804
        %vm2806 = vweird.f32 %v2767
        %vm2807 = vweird.f32 %v2801
        %vm2808 = vmor %vm2806, %vm2807
        %v2809 = vsel %vm2808, %v2801, %v2805
        %v2810 = vand.u32 2147483647, %v2767
        %vm2811 = vcmp.eq.f32.partialorder %v2810, 8.507059e+37
        %v2812 = vand.u32 %v2767, 2147483648
        %v2813 = vor.u32 1.1754944e-38, %v2812
        %v2814 = vsel %vm2811, %v2813, %v2809
        %v2815 = vmul.f32 1.0, %v2814
        %v2816 = vrcp.pop %v2768
        %v2817 = vmul.f32 %v2768, %v2816
        %v2818 = vsub.f32 1.0, %v2817
        %v2819 = vmul.f32 %v2816, %v2818
        %v2820 = vadd.f32 %v2816, %v2819
        %vm2821 = vweird.f32 %v2768
        %vm2822 = vweird.f32 %v2816
        %vm2823 = vmor %vm2821, %vm2822
        %v2824 = vsel %vm2823, %v2816, %v2820
        %v2825 = vand.u32 2147483647, %v2768
        %vm2826 = vcmp.eq.f32.partialorder %v2825, 8.507059e+37
        %v2827 = vand.u32 %v2768, 2147483648
        %v2828 = vor.u32 1.1754944e-38, %v2827
        %v2829 = vsel %vm2826, %v2828, %v2824
        %v2830 = vmul.f32 1.0, %v2829
        %v2831 = vrcp.pop %v2769
        %v2832 = vmul.f32 %v2769, %v2831
        %v2833 = vsub.f32 1.0, %v2832
        %v2834 = vmul.f32 %v2831, %v2833
        %v2835 = vadd.f32 %v2831, %v2834
        %vm2836 = vweird.f32 %v2769
        %vm2837 = vweird.f32 %v2831
        %vm2838 = vmor %vm2836, %vm2837
        %v2839 = vsel %vm2838, %v2831, %v2835
        %v2840 = vand.u32 2147483647, %v2769
        %vm2841 = vcmp.eq.f32.partialorder %v2840, 8.507059e+37
        %v2842 = vand.u32 %v2769, 2147483648
        %v2843 = vor.u32 1.1754944e-38, %v2842
        %v2844 = vsel %vm2841, %v2843, %v2839
        %v2845 = vmul.f32 1.0, %v2844
        %v2846 = vrcp.pop %v2770
        %v2847 = vmul.f32 %v2770, %v2846
        %v2848 = vsub.f32 1.0, %v2847
        %v2849 = vmul.f32 %v2846, %v2848
        %v2850 = vadd.f32 %v2846, %v2849
        %vm2851 = vweird.f32 %v2770
        %vm2852 = vweird.f32 %v2846
        %vm2853 = vmor %vm2851, %vm2852
        %v2854 = vsel %vm2853, %v2846, %v2850
        %v2855 = vand.u32 2147483647, %v2770
        %vm2856 = vcmp.eq.f32.partialorder %v2855, 8.507059e+37
        %v2857 = vand.u32 %v2770, 2147483648
        %v2858 = vor.u32 1.1754944e-38, %v2857
        %v2859 = vsel %vm2856, %v2858, %v2854
        %v2860 = vmul.f32 1.0, %v2859
        %v2861 = vmul.f32 %v2745, %v2785
        %v2862 = vmul.f32 %v2746, %v2830
        %v2863 = vmul.f32 %v2662, %v2800
        %v2864 = vmul.f32 %v2663, %v2845
        %v2865 = vadd.f32 %v2861, %v2863
        %v2866 = vadd.f32 %v2862, %v2864
        %v2867 = vtanh.pop %v2865
        %v2868 = vtanh.pop %v2866
        %v2869 = vmul.f32 %v2867, %v2815
        %v2870 = vmul.f32 %v2868, %v2860
        %s2871 = scalar_lea.vmem [#allocation3], 112
        %2872 = vst [vmem:[%s2871] sm:$0xff] %v2869
        %2873 = vst [vmem:[%s2871 + $0x8] sm:$0xff] %v2870
        %2874 = vst [vmem:[#allocation4] sm:$0xff] %v2869
        %2875 = vst [vmem:[#allocation4 + $0x8] sm:$0xff] %v2870
        %2876 = vst [vmem:[#allocation5] sm:$0xff] %v2865
        %2877 = vst [vmem:[#allocation5 + $0x8] sm:$0xff] %v2866
        %v2878 = vld [vmem:[#allocation3] sm:$0xff]
        %v2879 = vld [vmem:[#allocation3 + $0x8] sm:$0xff]
        %v2880 = vld [vmem:[#allocation3 + $0x10] sm:$0xff]
        %v2881 = vld [vmem:[#allocation3 + $0x18] sm:$0xff]
        %v2882 = vld [vmem:[#allocation3 + $0x20] sm:$0xff]
        %v2883 = vld [vmem:[#allocation3 + $0x28] sm:$0xff]
        %v2884 = vld [vmem:[#allocation3 + $0x30] sm:$0xff]
        %v2885 = vld [vmem:[#allocation3 + $0x38] sm:$0xff]
        %v2886 = vld [vmem:[#allocation3 + $0x40] sm:$0xff]
        %v2887 = vld [vmem:[#allocation3 + $0x48] sm:$0xff]
        %v2888 = vld [vmem:[#allocation3 + $0x50] sm:$0xff]
        %v2889 = vld [vmem:[#allocation3 + $0x58] sm:$0xff]
        %v2890 = vld [vmem:[#allocation3 + $0x60] sm:$0xff]
        %v2891 = vld [vmem:[#allocation3 + $0x68] sm:$0xff]
        %v2892 = vld [vmem:[#allocation3 + $0x70] sm:$0xff]
        %v2893 = vld [vmem:[#allocation3 + $0x78] sm:$0xff]
        %v2894 = vpack.c.bf16 %v2878, %v2878
        %v2895 = vpack.c.bf16 %v2879, %v2879
        %v2896 = vpack.c.bf16 %v2880, %v2880
        %v2897 = vpack.c.bf16 %v2881, %v2881
        %v2898 = vpack.c.bf16 %v2882, %v2882
        %v2899 = vpack.c.bf16 %v2883, %v2883
        %v2900 = vpack.c.bf16 %v2884, %v2884
        %v2901 = vpack.c.bf16 %v2885, %v2885
        %v2902 = vpack.c.bf16 %v2886, %v2886
        %v2903 = vpack.c.bf16 %v2887, %v2887
        %v2904 = vpack.c.bf16 %v2888, %v2888
        %v2905 = vpack.c.bf16 %v2889, %v2889
        %v2906 = vpack.c.bf16 %v2890, %v2890
        %v2907 = vpack.c.bf16 %v2891, %v2891
        %v2908 = vpack.c.bf16 %v2892, %v2892
        %v2909 = vpack.c.bf16 %v2893, %v2893
        %2910 = vst [vmem:[%s499] sm:$0xf] %v2894
        %2911 = vst [vmem:[%s499 + $0x4] sm:$0xf] %v2895
        %2912 = vst [vmem:[%s499 + $0x8] sm:$0xf] %v2896
        %2913 = vst [vmem:[%s499 + $0xc] sm:$0xf] %v2897
        %2914 = vst [vmem:[%s499 + $0x10] sm:$0xf] %v2898
        %2915 = vst [vmem:[%s499 + $0x14] sm:$0xf] %v2899
        %2916 = vst [vmem:[%s499 + $0x18] sm:$0xf] %v2900
        %2917 = vst [vmem:[%s499 + $0x1c] sm:$0xf] %v2901
        %2918 = vst [vmem:[%s499 + $0x20] sm:$0xf] %v2902
        %2919 = vst [vmem:[%s499 + $0x24] sm:$0xf] %v2903
        %2920 = vst [vmem:[%s499 + $0x28] sm:$0xf] %v2904
        %2921 = vst [vmem:[%s499 + $0x2c] sm:$0xf] %v2905
        %2922 = vst [vmem:[%s499 + $0x30] sm:$0xf] %v2906
        %2923 = vst [vmem:[%s499 + $0x34] sm:$0xf] %v2907
        %2924 = vst [vmem:[%s499 + $0x38] sm:$0xf] %v2908
        %2925 = vst [vmem:[%s499 + $0x3c] sm:$0xf] %v2909
        // Predicated region
        $region73: #{tpu_custom_call.1} parent=43 // pred_check
          %p2926 = pneg %p1044
        $region74: #{tpu_custom_call.1} parent=43 // pred_check_branch
          %2928 = sbr.rel (%p2926) target = $region76
        $region75: #{tpu_custom_call.1} parent=43 // pred_region
          %2929 = vst [vmem:[%s506] sm:$0xff] %v2869
          %2930 = vst [vmem:[%s506 + $0x8] sm:$0xff] %v2870
          %2931 = vst [vmem:[%s513] sm:$0xff] %v2865
          %2932 = vst [vmem:[%s513 + $0x8] sm:$0xff] %v2866
        $region76: #{tpu_custom_call.1} parent=43 // pred_fallthru
          _
        %s2933 = sand.u32 %s196, 1
        %s2934 = scalar_lea.sflag [#allocation8], %s2933
        %s2935 = sand.u32 %s196, 1
        %s2936 = smul.addr %s2935, 64
        %s2937 = scalar_lea.vmem [#allocation16], %s2936
        %s2938 = sand.u32 %s31, 1
        %s2939 = scalar_lea.sflag [#allocation18], %s2938
        %s2940 = sand.u32 %s222, 1
        %s2941 = smul.addr %s2940, 16
        %s2942 = scalar_lea.vmem [#allocation17], %s2941
        %s2943 = sand.u32 %s31, 1
        %s2944 = scalar_lea.sflag [#allocation18], %s2943
        %s2945 = sand.u32 %s248, 1
        %s2946 = smul.addr %s2945, 16
        %s2947 = scalar_lea.vmem [#allocation19], %s2946
        // Predicated region
        $region77: #{tpu_custom_call.1} parent=43 // pred_check
          %p2948 = pneg %p206
        $region78: #{tpu_custom_call.1} parent=43 // pred_check_branch
          %2950 = sbr.rel (%p2948) target = $region80
        $region79: #{tpu_custom_call.1} parent=43 // pred_region
          #allocation23 [shape = 'u32[6]{0}', space=smem, size = 0x18, scoped, tag = 'DMA stride descriptor']
          %s2951 = smul.u32 8, %s36
          %s2952 = smul.u32 2, %s35
          %2954 = vsyncadd %s2934, 0
          %s2955 = smul.addr %s2951, 4
          %s2956 = sadd.s32 %s2952, %s2955
          %s2957 = smul.addr %s2956, 4
          %s2958 = scalar_lea.hbm %s6, %s2957
          %s2960 = sshll.u32 1, 14
          %s2961 = sxor.u32 4294967295, %s2960
          %s2964 = sshll.u32 7, 18
          %s2965 = sxor.u32 4294967295, %s2964
          %s2966 = sand.u32 0, %s2965
          %s2968 = sor.u32 %s2966, 0
          %s2969 = sshll.u32 %s2937, 4
          %s2970 = int_to_ptr.vmem [resolvable:$true] %s2969
          %s2971 = sshll.u32 %s2958, 4
          %s2972 = int_to_ptr.hbm [resolvable:$true] %s2971
          %2978 = sst [smem:[#allocation23]] 128
          %s2979 = scalar_lea.smem [#allocation23], 1
          %2980 = sst [smem:[%s2979]] 256
          %s2981 = scalar_lea.smem [#allocation23], 2
          %2982 = sst [smem:[%s2981]] 2
          %s2983 = scalar_lea.smem [#allocation23], 3
          %2984 = sst [smem:[%s2983]] 64
          %s2985 = scalar_lea.smem [#allocation23], 4
          %2986 = sst [smem:[%s2985]] 64
          %s2987 = scalar_lea.smem [#allocation23], 5
          %2988 = sst [smem:[%s2987]] 4
          %2990 = dma.general %s2970, 1024, %s2972, %s2934, [#allocation22], [#allocation23], %s2968, 0
        $region80: #{tpu_custom_call.1} parent=43 // pred_fallthru
          _
        // Predicated region
        $region81: #{tpu_custom_call.1} parent=43 // pred_check
          %p2991 = pneg %p232
        $region82: #{tpu_custom_call.1} parent=43 // pred_check_branch
          %2993 = sbr.rel (%p2991) target = $region84
        $region83: #{tpu_custom_call.1} parent=43 // pred_region
          %2995 = vsyncadd %s2939, 0
          %s2996 = smul.addr %s35, 2
          %s2997 = smul.addr %s2996, 8
          %s2998 = scalar_lea.hbm %s7, %s2997
          %s2999 = sshll.u32 %s2942, 4
          %s3000 = int_to_ptr.vmem [resolvable:$true] %s2999
          %s3001 = sshll.u32 %s2998, 4
          %s3002 = int_to_ptr.hbm [resolvable:$true] %s3001
          %3007 = dma.vmem_to_hbm [thread:$0]  %s3000, 256, %s3002, %s2939, 128, 128, 8
        $region84: #{tpu_custom_call.1} parent=43 // pred_fallthru
          _
        // Predicated region
        $region85: #{tpu_custom_call.1} parent=43 // pred_check
          %p3008 = pneg %p258
        $region86: #{tpu_custom_call.1} parent=43 // pred_check_branch
          %3010 = sbr.rel (%p3008) target = $region88
        $region87: #{tpu_custom_call.1} parent=43 // pred_region
          %3012 = vsyncadd %s2944, 0
          %s3013 = smul.addr %s35, 2
          %s3014 = smul.addr %s3013, 8
          %s3015 = scalar_lea.hbm %s8, %s3014
          %s3016 = sshll.u32 %s2947, 4
          %s3017 = int_to_ptr.vmem [resolvable:$true] %s3016
          %s3018 = sshll.u32 %s3015, 4
          %s3019 = int_to_ptr.hbm [resolvable:$true] %s3018
          %3024 = dma.vmem_to_hbm [thread:$0]  %s3017, 256, %s3019, %s2944, 128, 128, 8
        $region88: #{tpu_custom_call.1} parent=43 // pred_fallthru
          _
      $region44: #{tpu_custom_call.1} parent=5 // pred_fallthru
        _
      %p3025 = scmp.le.s32.totalorder 2, %s26
      // Predicated region
      $region89: #{tpu_custom_call.1} parent=5 // pred_check
        %p3026 = pneg %p3025
      $region90: #{tpu_custom_call.1} parent=5 // pred_check_branch
        %3028 = sbr.rel (%p3026) target = $region92
      $region91: #{tpu_custom_call.1} parent=5 // pred_region
        %s3029 = ssub.s32 %s26, 2
        // Predicated region
        $region93: #{tpu_custom_call.1} parent=91 // pred_check
          %p3030 = pneg %p212
        $region94: #{tpu_custom_call.1} parent=91 // pred_check_branch
          %3032 = sbr.rel (%p3030) target = $region96
        $region95: #{tpu_custom_call.1} parent=91 // pred_region
          %s3033 = sand.u32 %s197, 1
          %s3034 = scalar_lea.sflag [#allocation8], %s3033
          %s3035 = sand.u32 %s197, 1
          %s3036 = smul.addr %s3035, 64
          %s3037 = scalar_lea.vmem [#allocation16], %s3036
          %3039 = dma.done %s3034, 1024
        $region96: #{tpu_custom_call.1} parent=91 // pred_fallthru
          _
        // Predicated region
        $region97: #{tpu_custom_call.1} parent=91 // pred_check
          %p3040 = pneg %p238
        $region98: #{tpu_custom_call.1} parent=91 // pred_check_branch
          %3042 = sbr.rel (%p3040) target = $region100
        $region99: #{tpu_custom_call.1} parent=91 // pred_region
          %s3043 = sand.u32 %s32, 1
          %s3044 = scalar_lea.sflag [#allocation18], %s3043
          %s3045 = sand.u32 %s223, 1
          %s3046 = smul.addr %s3045, 16
          %s3047 = scalar_lea.vmem [#allocation17], %s3046
          %3049 = dma.done %s3044, 256
        $region100: #{tpu_custom_call.1} parent=91 // pred_fallthru
          _
        // Predicated region
        $region101: #{tpu_custom_call.1} parent=91 // pred_check
          %p3050 = pneg %p264
        $region102: #{tpu_custom_call.1} parent=91 // pred_check_branch
          %3052 = sbr.rel (%p3050) target = $region104
        $region103: #{tpu_custom_call.1} parent=91 // pred_region
          %s3053 = sand.u32 %s32, 1
          %s3054 = scalar_lea.sflag [#allocation18], %s3053
          %s3055 = sand.u32 %s249, 1
          %s3056 = smul.addr %s3055, 16
          %s3057 = scalar_lea.vmem [#allocation19], %s3056
          %3059 = dma.done %s3054, 256
        $region104: #{tpu_custom_call.1} parent=91 // pred_fallthru
          _
      $region92: #{tpu_custom_call.1} parent=5 // pred_fallthru
        _
    $region6: #{tpu_custom_call.1} parent=1 // loop_footer
      %s30 = sadd.s32 1, %s26
    $region7: #{tpu_custom_call.1} parent=1 // loop_footer_branch
      %25 = sbr.rel target = $region3
    $region8: #{tpu_custom_call.1} parent=1 // loop_exit
      _
    %3060 = vsyncpa [#allocation7], 1
    %s3061 = scalar_lea.sflag [#allocation7], 1
    %3062 = vsyncpa %s3061, 1
    %3063 = vsyncpa [#allocation10], 1
    %3064 = vsyncpa [#allocation13], 1
    %3065 = vsyncpa [#allocation8], 1
    %s3066 = scalar_lea.sflag [#allocation8], 1
    %3067 = vsyncpa %s3066, 1
    %3068 = vsyncpa [#allocation18], 1
    %s3069 = scalar_lea.sflag [#allocation18], 1
    %3070 = vsyncpa %s3069, 1

</llo_original>
